<compile_context>
chip_gen: v7x
topology: tpu7x:2x2x1
jax: 0.10.0
libtpu: 0.0.40
codegen_flags: <defaults>
</compile_context>

<pallas_src>
import jax
import jax.numpy as jnp
import numpy as np
from jax.experimental import pallas as pl
from jax.experimental.pallas import tpu as pltpu


# ----------------------------------------------------------------------------
# Kernel
# ----------------------------------------------------------------------------
def model_kernel(x_ref, w1, b1, w2, b2, w3, b3, w4, b4, w5, b5, o_ref):
    block_b, L = o_ref.shape          # (B_blk, L)
    n = x_ref.shape[1]                # B_blk * L  (lane axis)

    # Lane-position masks (built once per step, reused by every layer).
    # Position within each length-L batch segment; tap contributions that would
    # cross a segment edge must be zero (the Conv1d "same" zero padding).
    lane = jax.lax.broadcasted_iota(jnp.int32, (1, n), 1)
    if (L & (L - 1)) == 0:
        pos = lane & (L - 1)          # L is a power of two -> cheap AND
    else:
        pos = lane % L
    not_first = (pos != 0).astype(jnp.float32)        # valid lanes for x[t-1]
    not_last = (pos != (L - 1)).astype(jnp.float32)   # valid lanes for x[t+1]

    def conv_layer(x, w_ref, b_ref, relu=True):
        # x: (Cin, n); w_ref: (3*Coutp, Cin) stacked taps [W0; W1; W2] with
        # Coutp = Cout rounded up to a multiple of 8; b_ref: (Cout, 1).
        coutp = w_ref.shape[0] // 3
        cout = b_ref.shape[0]
        # One MXU matmul per layer; x is streamed once as the RHS.
        y_all = jnp.dot(w_ref[...], x, preferred_element_type=jnp.float32)
        y0 = y_all[0 * coutp:1 * coutp, :]    # W0 @ x[:, t]
        y1 = y_all[1 * coutp:2 * coutp, :]    # W1 @ x[:, t]
        y2 = y_all[2 * coutp:3 * coutp, :]    # W2 @ x[:, t]
        # y[:, t] = W0 x[:, t-1] + W1 x[:, t] + W2 x[:, t+1]  (output-side rolls)
        y = (pltpu.roll(y0, shift=1, axis=1) * not_first
             + y1
             + pltpu.roll(y2, shift=n - 1, axis=1) * not_last)
        y = y[:cout, :] + b_ref[...]          # drop padded rows, add bias
        if relu:
            y = jnp.maximum(y, 0.0)
        return y

    x = x_ref[...]                                # (64, n)
    h = conv_layer(x, w1, b1)                     # (8,  n)
    h = conv_layer(h, w2, b2)                     # (8,  n)
    h = conv_layer(h, w3, b3)                     # (16, n)
    h = conv_layer(h, w4, b4)                     # (16, n)
    z = conv_layer(h, w5, b5, relu=False)         # (1,  n)

    # Re-pack the single lane-row (1, B_blk*L) into (B_blk, L) with static,
    # lane-tile-aligned slices, then a vectorized per-row softmax.
    z2d = jnp.concatenate(
        [z[:, b * L:(b + 1) * L] for b in range(block_b)], axis=0
    )                                             # (B_blk, L)
    m = jnp.max(z2d, axis=1, keepdims=True)
    e = jnp.exp(z2d - m)
    s = jnp.sum(e, axis=1, keepdims=True)
    o_ref[...] = e / s                            # exact divide (1e-5 check)


# ----------------------------------------------------------------------------
# Block-size selection (generation-aware)
# ----------------------------------------------------------------------------
def _tensorcores_per_chip():
    """2 TensorCores share one Pallas 'parallel' grid on v7x; 1 on v5e/v6e."""
    try:
        kind = (jax.devices()[0].device_kind or "").lower()
    except Exception:
        return 1
    return 2 if ("v7" in kind or "7x" in kind) else 1


def _pick_block_b(B, L, n_tc, max_lanes=8192):
    """Fewest, fattest grid steps: step count is a multiple of the TensorCore
    count, block stays lane/sublane-tile aligned and within the VMEM budget
    (max_lanes lanes -> ~4 MiB double-buffered input + a few MiB live
    intermediates, comfortably under the scoped VMEM limit on all chips)."""
    for block_b in range(B, 0, -1):
        if B % block_b:
            continue
        if block_b != B:
            if (block_b * L) % 128 != 0:      # lane tiling of the input block
                continue
            if block_b % 8 != 0:              # sublane tiling of the output block
                continue
        if block_b * L > max_lanes:
            continue
        if (B // block_b) % n_tc != 0:
            continue
        return block_b
    return B                                   # fallback: one step over all of B


# ----------------------------------------------------------------------------
# Wrapper
# ----------------------------------------------------------------------------
def model_forward(x, params, block_b=None):
    """x: (B, 64, L) f32.  Returns (B, L) softmax probabilities."""
    B, C_in, L = x.shape
    assert C_in == 64

    n_tc = _tensorcores_per_chip()
    if block_b is None:
        block_b = _pick_block_b(B, L, n_tc)
    assert B % block_b == 0
    assert block_b == B or (block_b * L) % 128 == 0
    n = block_b * L

    # (B, 64, L) -> (64, B*L): channels on sublanes, batch*length on lanes.
    # NOTE: for large B this standalone transpose is an extra HBM read+write;
    # a producer emitting channel-major data (or an in-kernel retile of
    # (block_b, 64, L) blocks) would remove it.  Negligible at these sizes.
    x_flat = jnp.transpose(x, (1, 0, 2)).reshape(C_in, B * L)

    operands = []
    weight_specs = []
    for (w, b) in params:
        k, cout, cin = w.shape                     # (3, Cout, Cin)
        cout_p = -(-cout // 8) * 8                 # pad Cout to sublane multiple
        w_p = jnp.zeros((k, cout_p, cin), w.dtype).at[:, :cout, :].set(w)
        # Stacked-tap weight: (3*Cout_p, Cin), row groups [W_tap0; W_tap1; W_tap2].
        w_stack = w_p.reshape(k * cout_p, cin)
        operands.extend([w_stack, b])
        # Constant index maps -> weights/biases are not re-DMA'd per grid step.
        weight_specs.append(pl.BlockSpec(w_stack.shape, lambda i: (0, 0)))
        weight_specs.append(pl.BlockSpec(b.shape, lambda i: (0, 0)))

    return pl.pallas_call(
        model_kernel,
        out_shape=jax.ShapeDtypeStruct((B, L), jnp.float32),
        grid_spec=pltpu.PrefetchScalarGridSpec(
            num_scalar_prefetch=0,
            grid=(B // block_b,),
            in_specs=[pl.BlockSpec((C_in, n), lambda i: (0, i))] + weight_specs,
            out_specs=pl.BlockSpec((block_b, L), lambda i: (i, 0)),
        ),
        compiler_params=pltpu.CompilerParams(
            dimension_semantics=("parallel",),
            vmem_limit_bytes=32 * 1024 * 1024,     # explicit budget (v5e default is 16 MiB)
        ),
    )(x_flat, *operands)


# ----------------------------------------------------------------------------
# Deterministic parameter init (PyTorch Conv1d-style uniform(-1/sqrt(fan_in)))
# ----------------------------------------------------------------------------
def init_params(key):
    layer_dims = [(64, 8), (8, 8), (8, 16), (16, 16), (16, 1)]
    params = []
    for (cin, cout) in layer_dims:
        key, kw, kb = jax.random.split(key, 3)
        bound = 1.0 / np.sqrt(cin * 3)
        # stored as (3, Cout, Cin): taps k=0,1,2 correspond to x[t-1], x[t], x[t+1]
        w = jax.random.uniform(kw, (3, cout, cin), jnp.float32, -bound, bound)
        b = jax.random.uniform(kb, (cout, 1), jnp.float32, -bound, bound)
        params.append((w, b))
    return params


# ----------------------------------------------------------------------------
# Pure-JAX reference (for a sanity check)
# ----------------------------------------------------------------------------
def reference_forward(x, params):
    h = x
    for i, (w, b) in enumerate(params):
        # w: (3, Cout, Cin) -> conv weights (Cout, Cin, 3)
        w_conv = jnp.transpose(w, (1, 2, 0))
        h = jax.lax.conv_general_dilated(
            h, w_conv, window_strides=(1,), padding=((1, 1),),
            dimension_numbers=("NCH", "OIH", "NCH"),
        ) + b[None, :, 0][:, :, None]
        if i < 4:
            h = jnp.maximum(h, 0.0)
    z = h.reshape(h.shape[0], -1)
    return jax.nn.softmax(z, axis=1)


if __name__ == "__main__":
    key = jax.random.PRNGKey(0)
    kparam, kx = jax.random.split(key)

    params = init_params(kparam)

    B, C, L = 16, 64, 128                 # 1 fat step on v5e/v6e, 2 steps on v7x
    x = jax.random.normal(kx, (B, C, L), jnp.float32)

    out = model_forward(x, params)
    out = jax.block_until_ready(out)

    ref = reference_forward(x, params)
    np.testing.assert_allclose(np.asarray(out), np.asarray(ref),
                               rtol=1e-5, atol=1e-5)

    print("KERNEL_OK")
</pallas_src>

<mosaic_0001>
module attributes {stable_mosaic.version = 11 : i64} {
  func.func @model_kernel(%arg0: i32, %arg1: memref<64x2048xf32, #tpu.memory_space<vmem>>, %arg2: memref<24x64xf32, #tpu.memory_space<vmem>>, %arg3: memref<8x1xf32, #tpu.memory_space<vmem>>, %arg4: memref<24x8xf32, #tpu.memory_space<vmem>>, %arg5: memref<8x1xf32, #tpu.memory_space<vmem>>, %arg6: memref<48x8xf32, #tpu.memory_space<vmem>>, %arg7: memref<16x1xf32, #tpu.memory_space<vmem>>, %arg8: memref<48x16xf32, #tpu.memory_space<vmem>>, %arg9: memref<16x1xf32, #tpu.memory_space<vmem>>, %arg10: memref<24x16xf32, #tpu.memory_space<vmem>>, %arg11: memref<1x1xf32, #tpu.memory_space<vmem>>, %arg12: memref<16x128xf32, #tpu.memory_space<vmem>>) attributes {dimension_semantics = [#tpu.dimension_semantics<parallel>], iteration_bounds = array<i64: 1>, scalar_prefetch = 0 : i64, scratch_operands = 0 : i64, tpu.core_type = #tpu.core_type<tc>, window_params = [{transform_indices = @transform_0, window_bounds = array<i64: 64, 2048>}, {pipeline_mode = #tpu.pipeline_mode<synchronous>, transform_indices = @transform_1, window_bounds = array<i64: 24, 64>}, {pipeline_mode = #tpu.pipeline_mode<synchronous>, transform_indices = @transform_2, window_bounds = array<i64: 8, 1>}, {pipeline_mode = #tpu.pipeline_mode<synchronous>, transform_indices = @transform_3, window_bounds = array<i64: 24, 8>}, {pipeline_mode = #tpu.pipeline_mode<synchronous>, transform_indices = @transform_4, window_bounds = array<i64: 8, 1>}, {pipeline_mode = #tpu.pipeline_mode<synchronous>, transform_indices = @transform_5, window_bounds = array<i64: 48, 8>}, {pipeline_mode = #tpu.pipeline_mode<synchronous>, transform_indices = @transform_6, window_bounds = array<i64: 16, 1>}, {pipeline_mode = #tpu.pipeline_mode<synchronous>, transform_indices = @transform_7, window_bounds = array<i64: 48, 16>}, {pipeline_mode = #tpu.pipeline_mode<synchronous>, transform_indices = @transform_8, window_bounds = array<i64: 16, 1>}, {pipeline_mode = #tpu.pipeline_mode<synchronous>, transform_indices = @transform_9, window_bounds = array<i64: 24, 16>}, {pipeline_mode = #tpu.pipeline_mode<synchronous>, transform_indices = @transform_10, window_bounds = array<i64: 1, 1>}, {transform_indices = @transform_11, window_bounds = array<i64: 16, 128>}]} {
    %0 = tpu.iota {dimensions = array<i32: 1>} : vector<1x2048xi32>
    %c127_i32 = arith.constant 127 : i32
    %1 = vector.broadcast %c127_i32 : i32 to vector<1x2048xi32>
    %2 = arith.andi %0, %1 : vector<1x2048xi32>
    %c0_i32 = arith.constant 0 : i32
    %3 = vector.broadcast %c0_i32 : i32 to vector<1x2048xi32>
    %4 = arith.cmpi ne, %2, %3 : vector<1x2048xi32>
    %5 = arith.extui %4 : vector<1x2048xi1> to vector<1x2048xi32>
    %6 = arith.sitofp %5 : vector<1x2048xi32> to vector<1x2048xf32>
    %c127_i32_0 = arith.constant 127 : i32
    %7 = vector.broadcast %c127_i32_0 : i32 to vector<1x2048xi32>
    %8 = arith.cmpi ne, %2, %7 : vector<1x2048xi32>
    %9 = arith.extui %8 : vector<1x2048xi1> to vector<1x2048xi32>
    %10 = arith.sitofp %9 : vector<1x2048xi32> to vector<1x2048xf32>
    %c0 = arith.constant 0 : index
    %c0_1 = arith.constant 0 : index
    %11 = vector.load %arg1[%c0, %c0_1] : memref<64x2048xf32, #tpu.memory_space<vmem>>, vector<64x2048xf32>
    %c0_2 = arith.constant 0 : index
    %c0_3 = arith.constant 0 : index
    %12 = vector.load %arg2[%c0_2, %c0_3] : memref<24x64xf32, #tpu.memory_space<vmem>>, vector<24x64xf32>
    %cst = arith.constant dense<0.000000e+00> : vector<24x2048xf32>
    %13 = tpu.matmul %12, %11, %cst {dimension_numbers = #tpu.dot_dimension_numbers<[1], [0], [0], [1], [0, 0, 1, 1], [], []>} : vector<24x64xf32>, vector<64x2048xf32>, vector<24x2048xf32> -> vector<24x2048xf32>
    %14 = vector.extract_strided_slice %13 {offsets = [0, 0], sizes = [8, 2048], strides = [1, 1]} : vector<24x2048xf32> to vector<8x2048xf32>
    %15 = vector.extract_strided_slice %13 {offsets = [8, 0], sizes = [8, 2048], strides = [1, 1]} : vector<24x2048xf32> to vector<8x2048xf32>
    %16 = vector.extract_strided_slice %13 {offsets = [16, 0], sizes = [8, 2048], strides = [1, 1]} : vector<24x2048xf32> to vector<8x2048xf32>
    %c1_i32 = arith.constant 1 : i32
    %17 = tpu.dynamic_rotate %14 by %c1_i32 dim 1 : vector<8x2048xf32>, i32 -> vector<8x2048xf32>
    %18 = vector.broadcast %6 : vector<1x2048xf32> to vector<8x2048xf32>
    %19 = arith.mulf %17, %18 : vector<8x2048xf32>
    %20 = arith.addf %19, %15 : vector<8x2048xf32>
    %c2047_i32 = arith.constant 2047 : i32
    %21 = tpu.dynamic_rotate %16 by %c2047_i32 dim 1 : vector<8x2048xf32>, i32 -> vector<8x2048xf32>
    %22 = vector.broadcast %10 : vector<1x2048xf32> to vector<8x2048xf32>
    %23 = arith.mulf %21, %22 : vector<8x2048xf32>
    %24 = arith.addf %20, %23 : vector<8x2048xf32>
    %c0_4 = arith.constant 0 : index
    %c0_5 = arith.constant 0 : index
    %25 = vector.load %arg3[%c0_4, %c0_5] : memref<8x1xf32, #tpu.memory_space<vmem>>, vector<8x1xf32>
    %26 = vector.broadcast %25 : vector<8x1xf32> to vector<8x2048xf32>
    %27 = arith.addf %24, %26 : vector<8x2048xf32>
    %cst_6 = arith.constant 0.000000e+00 : f32
    %28 = vector.broadcast %cst_6 : f32 to vector<8x2048xf32>
    %29 = arith.maximumf %27, %28 : vector<8x2048xf32>
    %c0_7 = arith.constant 0 : index
    %c0_8 = arith.constant 0 : index
    %30 = vector.load %arg4[%c0_7, %c0_8] : memref<24x8xf32, #tpu.memory_space<vmem>>, vector<24x8xf32>
    %cst_9 = arith.constant dense<0.000000e+00> : vector<24x2048xf32>
    %31 = tpu.matmul %30, %29, %cst_9 {dimension_numbers = #tpu.dot_dimension_numbers<[1], [0], [0], [1], [0, 0, 1, 1], [], []>} : vector<24x8xf32>, vector<8x2048xf32>, vector<24x2048xf32> -> vector<24x2048xf32>
    %32 = vector.extract_strided_slice %31 {offsets = [0, 0], sizes = [8, 2048], strides = [1, 1]} : vector<24x2048xf32> to vector<8x2048xf32>
    %33 = vector.extract_strided_slice %31 {offsets = [8, 0], sizes = [8, 2048], strides = [1, 1]} : vector<24x2048xf32> to vector<8x2048xf32>
    %34 = vector.extract_strided_slice %31 {offsets = [16, 0], sizes = [8, 2048], strides = [1, 1]} : vector<24x2048xf32> to vector<8x2048xf32>
    %c1_i32_10 = arith.constant 1 : i32
    %35 = tpu.dynamic_rotate %32 by %c1_i32_10 dim 1 : vector<8x2048xf32>, i32 -> vector<8x2048xf32>
    %36 = vector.broadcast %6 : vector<1x2048xf32> to vector<8x2048xf32>
    %37 = arith.mulf %35, %36 : vector<8x2048xf32>
    %38 = arith.addf %37, %33 : vector<8x2048xf32>
    %c2047_i32_11 = arith.constant 2047 : i32
    %39 = tpu.dynamic_rotate %34 by %c2047_i32_11 dim 1 : vector<8x2048xf32>, i32 -> vector<8x2048xf32>
    %40 = vector.broadcast %10 : vector<1x2048xf32> to vector<8x2048xf32>
    %41 = arith.mulf %39, %40 : vector<8x2048xf32>
    %42 = arith.addf %38, %41 : vector<8x2048xf32>
    %c0_12 = arith.constant 0 : index
    %c0_13 = arith.constant 0 : index
    %43 = vector.load %arg5[%c0_12, %c0_13] : memref<8x1xf32, #tpu.memory_space<vmem>>, vector<8x1xf32>
    %44 = vector.broadcast %43 : vector<8x1xf32> to vector<8x2048xf32>
    %45 = arith.addf %42, %44 : vector<8x2048xf32>
    %cst_14 = arith.constant 0.000000e+00 : f32
    %46 = vector.broadcast %cst_14 : f32 to vector<8x2048xf32>
    %47 = arith.maximumf %45, %46 : vector<8x2048xf32>
    %c0_15 = arith.constant 0 : index
    %c0_16 = arith.constant 0 : index
    %48 = vector.load %arg6[%c0_15, %c0_16] : memref<48x8xf32, #tpu.memory_space<vmem>>, vector<48x8xf32>
    %cst_17 = arith.constant dense<0.000000e+00> : vector<48x2048xf32>
    %49 = tpu.matmul %48, %47, %cst_17 {dimension_numbers = #tpu.dot_dimension_numbers<[1], [0], [0], [1], [0, 0, 1, 1], [], []>} : vector<48x8xf32>, vector<8x2048xf32>, vector<48x2048xf32> -> vector<48x2048xf32>
    %50 = vector.extract_strided_slice %49 {offsets = [0, 0], sizes = [16, 2048], strides = [1, 1]} : vector<48x2048xf32> to vector<16x2048xf32>
    %51 = vector.extract_strided_slice %49 {offsets = [16, 0], sizes = [16, 2048], strides = [1, 1]} : vector<48x2048xf32> to vector<16x2048xf32>
    %52 = vector.extract_strided_slice %49 {offsets = [32, 0], sizes = [16, 2048], strides = [1, 1]} : vector<48x2048xf32> to vector<16x2048xf32>
    %c1_i32_18 = arith.constant 1 : i32
    %53 = tpu.dynamic_rotate %50 by %c1_i32_18 dim 1 : vector<16x2048xf32>, i32 -> vector<16x2048xf32>
    %54 = vector.broadcast %6 : vector<1x2048xf32> to vector<16x2048xf32>
    %55 = arith.mulf %53, %54 : vector<16x2048xf32>
    %56 = arith.addf %55, %51 : vector<16x2048xf32>
    %c2047_i32_19 = arith.constant 2047 : i32
    %57 = tpu.dynamic_rotate %52 by %c2047_i32_19 dim 1 : vector<16x2048xf32>, i32 -> vector<16x2048xf32>
    %58 = vector.broadcast %10 : vector<1x2048xf32> to vector<16x2048xf32>
    %59 = arith.mulf %57, %58 : vector<16x2048xf32>
    %60 = arith.addf %56, %59 : vector<16x2048xf32>
    %c0_20 = arith.constant 0 : index
    %c0_21 = arith.constant 0 : index
    %61 = vector.load %arg7[%c0_20, %c0_21] : memref<16x1xf32, #tpu.memory_space<vmem>>, vector<16x1xf32>
    %62 = vector.broadcast %61 : vector<16x1xf32> to vector<16x2048xf32>
    %63 = arith.addf %60, %62 : vector<16x2048xf32>
    %cst_22 = arith.constant 0.000000e+00 : f32
    %64 = vector.broadcast %cst_22 : f32 to vector<16x2048xf32>
    %65 = arith.maximumf %63, %64 : vector<16x2048xf32>
    %c0_23 = arith.constant 0 : index
    %c0_24 = arith.constant 0 : index
    %66 = vector.load %arg8[%c0_23, %c0_24] : memref<48x16xf32, #tpu.memory_space<vmem>>, vector<48x16xf32>
    %cst_25 = arith.constant dense<0.000000e+00> : vector<48x2048xf32>
    %67 = tpu.matmul %66, %65, %cst_25 {dimension_numbers = #tpu.dot_dimension_numbers<[1], [0], [0], [1], [0, 0, 1, 1], [], []>} : vector<48x16xf32>, vector<16x2048xf32>, vector<48x2048xf32> -> vector<48x2048xf32>
    %68 = vector.extract_strided_slice %67 {offsets = [0, 0], sizes = [16, 2048], strides = [1, 1]} : vector<48x2048xf32> to vector<16x2048xf32>
    %69 = vector.extract_strided_slice %67 {offsets = [16, 0], sizes = [16, 2048], strides = [1, 1]} : vector<48x2048xf32> to vector<16x2048xf32>
    %70 = vector.extract_strided_slice %67 {offsets = [32, 0], sizes = [16, 2048], strides = [1, 1]} : vector<48x2048xf32> to vector<16x2048xf32>
    %c1_i32_26 = arith.constant 1 : i32
    %71 = tpu.dynamic_rotate %68 by %c1_i32_26 dim 1 : vector<16x2048xf32>, i32 -> vector<16x2048xf32>
    %72 = vector.broadcast %6 : vector<1x2048xf32> to vector<16x2048xf32>
    %73 = arith.mulf %71, %72 : vector<16x2048xf32>
    %74 = arith.addf %73, %69 : vector<16x2048xf32>
    %c2047_i32_27 = arith.constant 2047 : i32
    %75 = tpu.dynamic_rotate %70 by %c2047_i32_27 dim 1 : vector<16x2048xf32>, i32 -> vector<16x2048xf32>
    %76 = vector.broadcast %10 : vector<1x2048xf32> to vector<16x2048xf32>
    %77 = arith.mulf %75, %76 : vector<16x2048xf32>
    %78 = arith.addf %74, %77 : vector<16x2048xf32>
    %c0_28 = arith.constant 0 : index
    %c0_29 = arith.constant 0 : index
    %79 = vector.load %arg9[%c0_28, %c0_29] : memref<16x1xf32, #tpu.memory_space<vmem>>, vector<16x1xf32>
    %80 = vector.broadcast %79 : vector<16x1xf32> to vector<16x2048xf32>
    %81 = arith.addf %78, %80 : vector<16x2048xf32>
    %cst_30 = arith.constant 0.000000e+00 : f32
    %82 = vector.broadcast %cst_30 : f32 to vector<16x2048xf32>
    %83 = arith.maximumf %81, %82 : vector<16x2048xf32>
    %c0_31 = arith.constant 0 : index
    %c0_32 = arith.constant 0 : index
    %84 = vector.load %arg10[%c0_31, %c0_32] : memref<24x16xf32, #tpu.memory_space<vmem>>, vector<24x16xf32>
    %cst_33 = arith.constant dense<0.000000e+00> : vector<24x2048xf32>
    %85 = tpu.matmul %84, %83, %cst_33 {dimension_numbers = #tpu.dot_dimension_numbers<[1], [0], [0], [1], [0, 0, 1, 1], [], []>} : vector<24x16xf32>, vector<16x2048xf32>, vector<24x2048xf32> -> vector<24x2048xf32>
    %86 = vector.extract_strided_slice %85 {offsets = [0, 0], sizes = [8, 2048], strides = [1, 1]} : vector<24x2048xf32> to vector<8x2048xf32>
    %87 = vector.extract_strided_slice %85 {offsets = [8, 0], sizes = [8, 2048], strides = [1, 1]} : vector<24x2048xf32> to vector<8x2048xf32>
    %88 = vector.extract_strided_slice %85 {offsets = [16, 0], sizes = [8, 2048], strides = [1, 1]} : vector<24x2048xf32> to vector<8x2048xf32>
    %c1_i32_34 = arith.constant 1 : i32
    %89 = tpu.dynamic_rotate %86 by %c1_i32_34 dim 1 : vector<8x2048xf32>, i32 -> vector<8x2048xf32>
    %90 = vector.broadcast %6 : vector<1x2048xf32> to vector<8x2048xf32>
    %91 = arith.mulf %89, %90 : vector<8x2048xf32>
    %92 = arith.addf %91, %87 : vector<8x2048xf32>
    %c2047_i32_35 = arith.constant 2047 : i32
    %93 = tpu.dynamic_rotate %88 by %c2047_i32_35 dim 1 : vector<8x2048xf32>, i32 -> vector<8x2048xf32>
    %94 = vector.broadcast %10 : vector<1x2048xf32> to vector<8x2048xf32>
    %95 = arith.mulf %93, %94 : vector<8x2048xf32>
    %96 = arith.addf %92, %95 : vector<8x2048xf32>
    %97 = vector.extract_strided_slice %96 {offsets = [0, 0], sizes = [1, 2048], strides = [1, 1]} : vector<8x2048xf32> to vector<1x2048xf32>
    %c0_36 = arith.constant 0 : index
    %c0_37 = arith.constant 0 : index
    %98 = vector.load %arg11[%c0_36, %c0_37] : memref<1x1xf32, #tpu.memory_space<vmem>>, vector<1x1xf32>
    %99 = vector.broadcast %98 : vector<1x1xf32> to vector<1x2048xf32>
    %100 = arith.addf %97, %99 : vector<1x2048xf32>
    %101 = vector.extract_strided_slice %100 {offsets = [0, 0], sizes = [1, 128], strides = [1, 1]} : vector<1x2048xf32> to vector<1x128xf32>
    %102 = vector.extract_strided_slice %100 {offsets = [0, 128], sizes = [1, 128], strides = [1, 1]} : vector<1x2048xf32> to vector<1x128xf32>
    %103 = vector.extract_strided_slice %100 {offsets = [0, 256], sizes = [1, 128], strides = [1, 1]} : vector<1x2048xf32> to vector<1x128xf32>
    %104 = vector.extract_strided_slice %100 {offsets = [0, 384], sizes = [1, 128], strides = [1, 1]} : vector<1x2048xf32> to vector<1x128xf32>
    %105 = vector.extract_strided_slice %100 {offsets = [0, 512], sizes = [1, 128], strides = [1, 1]} : vector<1x2048xf32> to vector<1x128xf32>
    %106 = vector.extract_strided_slice %100 {offsets = [0, 640], sizes = [1, 128], strides = [1, 1]} : vector<1x2048xf32> to vector<1x128xf32>
    %107 = vector.extract_strided_slice %100 {offsets = [0, 768], sizes = [1, 128], strides = [1, 1]} : vector<1x2048xf32> to vector<1x128xf32>
    %108 = vector.extract_strided_slice %100 {offsets = [0, 896], sizes = [1, 128], strides = [1, 1]} : vector<1x2048xf32> to vector<1x128xf32>
    %109 = vector.extract_strided_slice %100 {offsets = [0, 1024], sizes = [1, 128], strides = [1, 1]} : vector<1x2048xf32> to vector<1x128xf32>
    %110 = vector.extract_strided_slice %100 {offsets = [0, 1152], sizes = [1, 128], strides = [1, 1]} : vector<1x2048xf32> to vector<1x128xf32>
    %111 = vector.extract_strided_slice %100 {offsets = [0, 1280], sizes = [1, 128], strides = [1, 1]} : vector<1x2048xf32> to vector<1x128xf32>
    %112 = vector.extract_strided_slice %100 {offsets = [0, 1408], sizes = [1, 128], strides = [1, 1]} : vector<1x2048xf32> to vector<1x128xf32>
    %113 = vector.extract_strided_slice %100 {offsets = [0, 1536], sizes = [1, 128], strides = [1, 1]} : vector<1x2048xf32> to vector<1x128xf32>
    %114 = vector.extract_strided_slice %100 {offsets = [0, 1664], sizes = [1, 128], strides = [1, 1]} : vector<1x2048xf32> to vector<1x128xf32>
    %115 = vector.extract_strided_slice %100 {offsets = [0, 1792], sizes = [1, 128], strides = [1, 1]} : vector<1x2048xf32> to vector<1x128xf32>
    %116 = vector.extract_strided_slice %100 {offsets = [0, 1920], sizes = [1, 128], strides = [1, 1]} : vector<1x2048xf32> to vector<1x128xf32>
    %117 = tpu.concatenate %101, %102, %103, %104, %105, %106, %107, %108, %109, %110, %111, %112, %113, %114, %115, %116 in 0 : vector<1x128xf32>, vector<1x128xf32>, vector<1x128xf32>, vector<1x128xf32>, vector<1x128xf32>, vector<1x128xf32>, vector<1x128xf32>, vector<1x128xf32>, vector<1x128xf32>, vector<1x128xf32>, vector<1x128xf32>, vector<1x128xf32>, vector<1x128xf32>, vector<1x128xf32>, vector<1x128xf32>, vector<1x128xf32> -> vector<16x128xf32>
    %cst_38 = arith.constant dense<0xFF800000> : vector<16xf32>
    %118 = vector.multi_reduction <maximumf>, %117, %cst_38 [1] : vector<16x128xf32> to vector<16xf32>
    %119 = vector.shape_cast %118 : vector<16xf32> to vector<16x1xf32>
    %120 = vector.broadcast %119 : vector<16x1xf32> to vector<16x128xf32>
    %121 = arith.subf %117, %120 : vector<16x128xf32>
    %122 = math.exp %121 : vector<16x128xf32>
    %cst_39 = arith.constant dense<0.000000e+00> : vector<16xf32>
    %123 = vector.multi_reduction <add>, %122, %cst_39 [1] : vector<16x128xf32> to vector<16xf32>
    %124 = vector.shape_cast %123 : vector<16xf32> to vector<16x1xf32>
    %125 = vector.broadcast %124 : vector<16x1xf32> to vector<16x128xf32>
    %126 = arith.divf %122, %125 : vector<16x128xf32>
    %c0_40 = arith.constant 0 : index
    %c0_41 = arith.constant 0 : index
    %127 = vector.load %arg12[%c0_40, %c0_41] : memref<16x128xf32, #tpu.memory_space<vmem>>, vector<16x128xf32>
    tpu.vector_store %arg12[%c0_40, %c0_41], %126 {strides = array<i32>} : memref<16x128xf32, #tpu.memory_space<vmem>>, vector<16x128xf32>,
    return
  }
  func.func @transform_0(%arg0: i32) -> (i32, i32) {
    %c0_i32 = arith.constant 0 : i32
    %c0_i32_0 = arith.constant 0 : i32
    return %c0_i32, %arg0 : i32, i32
  }
  func.func @transform_1(%arg0: i32) -> (i32, i32) {
    %c0_i32 = arith.constant 0 : i32
    %c0_i32_0 = arith.constant 0 : i32
    %c0_i32_1 = arith.constant 0 : i32
    return %c0_i32, %c0_i32_0 : i32, i32
  }
  func.func @transform_2(%arg0: i32) -> (i32, i32) {
    %c0_i32 = arith.constant 0 : i32
    %c0_i32_0 = arith.constant 0 : i32
    %c0_i32_1 = arith.constant 0 : i32
    return %c0_i32, %c0_i32_0 : i32, i32
  }
  func.func @transform_3(%arg0: i32) -> (i32, i32) {
    %c0_i32 = arith.constant 0 : i32
    %c0_i32_0 = arith.constant 0 : i32
    %c0_i32_1 = arith.constant 0 : i32
    return %c0_i32, %c0_i32_0 : i32, i32
  }
  func.func @transform_4(%arg0: i32) -> (i32, i32) {
    %c0_i32 = arith.constant 0 : i32
    %c0_i32_0 = arith.constant 0 : i32
    %c0_i32_1 = arith.constant 0 : i32
    return %c0_i32, %c0_i32_0 : i32, i32
  }
  func.func @transform_5(%arg0: i32) -> (i32, i32) {
    %c0_i32 = arith.constant 0 : i32
    %c0_i32_0 = arith.constant 0 : i32
    %c0_i32_1 = arith.constant 0 : i32
    return %c0_i32, %c0_i32_0 : i32, i32
  }
  func.func @transform_6(%arg0: i32) -> (i32, i32) {
    %c0_i32 = arith.constant 0 : i32
    %c0_i32_0 = arith.constant 0 : i32
    %c0_i32_1 = arith.constant 0 : i32
    return %c0_i32, %c0_i32_0 : i32, i32
  }
  func.func @transform_7(%arg0: i32) -> (i32, i32) {
    %c0_i32 = arith.constant 0 : i32
    %c0_i32_0 = arith.constant 0 : i32
    %c0_i32_1 = arith.constant 0 : i32
    return %c0_i32, %c0_i32_0 : i32, i32
  }
  func.func @transform_8(%arg0: i32) -> (i32, i32) {
    %c0_i32 = arith.constant 0 : i32
    %c0_i32_0 = arith.constant 0 : i32
    %c0_i32_1 = arith.constant 0 : i32
    return %c0_i32, %c0_i32_0 : i32, i32
  }
  func.func @transform_9(%arg0: i32) -> (i32, i32) {
    %c0_i32 = arith.constant 0 : i32
    %c0_i32_0 = arith.constant 0 : i32
    %c0_i32_1 = arith.constant 0 : i32
    return %c0_i32, %c0_i32_0 : i32, i32
  }
  func.func @transform_10(%arg0: i32) -> (i32, i32) {
    %c0_i32 = arith.constant 0 : i32
    %c0_i32_0 = arith.constant 0 : i32
    %c0_i32_1 = arith.constant 0 : i32
    return %c0_i32, %c0_i32_0 : i32, i32
  }
  func.func @transform_11(%arg0: i32) -> (i32, i32) {
    %c0_i32 = arith.constant 0 : i32
    %c0_i32_0 = arith.constant 0 : i32
    return %arg0, %c0_i32 : i32, i32
  }
}

</mosaic_0001>

<llo_original>
// kernel: tpu_custom_call.1
$region0: #{tpu_custom_call.1}
  #allocation0 [shape = 'u32[]', space=smem, size = 0x4, offset = 0x4, fixed_abs, tag = 'smem constant byte address 0x4 - core index']
  #allocation1 [shape = 'u32[144,128]{1,0:T(1,128)}', space=vmem, size = 0x12000, scoped, tag = 'internal scratch']
  #allocation2 [shape = 'f32[1,1]{1,0:T(1,128)S(1)}', space=vmem, size = 0x200, scoped, tag = 'scoped memory for tpu_custom_call.1']
  %s0 = inlined_call_operand.hbm [shape: f32[64,2048], index: 0, kind: input, shape index: {}]
  %s1 = inlined_call_operand.vmem [shape: f32[24,64], index: 1, kind: input, shape index: {}]
  %s2 = inlined_call_operand.vmem [shape: f32[8,1], index: 2, kind: input, shape index: {}]
  %s3 = inlined_call_operand.vmem [shape: f32[24,8], index: 3, kind: input, shape index: {}]
  %s4 = inlined_call_operand.vmem [shape: f32[8,1], index: 4, kind: input, shape index: {}]
  %s5 = inlined_call_operand.vmem [shape: f32[48,8], index: 5, kind: input, shape index: {}]
  %s6 = inlined_call_operand.vmem [shape: f32[16,1], index: 6, kind: input, shape index: {}]
  %s7 = inlined_call_operand.vmem [shape: f32[48,16], index: 7, kind: input, shape index: {}]
  %s8 = inlined_call_operand.vmem [shape: f32[16,1], index: 8, kind: input, shape index: {}]
  %s9 = inlined_call_operand.vmem [shape: f32[24,16], index: 9, kind: input, shape index: {}]
  %s10 = inlined_call_operand.<no memory space> [shape: f32[1,1], index: 10, kind: input, shape index: {}]
  %s11 = inlined_call_operand.hbm [shape: f32[16,128], index: 11, kind: output, shape index: {}]
  %s12 = sld [smem:[#allocation0]]
  $region58: #{tpu_custom_call.1} parent=0
    _
  %s14 = ssub.s32 1, %s12
  %s15 = scalar_select 0, %s14, %s12
  %v16 = vstv %s10
  %17 = vst [vmem:[#allocation2] sm:$0x1] %v16
  $region1: #{tpu_custom_call.1} parent=0
    #allocation3 [shape = 'u8[524288]{0}', space=vmem, size = 0x80000, scoped, tag = 'input window, operand 0, single buffered']
    #allocation4 [shape = 's32[1]{0}', space=sflag, size = 0x4, scoped, tag = 'scoped memory for tpu_custom_call.1']
    #allocation5 [shape = 's32[1]{0}', space=sflag, size = 0x4, scoped, tag = 'scoped memory for tpu_custom_call.1']
    #allocation6 [shape = 'u8[8192]{0}', space=vmem, size = 0x2000, scoped, tag = 'output window, operand 0, single buffered']
    %18 = vsyncpa [#allocation4], 0
    %19 = vsyncpa [#allocation5], 0
    // Predicated region
    $region2: #{tpu_custom_call.1} parent=1 // pred_check
      _
    $region3: #{tpu_custom_call.1} parent=1 // pred_check_branch
      %21 = sbr.rel (0) target = $region5
    $region4: #{tpu_custom_call.1} parent=1 // pred_region
      %s23 = ssub.s32 16384, 16384
      %24 = vsyncadd [#allocation4], %s23
      %s25 = sshll.u32 [#allocation3], 4
      %s26 = int_to_ptr.vmem [resolvable:$true] %s25
      %31 = dma.hbm_to_vmem [thread:$0]  %s0, 16384, %s26, [#allocation4], 2048, 2048, 128
    $region5: #{tpu_custom_call.1} parent=1 // pred_fallthru
      _
    // Predicated region
    $region6: #{tpu_custom_call.1} parent=1 // pred_check
      _
    $region7: #{tpu_custom_call.1} parent=1 // pred_check_branch
      %33 = sbr.rel (0) target = $region9
    $region8: #{tpu_custom_call.1} parent=1 // pred_region
      _
    $region9: #{tpu_custom_call.1} parent=1 // pred_fallthru
      _
    // Predicated region
    $region10: #{tpu_custom_call.1} parent=1 // pred_check
      _
    $region11: #{tpu_custom_call.1} parent=1 // pred_check_branch
      %35 = sbr.rel (0) target = $region13
    $region12: #{tpu_custom_call.1} parent=1 // pred_region
      _
    $region13: #{tpu_custom_call.1} parent=1 // pred_fallthru
      _
    // Predicated region
    $region14: #{tpu_custom_call.1} parent=1 // pred_check
      _
    $region15: #{tpu_custom_call.1} parent=1 // pred_check_branch
      %37 = sbr.rel (0) target = $region17
    $region16: #{tpu_custom_call.1} parent=1 // pred_region
      _
    $region17: #{tpu_custom_call.1} parent=1 // pred_fallthru
      _
    // Predicated region
    $region18: #{tpu_custom_call.1} parent=1 // pred_check
      _
    $region19: #{tpu_custom_call.1} parent=1 // pred_check_branch
      %39 = sbr.rel (0) target = $region21
    $region20: #{tpu_custom_call.1} parent=1 // pred_region
      _
    $region21: #{tpu_custom_call.1} parent=1 // pred_fallthru
      _
    // Predicated region
    $region22: #{tpu_custom_call.1} parent=1 // pred_check
      _
    $region23: #{tpu_custom_call.1} parent=1 // pred_check_branch
      %41 = sbr.rel (0) target = $region25
    $region24: #{tpu_custom_call.1} parent=1 // pred_region
      _
    $region25: #{tpu_custom_call.1} parent=1 // pred_fallthru
      _
    // Predicated region
    $region26: #{tpu_custom_call.1} parent=1 // pred_check
      _
    $region27: #{tpu_custom_call.1} parent=1 // pred_check_branch
      %43 = sbr.rel (0) target = $region29
    $region28: #{tpu_custom_call.1} parent=1 // pred_region
      _
    $region29: #{tpu_custom_call.1} parent=1 // pred_fallthru
      _
    // Predicated region
    $region30: #{tpu_custom_call.1} parent=1 // pred_check
      _
    $region31: #{tpu_custom_call.1} parent=1 // pred_check_branch
      %45 = sbr.rel (0) target = $region33
    $region32: #{tpu_custom_call.1} parent=1 // pred_region
      _
    $region33: #{tpu_custom_call.1} parent=1 // pred_fallthru
      _
    // Predicated region
    $region34: #{tpu_custom_call.1} parent=1 // pred_check
      _
    $region35: #{tpu_custom_call.1} parent=1 // pred_check_branch
      %47 = sbr.rel (0) target = $region37
    $region36: #{tpu_custom_call.1} parent=1 // pred_region
      _
    $region37: #{tpu_custom_call.1} parent=1 // pred_fallthru
      _
    // Predicated region
    $region38: #{tpu_custom_call.1} parent=1 // pred_check
      _
    $region39: #{tpu_custom_call.1} parent=1 // pred_check_branch
      %49 = sbr.rel (0) target = $region41
    $region40: #{tpu_custom_call.1} parent=1 // pred_region
      _
    $region41: #{tpu_custom_call.1} parent=1 // pred_fallthru
      _
    // Predicated region
    $region42: #{tpu_custom_call.1} parent=1 // pred_check
      _
    $region43: #{tpu_custom_call.1} parent=1 // pred_check_branch
      %51 = sbr.rel (0) target = $region45
    $region44: #{tpu_custom_call.1} parent=1 // pred_region
      _
    $region45: #{tpu_custom_call.1} parent=1 // pred_fallthru
      _
    // Predicated region
    $region46: #{tpu_custom_call.1} parent=1 // pred_check
      _
    $region47: #{tpu_custom_call.1} parent=1 // pred_check_branch
      %53 = sbr.rel (0) target = $region49
    $region48: #{tpu_custom_call.1} parent=1 // pred_region
      %54 = dma.done [#allocation4], 16384
    $region49: #{tpu_custom_call.1} parent=1 // pred_fallthru
      _
    %v55 = vlaneseq
    %v56 = vand.u32 %v55, 127
    %v57 = vadd.s32 %v56, 128
    %v58 = vadd.s32 %v56, 256
    %v59 = vadd.s32 %v56, 384
    %v60 = vadd.s32 %v56, 512
    %v61 = vadd.s32 %v56, 640
    %v62 = vadd.s32 %v56, 768
    %v63 = vadd.s32 %v56, 896
    %v64 = vadd.s32 %v56, 1024
    %v65 = vadd.s32 %v56, 1152
    %v66 = vadd.s32 %v56, 1280
    %v67 = vadd.s32 %v56, 1408
    %v68 = vadd.s32 %v56, 1536
    %v69 = vadd.s32 %v56, 1664
    %v70 = vadd.s32 %v56, 1792
    %v71 = vadd.s32 %v56, 1920
    %v72 = vand.u32 %v56, 127
    %v73 = vand.u32 %v57, 127
    %v74 = vand.u32 %v58, 127
    %v75 = vand.u32 %v59, 127
    %v76 = vand.u32 %v60, 127
    %v77 = vand.u32 %v61, 127
    %v78 = vand.u32 %v62, 127
    %v79 = vand.u32 %v63, 127
    %v80 = vand.u32 %v64, 127
    %v81 = vand.u32 %v65, 127
    %v82 = vand.u32 %v66, 127
    %v83 = vand.u32 %v67, 127
    %v84 = vand.u32 %v68, 127
    %v85 = vand.u32 %v69, 127
    %v86 = vand.u32 %v70, 127
    %v87 = vand.u32 %v71, 127
    %vm88 = vcmp.ne.s32.totalorder %v72, 0
    %vm89 = vcmp.ne.s32.totalorder %v73, 0
    %vm90 = vcmp.ne.s32.totalorder %v74, 0
    %vm91 = vcmp.ne.s32.totalorder %v75, 0
    %vm92 = vcmp.ne.s32.totalorder %v76, 0
    %vm93 = vcmp.ne.s32.totalorder %v77, 0
    %vm94 = vcmp.ne.s32.totalorder %v78, 0
    %vm95 = vcmp.ne.s32.totalorder %v79, 0
    %vm96 = vcmp.ne.s32.totalorder %v80, 0
    %vm97 = vcmp.ne.s32.totalorder %v81, 0
    %vm98 = vcmp.ne.s32.totalorder %v82, 0
    %vm99 = vcmp.ne.s32.totalorder %v83, 0
    %vm100 = vcmp.ne.s32.totalorder %v84, 0
    %vm101 = vcmp.ne.s32.totalorder %v85, 0
    %vm102 = vcmp.ne.s32.totalorder %v86, 0
    %vm103 = vcmp.ne.s32.totalorder %v87, 0
    %v104 = vsel %vm88, 1, 0
    %v105 = vsel %vm89, 1, 0
    %v106 = vsel %vm90, 1, 0
    %v107 = vsel %vm91, 1, 0
    %v108 = vsel %vm92, 1, 0
    %v109 = vsel %vm93, 1, 0
    %v110 = vsel %vm94, 1, 0
    %v111 = vsel %vm95, 1, 0
    %v112 = vsel %vm96, 1, 0
    %v113 = vsel %vm97, 1, 0
    %v114 = vsel %vm98, 1, 0
    %v115 = vsel %vm99, 1, 0
    %v116 = vsel %vm100, 1, 0
    %v117 = vsel %vm101, 1, 0
    %v118 = vsel %vm102, 1, 0
    %v119 = vsel %vm103, 1, 0
    %v120 = vcvt.s32.f32 %v104
    %v121 = vcvt.s32.f32 %v105
    %v122 = vcvt.s32.f32 %v106
    %v123 = vcvt.s32.f32 %v107
    %v124 = vcvt.s32.f32 %v108
    %v125 = vcvt.s32.f32 %v109
    %v126 = vcvt.s32.f32 %v110
    %v127 = vcvt.s32.f32 %v111
    %v128 = vcvt.s32.f32 %v112
    %v129 = vcvt.s32.f32 %v113
    %v130 = vcvt.s32.f32 %v114
    %v131 = vcvt.s32.f32 %v115
    %v132 = vcvt.s32.f32 %v116
    %v133 = vcvt.s32.f32 %v117
    %v134 = vcvt.s32.f32 %v118
    %v135 = vcvt.s32.f32 %v119
    %vm136 = vcmp.ne.s32.totalorder %v72, 127
    %vm137 = vcmp.ne.s32.totalorder %v73, 127
    %vm138 = vcmp.ne.s32.totalorder %v74, 127
    %vm139 = vcmp.ne.s32.totalorder %v75, 127
    %vm140 = vcmp.ne.s32.totalorder %v76, 127
    %vm141 = vcmp.ne.s32.totalorder %v77, 127
    %vm142 = vcmp.ne.s32.totalorder %v78, 127
    %vm143 = vcmp.ne.s32.totalorder %v79, 127
    %vm144 = vcmp.ne.s32.totalorder %v80, 127
    %vm145 = vcmp.ne.s32.totalorder %v81, 127
    %vm146 = vcmp.ne.s32.totalorder %v82, 127
    %vm147 = vcmp.ne.s32.totalorder %v83, 127
    %vm148 = vcmp.ne.s32.totalorder %v84, 127
    %vm149 = vcmp.ne.s32.totalorder %v85, 127
    %vm150 = vcmp.ne.s32.totalorder %v86, 127
    %vm151 = vcmp.ne.s32.totalorder %v87, 127
    %v152 = vsel %vm136, 1, 0
    %v153 = vsel %vm137, 1, 0
    %v154 = vsel %vm138, 1, 0
    %v155 = vsel %vm139, 1, 0
    %v156 = vsel %vm140, 1, 0
    %v157 = vsel %vm141, 1, 0
    %v158 = vsel %vm142, 1, 0
    %v159 = vsel %vm143, 1, 0
    %v160 = vsel %vm144, 1, 0
    %v161 = vsel %vm145, 1, 0
    %v162 = vsel %vm146, 1, 0
    %v163 = vsel %vm147, 1, 0
    %v164 = vsel %vm148, 1, 0
    %v165 = vsel %vm149, 1, 0
    %v166 = vsel %vm150, 1, 0
    %v167 = vsel %vm151, 1, 0
    %v168 = vcvt.s32.f32 %v152
    %v169 = vcvt.s32.f32 %v153
    %v170 = vcvt.s32.f32 %v154
    %v171 = vcvt.s32.f32 %v155
    %v172 = vcvt.s32.f32 %v156
    %v173 = vcvt.s32.f32 %v157
    %v174 = vcvt.s32.f32 %v158
    %v175 = vcvt.s32.f32 %v159
    %v176 = vcvt.s32.f32 %v160
    %v177 = vcvt.s32.f32 %v161
    %v178 = vcvt.s32.f32 %v162
    %v179 = vcvt.s32.f32 %v163
    %v180 = vcvt.s32.f32 %v164
    %v181 = vcvt.s32.f32 %v165
    %v182 = vcvt.s32.f32 %v166
    %v183 = vcvt.s32.f32 %v167
    %v184 = vld [vmem:[#allocation3] sm:$0xff]
    %v185 = vld [vmem:[#allocation3 + $0x8] sm:$0xff]
    %v186 = vld [vmem:[#allocation3 + $0x10] sm:$0xff]
    %v187 = vld [vmem:[#allocation3 + $0x18] sm:$0xff]
    %v188 = vld [vmem:[#allocation3 + $0x20] sm:$0xff]
    %v189 = vld [vmem:[#allocation3 + $0x28] sm:$0xff]
    %v190 = vld [vmem:[#allocation3 + $0x30] sm:$0xff]
    %v191 = vld [vmem:[#allocation3 + $0x38] sm:$0xff]
    %v192 = vld [vmem:[#allocation3 + $0x40] sm:$0xff]
    %v193 = vld [vmem:[#allocation3 + $0x48] sm:$0xff]
    %v194 = vld [vmem:[#allocation3 + $0x50] sm:$0xff]
    %v195 = vld [vmem:[#allocation3 + $0x58] sm:$0xff]
    %v196 = vld [vmem:[#allocation3 + $0x60] sm:$0xff]
    %v197 = vld [vmem:[#allocation3 + $0x68] sm:$0xff]
    %v198 = vld [vmem:[#allocation3 + $0x70] sm:$0xff]
    %v199 = vld [vmem:[#allocation3 + $0x78] sm:$0xff]
    %v200 = vld [vmem:[#allocation3 + $0x80] sm:$0xff]
    %v201 = vld [vmem:[#allocation3 + $0x88] sm:$0xff]
    %v202 = vld [vmem:[#allocation3 + $0x90] sm:$0xff]
    %v203 = vld [vmem:[#allocation3 + $0x98] sm:$0xff]
    %v204 = vld [vmem:[#allocation3 + $0xa0] sm:$0xff]
    %v205 = vld [vmem:[#allocation3 + $0xa8] sm:$0xff]
    %v206 = vld [vmem:[#allocation3 + $0xb0] sm:$0xff]
    %v207 = vld [vmem:[#allocation3 + $0xb8] sm:$0xff]
    %v208 = vld [vmem:[#allocation3 + $0xc0] sm:$0xff]
    %v209 = vld [vmem:[#allocation3 + $0xc8] sm:$0xff]
    %v210 = vld [vmem:[#allocation3 + $0xd0] sm:$0xff]
    %v211 = vld [vmem:[#allocation3 + $0xd8] sm:$0xff]
    %v212 = vld [vmem:[#allocation3 + $0xe0] sm:$0xff]
    %v213 = vld [vmem:[#allocation3 + $0xe8] sm:$0xff]
    %v214 = vld [vmem:[#allocation3 + $0xf0] sm:$0xff]
    %v215 = vld [vmem:[#allocation3 + $0xf8] sm:$0xff]
    %v216 = vld [vmem:[#allocation3 + $0x100] sm:$0xff]
    %v217 = vld [vmem:[#allocation3 + $0x108] sm:$0xff]
    %v218 = vld [vmem:[#allocation3 + $0x110] sm:$0xff]
    %v219 = vld [vmem:[#allocation3 + $0x118] sm:$0xff]
    %v220 = vld [vmem:[#allocation3 + $0x120] sm:$0xff]
    %v221 = vld [vmem:[#allocation3 + $0x128] sm:$0xff]
    %v222 = vld [vmem:[#allocation3 + $0x130] sm:$0xff]
    %v223 = vld [vmem:[#allocation3 + $0x138] sm:$0xff]
    %v224 = vld [vmem:[#allocation3 + $0x140] sm:$0xff]
    %v225 = vld [vmem:[#allocation3 + $0x148] sm:$0xff]
    %v226 = vld [vmem:[#allocation3 + $0x150] sm:$0xff]
    %v227 = vld [vmem:[#allocation3 + $0x158] sm:$0xff]
    %v228 = vld [vmem:[#allocation3 + $0x160] sm:$0xff]
    %v229 = vld [vmem:[#allocation3 + $0x168] sm:$0xff]
    %v230 = vld [vmem:[#allocation3 + $0x170] sm:$0xff]
    %v231 = vld [vmem:[#allocation3 + $0x178] sm:$0xff]
    %v232 = vld [vmem:[#allocation3 + $0x180] sm:$0xff]
    %v233 = vld [vmem:[#allocation3 + $0x188] sm:$0xff]
    %v234 = vld [vmem:[#allocation3 + $0x190] sm:$0xff]
    %v235 = vld [vmem:[#allocation3 + $0x198] sm:$0xff]
    %v236 = vld [vmem:[#allocation3 + $0x1a0] sm:$0xff]
    %v237 = vld [vmem:[#allocation3 + $0x1a8] sm:$0xff]
    %v238 = vld [vmem:[#allocation3 + $0x1b0] sm:$0xff]
    %v239 = vld [vmem:[#allocation3 + $0x1b8] sm:$0xff]
    %v240 = vld [vmem:[#allocation3 + $0x1c0] sm:$0xff]
    %v241 = vld [vmem:[#allocation3 + $0x1c8] sm:$0xff]
    %v242 = vld [vmem:[#allocation3 + $0x1d0] sm:$0xff]
    %v243 = vld [vmem:[#allocation3 + $0x1d8] sm:$0xff]
    %v244 = vld [vmem:[#allocation3 + $0x1e0] sm:$0xff]
    %v245 = vld [vmem:[#allocation3 + $0x1e8] sm:$0xff]
    %v246 = vld [vmem:[#allocation3 + $0x1f0] sm:$0xff]
    %v247 = vld [vmem:[#allocation3 + $0x1f8] sm:$0xff]
    %v248 = vld [vmem:[#allocation3 + $0x200] sm:$0xff]
    %v249 = vld [vmem:[#allocation3 + $0x208] sm:$0xff]
    %v250 = vld [vmem:[#allocation3 + $0x210] sm:$0xff]
    %v251 = vld [vmem:[#allocation3 + $0x218] sm:$0xff]
    %v252 = vld [vmem:[#allocation3 + $0x220] sm:$0xff]
    %v253 = vld [vmem:[#allocation3 + $0x228] sm:$0xff]
    %v254 = vld [vmem:[#allocation3 + $0x230] sm:$0xff]
    %v255 = vld [vmem:[#allocation3 + $0x238] sm:$0xff]
    %v256 = vld [vmem:[#allocation3 + $0x240] sm:$0xff]
    %v257 = vld [vmem:[#allocation3 + $0x248] sm:$0xff]
    %v258 = vld [vmem:[#allocation3 + $0x250] sm:$0xff]
    %v259 = vld [vmem:[#allocation3 + $0x258] sm:$0xff]
    %v260 = vld [vmem:[#allocation3 + $0x260] sm:$0xff]
    %v261 = vld [vmem:[#allocation3 + $0x268] sm:$0xff]
    %v262 = vld [vmem:[#allocation3 + $0x270] sm:$0xff]
    %v263 = vld [vmem:[#allocation3 + $0x278] sm:$0xff]
    %v264 = vld [vmem:[#allocation3 + $0x280] sm:$0xff]
    %v265 = vld [vmem:[#allocation3 + $0x288] sm:$0xff]
    %v266 = vld [vmem:[#allocation3 + $0x290] sm:$0xff]
    %v267 = vld [vmem:[#allocation3 + $0x298] sm:$0xff]
    %v268 = vld [vmem:[#allocation3 + $0x2a0] sm:$0xff]
    %v269 = vld [vmem:[#allocation3 + $0x2a8] sm:$0xff]
    %v270 = vld [vmem:[#allocation3 + $0x2b0] sm:$0xff]
    %v271 = vld [vmem:[#allocation3 + $0x2b8] sm:$0xff]
    %v272 = vld [vmem:[#allocation3 + $0x2c0] sm:$0xff]
    %v273 = vld [vmem:[#allocation3 + $0x2c8] sm:$0xff]
    %v274 = vld [vmem:[#allocation3 + $0x2d0] sm:$0xff]
    %v275 = vld [vmem:[#allocation3 + $0x2d8] sm:$0xff]
    %v276 = vld [vmem:[#allocation3 + $0x2e0] sm:$0xff]
    %v277 = vld [vmem:[#allocation3 + $0x2e8] sm:$0xff]
    %v278 = vld [vmem:[#allocation3 + $0x2f0] sm:$0xff]
    %v279 = vld [vmem:[#allocation3 + $0x2f8] sm:$0xff]
    %v280 = vld [vmem:[#allocation3 + $0x300] sm:$0xff]
    %v281 = vld [vmem:[#allocation3 + $0x308] sm:$0xff]
    %v282 = vld [vmem:[#allocation3 + $0x310] sm:$0xff]
    %v283 = vld [vmem:[#allocation3 + $0x318] sm:$0xff]
    %v284 = vld [vmem:[#allocation3 + $0x320] sm:$0xff]
    %v285 = vld [vmem:[#allocation3 + $0x328] sm:$0xff]
    %v286 = vld [vmem:[#allocation3 + $0x330] sm:$0xff]
    %v287 = vld [vmem:[#allocation3 + $0x338] sm:$0xff]
    %v288 = vld [vmem:[#allocation3 + $0x340] sm:$0xff]
    %v289 = vld [vmem:[#allocation3 + $0x348] sm:$0xff]
    %v290 = vld [vmem:[#allocation3 + $0x350] sm:$0xff]
    %v291 = vld [vmem:[#allocation3 + $0x358] sm:$0xff]
    %v292 = vld [vmem:[#allocation3 + $0x360] sm:$0xff]
    %v293 = vld [vmem:[#allocation3 + $0x368] sm:$0xff]
    %v294 = vld [vmem:[#allocation3 + $0x370] sm:$0xff]
    %v295 = vld [vmem:[#allocation3 + $0x378] sm:$0xff]
    %v296 = vld [vmem:[#allocation3 + $0x380] sm:$0xff]
    %v297 = vld [vmem:[#allocation3 + $0x388] sm:$0xff]
    %v298 = vld [vmem:[#allocation3 + $0x390] sm:$0xff]
    %v299 = vld [vmem:[#allocation3 + $0x398] sm:$0xff]
    %v300 = vld [vmem:[#allocation3 + $0x3a0] sm:$0xff]
    %v301 = vld [vmem:[#allocation3 + $0x3a8] sm:$0xff]
    %v302 = vld [vmem:[#allocation3 + $0x3b0] sm:$0xff]
    %v303 = vld [vmem:[#allocation3 + $0x3b8] sm:$0xff]
    %v304 = vld [vmem:[#allocation3 + $0x3c0] sm:$0xff]
    %v305 = vld [vmem:[#allocation3 + $0x3c8] sm:$0xff]
    %v306 = vld [vmem:[#allocation3 + $0x3d0] sm:$0xff]
    %v307 = vld [vmem:[#allocation3 + $0x3d8] sm:$0xff]
    %v308 = vld [vmem:[#allocation3 + $0x3e0] sm:$0xff]
    %v309 = vld [vmem:[#allocation3 + $0x3e8] sm:$0xff]
    %v310 = vld [vmem:[#allocation3 + $0x3f0] sm:$0xff]
    %v311 = vld [vmem:[#allocation3 + $0x3f8] sm:$0xff]
    %v312 = vld [vmem:[%s1] sm:$0xff]
    %v313 = vld [vmem:[%s1 + $0x8] sm:$0xff]
    %v314 = vld [vmem:[%s1 + $0x10] sm:$0xff]
    %vm315 = vcmask 523264
    %v317 = vsel %vm315, %v312, 0
    %v320 = vsel %vm315, %v313, 0
    %v323 = vsel %vm315, %v314, 0
    %325 = vmatprep.subr.mxu0 %v185
    %326 = vmatpush1.msra.mxu0 %v184
    %327 = vmatprep.subr.mxu0 %v201
    %328 = vmatpush1.msra.mxu0 %v200
    %329 = vmatprep.subr.mxu0 %v217
    %330 = vmatpush1.msra.mxu0 %v216
    %331 = vmatprep.subr.mxu0 %v233
    %332 = vmatpush1.msra.mxu0 %v232
    %333 = vmatprep.subr.mxu0 %v249
    %334 = vmatpush1.msra.mxu0 %v248
    %335 = vmatprep.subr.mxu0 %v265
    %336 = vmatpush1.msra.mxu0 %v264
    %337 = vmatprep.subr.mxu0 %v281
    %338 = vmatpush1.msra.mxu0 %v280
    %339 = vmatprep.subr.mxu0 %v297
    %340 = vmatpush1.msra.mxu0 %v296
    %341 = vmatprep.subr.mxu0 0.0
    %342 = vmatpush1.msra.mxu0 0.0
    %343 = vmatprep.subr.mxu0 0.0
    %344 = vmatpush1.msra.mxu0 0.0
    %345 = vmatprep.subr.mxu0 0.0
    %346 = vmatpush1.msra.mxu0 0.0
    %347 = vmatprep.subr.mxu0 0.0
    %348 = vmatpush1.msra.mxu0 0.0
    %349 = vmatprep.subr.mxu0 0.0
    %350 = vmatpush1.msra.mxu0 0.0
    %351 = vmatprep.subr.mxu0 0.0
    %352 = vmatpush1.msra.mxu0 0.0
    %353 = vmatprep.subr.mxu0 0.0
    %354 = vmatpush1.msra.mxu0 0.0
    %355 = vmatprep.subr.mxu0 0.0
    %356 = vmatpush1.msra.mxu0 0.0
    %357 = vmatprep.subr.mxu0 0.0
    %358 = vmatpush1.msra.mxu0 0.0
    %359 = vmatprep.subr.mxu0 0.0
    %360 = vmatpush1.msra.mxu0 0.0
    %361 = vmatprep.subr.mxu0 0.0
    %362 = vmatpush1.msra.mxu0 0.0
    %363 = vmatprep.subr.mxu0 0.0
    %364 = vmatpush1.msra.mxu0 0.0
    %365 = vmatprep.subr.mxu0 0.0
    %366 = vmatpush1.msra.mxu0 0.0
    %367 = vmatprep.subr.mxu0 0.0
    %368 = vmatpush1.msra.mxu0 0.0
    %369 = vmatprep.subr.mxu0 0.0
    %370 = vmatpush1.msra.mxu0 0.0
    %371 = vmatprep.subr.mxu0 0.0
    %372 = vmatpush1.msra.mxu0 0.0
    %373 = vmatprep.subr.mxu0 0.0
    %374 = vmatpush1.msra.mxu0 0.0
    %375 = vmatprep.subr.mxu0 0.0
    %376 = vmatpush1.msra.mxu0 0.0
    %377 = vmatprep.subr.mxu0 0.0
    %378 = vmatpush1.msra.mxu0 0.0
    %379 = vmatprep.subr.mxu0 0.0
    %380 = vmatpush1.msra.mxu0 0.0
    %381 = vmatprep.subr.mxu0 0.0
    %382 = vmatpush1.msra.mxu0 0.0
    %383 = vmatprep.subr.mxu0 0.0
    %384 = vmatpush1.msra.mxu0 0.0
    %385 = vmatprep.subr.mxu0 0.0
    %386 = vmatpush1.msra.mxu0 0.0
    %387 = vmatprep.subr.mxu0 0.0
    %388 = vmatpush1.msra.mxu0 0.0
    %389 = vmatprep.mubr.f32.mxu0 0.0
    %390 = vmatmul.mubr.f32.gmra.mrb[0].mxu0 %v317
    %v391 = vpop.f32.mrb[0].mxu0
    %v392 = vadd.f32 0.0, %v391
    %v393 = vpop.f32.mrb[0].mxu0
    %v394 = vadd.f32 0.0, %v393
    %395 = vmatprep.mubr.f32.mxu0 0.0
    %396 = vmatmul.mubr.f32.gmra.mrb[0].mxu0 %v320
    %v397 = vpop.f32.mrb[0].mxu0
    %v398 = vadd.f32 0.0, %v397
    %v399 = vpop.f32.mrb[0].mxu0
    %v400 = vadd.f32 0.0, %v399
    %401 = vmatprep.mubr.f32.mxu0 0.0
    %402 = vmatmul.mubr.f32.gmra.mrb[0].mxu0 %v323
    %v403 = vpop.f32.mrb[0].mxu0
    %v404 = vadd.f32 0.0, %v403
    %v405 = vpop.f32.mrb[0].mxu0
    %v406 = vadd.f32 0.0, %v405
    %407 = vdwg.mxu0
    %408 = vmatprep.subr.mxu0 %v187
    %409 = vmatpush1.msra.mxu0 %v186
    %410 = vmatprep.subr.mxu0 %v203
    %411 = vmatpush1.msra.mxu0 %v202
    %412 = vmatprep.subr.mxu0 %v219
    %413 = vmatpush1.msra.mxu0 %v218
    %414 = vmatprep.subr.mxu0 %v235
    %415 = vmatpush1.msra.mxu0 %v234
    %416 = vmatprep.subr.mxu0 %v251
    %417 = vmatpush1.msra.mxu0 %v250
    %418 = vmatprep.subr.mxu0 %v267
    %419 = vmatpush1.msra.mxu0 %v266
    %420 = vmatprep.subr.mxu0 %v283
    %421 = vmatpush1.msra.mxu0 %v282
    %422 = vmatprep.subr.mxu0 %v299
    %423 = vmatpush1.msra.mxu0 %v298
    %424 = vmatprep.subr.mxu0 0.0
    %425 = vmatpush1.msra.mxu0 0.0
    %426 = vmatprep.subr.mxu0 0.0
    %427 = vmatpush1.msra.mxu0 0.0
    %428 = vmatprep.subr.mxu0 0.0
    %429 = vmatpush1.msra.mxu0 0.0
    %430 = vmatprep.subr.mxu0 0.0
    %431 = vmatpush1.msra.mxu0 0.0
    %432 = vmatprep.subr.mxu0 0.0
    %433 = vmatpush1.msra.mxu0 0.0
    %434 = vmatprep.subr.mxu0 0.0
    %435 = vmatpush1.msra.mxu0 0.0
    %436 = vmatprep.subr.mxu0 0.0
    %437 = vmatpush1.msra.mxu0 0.0
    %438 = vmatprep.subr.mxu0 0.0
    %439 = vmatpush1.msra.mxu0 0.0
    %440 = vmatprep.subr.mxu0 0.0
    %441 = vmatpush1.msra.mxu0 0.0
    %442 = vmatprep.subr.mxu0 0.0
    %443 = vmatpush1.msra.mxu0 0.0
    %444 = vmatprep.subr.mxu0 0.0
    %445 = vmatpush1.msra.mxu0 0.0
    %446 = vmatprep.subr.mxu0 0.0
    %447 = vmatpush1.msra.mxu0 0.0
    %448 = vmatprep.subr.mxu0 0.0
    %449 = vmatpush1.msra.mxu0 0.0
    %450 = vmatprep.subr.mxu0 0.0
    %451 = vmatpush1.msra.mxu0 0.0
    %452 = vmatprep.subr.mxu0 0.0
    %453 = vmatpush1.msra.mxu0 0.0
    %454 = vmatprep.subr.mxu0 0.0
    %455 = vmatpush1.msra.mxu0 0.0
    %456 = vmatprep.subr.mxu0 0.0
    %457 = vmatpush1.msra.mxu0 0.0
    %458 = vmatprep.subr.mxu0 0.0
    %459 = vmatpush1.msra.mxu0 0.0
    %460 = vmatprep.subr.mxu0 0.0
    %461 = vmatpush1.msra.mxu0 0.0
    %462 = vmatprep.subr.mxu0 0.0
    %463 = vmatpush1.msra.mxu0 0.0
    %464 = vmatprep.subr.mxu0 0.0
    %465 = vmatpush1.msra.mxu0 0.0
    %466 = vmatprep.subr.mxu0 0.0
    %467 = vmatpush1.msra.mxu0 0.0
    %468 = vmatprep.subr.mxu0 0.0
    %469 = vmatpush1.msra.mxu0 0.0
    %470 = vmatprep.subr.mxu0 0.0
    %471 = vmatpush1.msra.mxu0 0.0
    %472 = vmatprep.mubr.f32.mxu0 0.0
    %473 = vmatmul.mubr.f32.gmra.mrb[0].mxu0 %v317
    %v474 = vpop.f32.mrb[0].mxu0
    %v475 = vadd.f32 0.0, %v474
    %v476 = vpop.f32.mrb[0].mxu0
    %v477 = vadd.f32 0.0, %v476
    %478 = vmatprep.mubr.f32.mxu0 0.0
    %479 = vmatmul.mubr.f32.gmra.mrb[0].mxu0 %v320
    %v480 = vpop.f32.mrb[0].mxu0
    %v481 = vadd.f32 0.0, %v480
    %v482 = vpop.f32.mrb[0].mxu0
    %v483 = vadd.f32 0.0, %v482
    %484 = vmatprep.mubr.f32.mxu0 0.0
    %485 = vmatmul.mubr.f32.gmra.mrb[0].mxu0 %v323
    %v486 = vpop.f32.mrb[0].mxu0
    %v487 = vadd.f32 0.0, %v486
    %v488 = vpop.f32.mrb[0].mxu0
    %v489 = vadd.f32 0.0, %v488
    %490 = vdwg.mxu0
    %491 = vmatprep.subr.mxu0 %v189
    %492 = vmatpush1.msra.mxu0 %v188
    %493 = vmatprep.subr.mxu0 %v205
    %494 = vmatpush1.msra.mxu0 %v204
    %495 = vmatprep.subr.mxu0 %v221
    %496 = vmatpush1.msra.mxu0 %v220
    %497 = vmatprep.subr.mxu0 %v237
    %498 = vmatpush1.msra.mxu0 %v236
    %499 = vmatprep.subr.mxu0 %v253
    %500 = vmatpush1.msra.mxu0 %v252
    %501 = vmatprep.subr.mxu0 %v269
    %502 = vmatpush1.msra.mxu0 %v268
    %503 = vmatprep.subr.mxu0 %v285
    %504 = vmatpush1.msra.mxu0 %v284
    %505 = vmatprep.subr.mxu0 %v301
    %506 = vmatpush1.msra.mxu0 %v300
    %507 = vmatprep.subr.mxu0 0.0
    %508 = vmatpush1.msra.mxu0 0.0
    %509 = vmatprep.subr.mxu0 0.0
    %510 = vmatpush1.msra.mxu0 0.0
    %511 = vmatprep.subr.mxu0 0.0
    %512 = vmatpush1.msra.mxu0 0.0
    %513 = vmatprep.subr.mxu0 0.0
    %514 = vmatpush1.msra.mxu0 0.0
    %515 = vmatprep.subr.mxu0 0.0
    %516 = vmatpush1.msra.mxu0 0.0
    %517 = vmatprep.subr.mxu0 0.0
    %518 = vmatpush1.msra.mxu0 0.0
    %519 = vmatprep.subr.mxu0 0.0
    %520 = vmatpush1.msra.mxu0 0.0
    %521 = vmatprep.subr.mxu0 0.0
    %522 = vmatpush1.msra.mxu0 0.0
    %523 = vmatprep.subr.mxu0 0.0
    %524 = vmatpush1.msra.mxu0 0.0
    %525 = vmatprep.subr.mxu0 0.0
    %526 = vmatpush1.msra.mxu0 0.0
    %527 = vmatprep.subr.mxu0 0.0
    %528 = vmatpush1.msra.mxu0 0.0
    %529 = vmatprep.subr.mxu0 0.0
    %530 = vmatpush1.msra.mxu0 0.0
    %531 = vmatprep.subr.mxu0 0.0
    %532 = vmatpush1.msra.mxu0 0.0
    %533 = vmatprep.subr.mxu0 0.0
    %534 = vmatpush1.msra.mxu0 0.0
    %535 = vmatprep.subr.mxu0 0.0
    %536 = vmatpush1.msra.mxu0 0.0
    %537 = vmatprep.subr.mxu0 0.0
    %538 = vmatpush1.msra.mxu0 0.0
    %539 = vmatprep.subr.mxu0 0.0
    %540 = vmatpush1.msra.mxu0 0.0
    %541 = vmatprep.subr.mxu0 0.0
    %542 = vmatpush1.msra.mxu0 0.0
    %543 = vmatprep.subr.mxu0 0.0
    %544 = vmatpush1.msra.mxu0 0.0
    %545 = vmatprep.subr.mxu0 0.0
    %546 = vmatpush1.msra.mxu0 0.0
    %547 = vmatprep.subr.mxu0 0.0
    %548 = vmatpush1.msra.mxu0 0.0
    %549 = vmatprep.subr.mxu0 0.0
    %550 = vmatpush1.msra.mxu0 0.0
    %551 = vmatprep.subr.mxu0 0.0
    %552 = vmatpush1.msra.mxu0 0.0
    %553 = vmatprep.subr.mxu0 0.0
    %554 = vmatpush1.msra.mxu0 0.0
    %555 = vmatprep.mubr.f32.mxu0 0.0
    %556 = vmatmul.mubr.f32.gmra.mrb[0].mxu0 %v317
    %v557 = vpop.f32.mrb[0].mxu0
    %v558 = vadd.f32 0.0, %v557
    %v559 = vpop.f32.mrb[0].mxu0
    %v560 = vadd.f32 0.0, %v559
    %561 = vmatprep.mubr.f32.mxu0 0.0
    %562 = vmatmul.mubr.f32.gmra.mrb[0].mxu0 %v320
    %v563 = vpop.f32.mrb[0].mxu0
    %v564 = vadd.f32 0.0, %v563
    %v565 = vpop.f32.mrb[0].mxu0
    %v566 = vadd.f32 0.0, %v565
    %567 = vmatprep.mubr.f32.mxu0 0.0
    %568 = vmatmul.mubr.f32.gmra.mrb[0].mxu0 %v323
    %v569 = vpop.f32.mrb[0].mxu0
    %v570 = vadd.f32 0.0, %v569
    %v571 = vpop.f32.mrb[0].mxu0
    %v572 = vadd.f32 0.0, %v571
    %573 = vdwg.mxu0
    %574 = vmatprep.subr.mxu0 %v191
    %575 = vmatpush1.msra.mxu0 %v190
    %576 = vmatprep.subr.mxu0 %v207
    %577 = vmatpush1.msra.mxu0 %v206
    %578 = vmatprep.subr.mxu0 %v223
    %579 = vmatpush1.msra.mxu0 %v222
    %580 = vmatprep.subr.mxu0 %v239
    %581 = vmatpush1.msra.mxu0 %v238
    %582 = vmatprep.subr.mxu0 %v255
    %583 = vmatpush1.msra.mxu0 %v254
    %584 = vmatprep.subr.mxu0 %v271
    %585 = vmatpush1.msra.mxu0 %v270
    %586 = vmatprep.subr.mxu0 %v287
    %587 = vmatpush1.msra.mxu0 %v286
    %588 = vmatprep.subr.mxu0 %v303
    %589 = vmatpush1.msra.mxu0 %v302
    %590 = vmatprep.subr.mxu0 0.0
    %591 = vmatpush1.msra.mxu0 0.0
    %592 = vmatprep.subr.mxu0 0.0
    %593 = vmatpush1.msra.mxu0 0.0
    %594 = vmatprep.subr.mxu0 0.0
    %595 = vmatpush1.msra.mxu0 0.0
    %596 = vmatprep.subr.mxu0 0.0
    %597 = vmatpush1.msra.mxu0 0.0
    %598 = vmatprep.subr.mxu0 0.0
    %599 = vmatpush1.msra.mxu0 0.0
    %600 = vmatprep.subr.mxu0 0.0
    %601 = vmatpush1.msra.mxu0 0.0
    %602 = vmatprep.subr.mxu0 0.0
    %603 = vmatpush1.msra.mxu0 0.0
    %604 = vmatprep.subr.mxu0 0.0
    %605 = vmatpush1.msra.mxu0 0.0
    %606 = vmatprep.subr.mxu0 0.0
    %607 = vmatpush1.msra.mxu0 0.0
    %608 = vmatprep.subr.mxu0 0.0
    %609 = vmatpush1.msra.mxu0 0.0
    %610 = vmatprep.subr.mxu0 0.0
    %611 = vmatpush1.msra.mxu0 0.0
    %612 = vmatprep.subr.mxu0 0.0
    %613 = vmatpush1.msra.mxu0 0.0
    %614 = vmatprep.subr.mxu0 0.0
    %615 = vmatpush1.msra.mxu0 0.0
    %616 = vmatprep.subr.mxu0 0.0
    %617 = vmatpush1.msra.mxu0 0.0
    %618 = vmatprep.subr.mxu0 0.0
    %619 = vmatpush1.msra.mxu0 0.0
    %620 = vmatprep.subr.mxu0 0.0
    %621 = vmatpush1.msra.mxu0 0.0
    %622 = vmatprep.subr.mxu0 0.0
    %623 = vmatpush1.msra.mxu0 0.0
    %624 = vmatprep.subr.mxu0 0.0
    %625 = vmatpush1.msra.mxu0 0.0
    %626 = vmatprep.subr.mxu0 0.0
    %627 = vmatpush1.msra.mxu0 0.0
    %628 = vmatprep.subr.mxu0 0.0
    %629 = vmatpush1.msra.mxu0 0.0
    %630 = vmatprep.subr.mxu0 0.0
    %631 = vmatpush1.msra.mxu0 0.0
    %632 = vmatprep.subr.mxu0 0.0
    %633 = vmatpush1.msra.mxu0 0.0
    %634 = vmatprep.subr.mxu0 0.0
    %635 = vmatpush1.msra.mxu0 0.0
    %636 = vmatprep.subr.mxu0 0.0
    %637 = vmatpush1.msra.mxu0 0.0
    %638 = vmatprep.mubr.f32.mxu0 0.0
    %639 = vmatmul.mubr.f32.gmra.mrb[0].mxu0 %v317
    %v640 = vpop.f32.mrb[0].mxu0
    %v641 = vadd.f32 0.0, %v640
    %v642 = vpop.f32.mrb[0].mxu0
    %v643 = vadd.f32 0.0, %v642
    %644 = vmatprep.mubr.f32.mxu0 0.0
    %645 = vmatmul.mubr.f32.gmra.mrb[0].mxu0 %v320
    %v646 = vpop.f32.mrb[0].mxu0
    %v647 = vadd.f32 0.0, %v646
    %v648 = vpop.f32.mrb[0].mxu0
    %v649 = vadd.f32 0.0, %v648
    %650 = vmatprep.mubr.f32.mxu0 0.0
    %651 = vmatmul.mubr.f32.gmra.mrb[0].mxu0 %v323
    %v652 = vpop.f32.mrb[0].mxu0
    %v653 = vadd.f32 0.0, %v652
    %v654 = vpop.f32.mrb[0].mxu0
    %v655 = vadd.f32 0.0, %v654
    %656 = vdwg.mxu0
    %657 = vmatprep.subr.mxu0 %v193
    %658 = vmatpush1.msra.mxu0 %v192
    %659 = vmatprep.subr.mxu0 %v209
    %660 = vmatpush1.msra.mxu0 %v208
    %661 = vmatprep.subr.mxu0 %v225
    %662 = vmatpush1.msra.mxu0 %v224
    %663 = vmatprep.subr.mxu0 %v241
    %664 = vmatpush1.msra.mxu0 %v240
    %665 = vmatprep.subr.mxu0 %v257
    %666 = vmatpush1.msra.mxu0 %v256
    %667 = vmatprep.subr.mxu0 %v273
    %668 = vmatpush1.msra.mxu0 %v272
    %669 = vmatprep.subr.mxu0 %v289
    %670 = vmatpush1.msra.mxu0 %v288
    %671 = vmatprep.subr.mxu0 %v305
    %672 = vmatpush1.msra.mxu0 %v304
    %673 = vmatprep.subr.mxu0 0.0
    %674 = vmatpush1.msra.mxu0 0.0
    %675 = vmatprep.subr.mxu0 0.0
    %676 = vmatpush1.msra.mxu0 0.0
    %677 = vmatprep.subr.mxu0 0.0
    %678 = vmatpush1.msra.mxu0 0.0
    %679 = vmatprep.subr.mxu0 0.0
    %680 = vmatpush1.msra.mxu0 0.0
    %681 = vmatprep.subr.mxu0 0.0
    %682 = vmatpush1.msra.mxu0 0.0
    %683 = vmatprep.subr.mxu0 0.0
    %684 = vmatpush1.msra.mxu0 0.0
    %685 = vmatprep.subr.mxu0 0.0
    %686 = vmatpush1.msra.mxu0 0.0
    %687 = vmatprep.subr.mxu0 0.0
    %688 = vmatpush1.msra.mxu0 0.0
    %689 = vmatprep.subr.mxu0 0.0
    %690 = vmatpush1.msra.mxu0 0.0
    %691 = vmatprep.subr.mxu0 0.0
    %692 = vmatpush1.msra.mxu0 0.0
    %693 = vmatprep.subr.mxu0 0.0
    %694 = vmatpush1.msra.mxu0 0.0
    %695 = vmatprep.subr.mxu0 0.0
    %696 = vmatpush1.msra.mxu0 0.0
    %697 = vmatprep.subr.mxu0 0.0
    %698 = vmatpush1.msra.mxu0 0.0
    %699 = vmatprep.subr.mxu0 0.0
    %700 = vmatpush1.msra.mxu0 0.0
    %701 = vmatprep.subr.mxu0 0.0
    %702 = vmatpush1.msra.mxu0 0.0
    %703 = vmatprep.subr.mxu0 0.0
    %704 = vmatpush1.msra.mxu0 0.0
    %705 = vmatprep.subr.mxu0 0.0
    %706 = vmatpush1.msra.mxu0 0.0
    %707 = vmatprep.subr.mxu0 0.0
    %708 = vmatpush1.msra.mxu0 0.0
    %709 = vmatprep.subr.mxu0 0.0
    %710 = vmatpush1.msra.mxu0 0.0
    %711 = vmatprep.subr.mxu0 0.0
    %712 = vmatpush1.msra.mxu0 0.0
    %713 = vmatprep.subr.mxu0 0.0
    %714 = vmatpush1.msra.mxu0 0.0
    %715 = vmatprep.subr.mxu0 0.0
    %716 = vmatpush1.msra.mxu0 0.0
    %717 = vmatprep.subr.mxu0 0.0
    %718 = vmatpush1.msra.mxu0 0.0
    %719 = vmatprep.subr.mxu0 0.0
    %720 = vmatpush1.msra.mxu0 0.0
    %721 = vmatprep.mubr.f32.mxu0 0.0
    %722 = vmatmul.mubr.f32.gmra.mrb[0].mxu0 %v317
    %v723 = vpop.f32.mrb[0].mxu0
    %v724 = vadd.f32 0.0, %v723
    %v725 = vpop.f32.mrb[0].mxu0
    %v726 = vadd.f32 0.0, %v725
    %727 = vmatprep.mubr.f32.mxu0 0.0
    %728 = vmatmul.mubr.f32.gmra.mrb[0].mxu0 %v320
    %v729 = vpop.f32.mrb[0].mxu0
    %v730 = vadd.f32 0.0, %v729
    %v731 = vpop.f32.mrb[0].mxu0
    %v732 = vadd.f32 0.0, %v731
    %733 = vmatprep.mubr.f32.mxu0 0.0
    %734 = vmatmul.mubr.f32.gmra.mrb[0].mxu0 %v323
    %v735 = vpop.f32.mrb[0].mxu0
    %v736 = vadd.f32 0.0, %v735
    %v737 = vpop.f32.mrb[0].mxu0
    %v738 = vadd.f32 0.0, %v737
    %739 = vdwg.mxu0
    %740 = vmatprep.subr.mxu0 %v195
    %741 = vmatpush1.msra.mxu0 %v194
    %742 = vmatprep.subr.mxu0 %v211
    %743 = vmatpush1.msra.mxu0 %v210
    %744 = vmatprep.subr.mxu0 %v227
    %745 = vmatpush1.msra.mxu0 %v226
    %746 = vmatprep.subr.mxu0 %v243
    %747 = vmatpush1.msra.mxu0 %v242
    %748 = vmatprep.subr.mxu0 %v259
    %749 = vmatpush1.msra.mxu0 %v258
    %750 = vmatprep.subr.mxu0 %v275
    %751 = vmatpush1.msra.mxu0 %v274
    %752 = vmatprep.subr.mxu0 %v291
    %753 = vmatpush1.msra.mxu0 %v290
    %754 = vmatprep.subr.mxu0 %v307
    %755 = vmatpush1.msra.mxu0 %v306
    %756 = vmatprep.subr.mxu0 0.0
    %757 = vmatpush1.msra.mxu0 0.0
    %758 = vmatprep.subr.mxu0 0.0
    %759 = vmatpush1.msra.mxu0 0.0
    %760 = vmatprep.subr.mxu0 0.0
    %761 = vmatpush1.msra.mxu0 0.0
    %762 = vmatprep.subr.mxu0 0.0
    %763 = vmatpush1.msra.mxu0 0.0
    %764 = vmatprep.subr.mxu0 0.0
    %765 = vmatpush1.msra.mxu0 0.0
    %766 = vmatprep.subr.mxu0 0.0
    %767 = vmatpush1.msra.mxu0 0.0
    %768 = vmatprep.subr.mxu0 0.0
    %769 = vmatpush1.msra.mxu0 0.0
    %770 = vmatprep.subr.mxu0 0.0
    %771 = vmatpush1.msra.mxu0 0.0
    %772 = vmatprep.subr.mxu0 0.0
    %773 = vmatpush1.msra.mxu0 0.0
    %774 = vmatprep.subr.mxu0 0.0
    %775 = vmatpush1.msra.mxu0 0.0
    %776 = vmatprep.subr.mxu0 0.0
    %777 = vmatpush1.msra.mxu0 0.0
    %778 = vmatprep.subr.mxu0 0.0
    %779 = vmatpush1.msra.mxu0 0.0
    %780 = vmatprep.subr.mxu0 0.0
    %781 = vmatpush1.msra.mxu0 0.0
    %782 = vmatprep.subr.mxu0 0.0
    %783 = vmatpush1.msra.mxu0 0.0
    %784 = vmatprep.subr.mxu0 0.0
    %785 = vmatpush1.msra.mxu0 0.0
    %786 = vmatprep.subr.mxu0 0.0
    %787 = vmatpush1.msra.mxu0 0.0
    %788 = vmatprep.subr.mxu0 0.0
    %789 = vmatpush1.msra.mxu0 0.0
    %790 = vmatprep.subr.mxu0 0.0
    %791 = vmatpush1.msra.mxu0 0.0
    %792 = vmatprep.subr.mxu0 0.0
    %793 = vmatpush1.msra.mxu0 0.0
    %794 = vmatprep.subr.mxu0 0.0
    %795 = vmatpush1.msra.mxu0 0.0
    %796 = vmatprep.subr.mxu0 0.0
    %797 = vmatpush1.msra.mxu0 0.0
    %798 = vmatprep.subr.mxu0 0.0
    %799 = vmatpush1.msra.mxu0 0.0
    %800 = vmatprep.subr.mxu0 0.0
    %801 = vmatpush1.msra.mxu0 0.0
    %802 = vmatprep.subr.mxu0 0.0
    %803 = vmatpush1.msra.mxu0 0.0
    %804 = vmatprep.mubr.f32.mxu0 0.0
    %805 = vmatmul.mubr.f32.gmra.mrb[0].mxu0 %v317
    %v806 = vpop.f32.mrb[0].mxu0
    %v807 = vadd.f32 0.0, %v806
    %v808 = vpop.f32.mrb[0].mxu0
    %v809 = vadd.f32 0.0, %v808
    %810 = vmatprep.mubr.f32.mxu0 0.0
    %811 = vmatmul.mubr.f32.gmra.mrb[0].mxu0 %v320
    %v812 = vpop.f32.mrb[0].mxu0
    %v813 = vadd.f32 0.0, %v812
    %v814 = vpop.f32.mrb[0].mxu0
    %v815 = vadd.f32 0.0, %v814
    %816 = vmatprep.mubr.f32.mxu0 0.0
    %817 = vmatmul.mubr.f32.gmra.mrb[0].mxu0 %v323
    %v818 = vpop.f32.mrb[0].mxu0
    %v819 = vadd.f32 0.0, %v818
    %v820 = vpop.f32.mrb[0].mxu0
    %v821 = vadd.f32 0.0, %v820
    %822 = vdwg.mxu0
    %823 = vmatprep.subr.mxu0 %v197
    %824 = vmatpush1.msra.mxu0 %v196
    %825 = vmatprep.subr.mxu0 %v213
    %826 = vmatpush1.msra.mxu0 %v212
    %827 = vmatprep.subr.mxu0 %v229
    %828 = vmatpush1.msra.mxu0 %v228
    %829 = vmatprep.subr.mxu0 %v245
    %830 = vmatpush1.msra.mxu0 %v244
    %831 = vmatprep.subr.mxu0 %v261
    %832 = vmatpush1.msra.mxu0 %v260
    %833 = vmatprep.subr.mxu0 %v277
    %834 = vmatpush1.msra.mxu0 %v276
    %835 = vmatprep.subr.mxu0 %v293
    %836 = vmatpush1.msra.mxu0 %v292
    %837 = vmatprep.subr.mxu0 %v309
    %838 = vmatpush1.msra.mxu0 %v308
    %839 = vmatprep.subr.mxu0 0.0
    %840 = vmatpush1.msra.mxu0 0.0
    %841 = vmatprep.subr.mxu0 0.0
    %842 = vmatpush1.msra.mxu0 0.0
    %843 = vmatprep.subr.mxu0 0.0
    %844 = vmatpush1.msra.mxu0 0.0
    %845 = vmatprep.subr.mxu0 0.0
    %846 = vmatpush1.msra.mxu0 0.0
    %847 = vmatprep.subr.mxu0 0.0
    %848 = vmatpush1.msra.mxu0 0.0
    %849 = vmatprep.subr.mxu0 0.0
    %850 = vmatpush1.msra.mxu0 0.0
    %851 = vmatprep.subr.mxu0 0.0
    %852 = vmatpush1.msra.mxu0 0.0
    %853 = vmatprep.subr.mxu0 0.0
    %854 = vmatpush1.msra.mxu0 0.0
    %855 = vmatprep.subr.mxu0 0.0
    %856 = vmatpush1.msra.mxu0 0.0
    %857 = vmatprep.subr.mxu0 0.0
    %858 = vmatpush1.msra.mxu0 0.0
    %859 = vmatprep.subr.mxu0 0.0
    %860 = vmatpush1.msra.mxu0 0.0
    %861 = vmatprep.subr.mxu0 0.0
    %862 = vmatpush1.msra.mxu0 0.0
    %863 = vmatprep.subr.mxu0 0.0
    %864 = vmatpush1.msra.mxu0 0.0
    %865 = vmatprep.subr.mxu0 0.0
    %866 = vmatpush1.msra.mxu0 0.0
    %867 = vmatprep.subr.mxu0 0.0
    %868 = vmatpush1.msra.mxu0 0.0
    %869 = vmatprep.subr.mxu0 0.0
    %870 = vmatpush1.msra.mxu0 0.0
    %871 = vmatprep.subr.mxu0 0.0
    %872 = vmatpush1.msra.mxu0 0.0
    %873 = vmatprep.subr.mxu0 0.0
    %874 = vmatpush1.msra.mxu0 0.0
    %875 = vmatprep.subr.mxu0 0.0
    %876 = vmatpush1.msra.mxu0 0.0
    %877 = vmatprep.subr.mxu0 0.0
    %878 = vmatpush1.msra.mxu0 0.0
    %879 = vmatprep.subr.mxu0 0.0
    %880 = vmatpush1.msra.mxu0 0.0
    %881 = vmatprep.subr.mxu0 0.0
    %882 = vmatpush1.msra.mxu0 0.0
    %883 = vmatprep.subr.mxu0 0.0
    %884 = vmatpush1.msra.mxu0 0.0
    %885 = vmatprep.subr.mxu0 0.0
    %886 = vmatpush1.msra.mxu0 0.0
    %887 = vmatprep.mubr.f32.mxu0 0.0
    %888 = vmatmul.mubr.f32.gmra.mrb[0].mxu0 %v317
    %v889 = vpop.f32.mrb[0].mxu0
    %v890 = vadd.f32 0.0, %v889
    %v891 = vpop.f32.mrb[0].mxu0
    %v892 = vadd.f32 0.0, %v891
    %893 = vmatprep.mubr.f32.mxu0 0.0
    %894 = vmatmul.mubr.f32.gmra.mrb[0].mxu0 %v320
    %v895 = vpop.f32.mrb[0].mxu0
    %v896 = vadd.f32 0.0, %v895
    %v897 = vpop.f32.mrb[0].mxu0
    %v898 = vadd.f32 0.0, %v897
    %899 = vmatprep.mubr.f32.mxu0 0.0
    %900 = vmatmul.mubr.f32.gmra.mrb[0].mxu0 %v323
    %v901 = vpop.f32.mrb[0].mxu0
    %v902 = vadd.f32 0.0, %v901
    %v903 = vpop.f32.mrb[0].mxu0
    %v904 = vadd.f32 0.0, %v903
    %905 = vdwg.mxu0
    %906 = vmatprep.subr.mxu0 %v199
    %907 = vmatpush1.msra.mxu0 %v198
    %908 = vmatprep.subr.mxu0 %v215
    %909 = vmatpush1.msra.mxu0 %v214
    %910 = vmatprep.subr.mxu0 %v231
    %911 = vmatpush1.msra.mxu0 %v230
    %912 = vmatprep.subr.mxu0 %v247
    %913 = vmatpush1.msra.mxu0 %v246
    %914 = vmatprep.subr.mxu0 %v263
    %915 = vmatpush1.msra.mxu0 %v262
    %916 = vmatprep.subr.mxu0 %v279
    %917 = vmatpush1.msra.mxu0 %v278
    %918 = vmatprep.subr.mxu0 %v295
    %919 = vmatpush1.msra.mxu0 %v294
    %920 = vmatprep.subr.mxu0 %v311
    %921 = vmatpush1.msra.mxu0 %v310
    %922 = vmatprep.subr.mxu0 0.0
    %923 = vmatpush1.msra.mxu0 0.0
    %924 = vmatprep.subr.mxu0 0.0
    %925 = vmatpush1.msra.mxu0 0.0
    %926 = vmatprep.subr.mxu0 0.0
    %927 = vmatpush1.msra.mxu0 0.0
    %928 = vmatprep.subr.mxu0 0.0
    %929 = vmatpush1.msra.mxu0 0.0
    %930 = vmatprep.subr.mxu0 0.0
    %931 = vmatpush1.msra.mxu0 0.0
    %932 = vmatprep.subr.mxu0 0.0
    %933 = vmatpush1.msra.mxu0 0.0
    %934 = vmatprep.subr.mxu0 0.0
    %935 = vmatpush1.msra.mxu0 0.0
    %936 = vmatprep.subr.mxu0 0.0
    %937 = vmatpush1.msra.mxu0 0.0
    %938 = vmatprep.subr.mxu0 0.0
    %939 = vmatpush1.msra.mxu0 0.0
    %940 = vmatprep.subr.mxu0 0.0
    %941 = vmatpush1.msra.mxu0 0.0
    %942 = vmatprep.subr.mxu0 0.0
    %943 = vmatpush1.msra.mxu0 0.0
    %944 = vmatprep.subr.mxu0 0.0
    %945 = vmatpush1.msra.mxu0 0.0
    %946 = vmatprep.subr.mxu0 0.0
    %947 = vmatpush1.msra.mxu0 0.0
    %948 = vmatprep.subr.mxu0 0.0
    %949 = vmatpush1.msra.mxu0 0.0
    %950 = vmatprep.subr.mxu0 0.0
    %951 = vmatpush1.msra.mxu0 0.0
    %952 = vmatprep.subr.mxu0 0.0
    %953 = vmatpush1.msra.mxu0 0.0
    %954 = vmatprep.subr.mxu0 0.0
    %955 = vmatpush1.msra.mxu0 0.0
    %956 = vmatprep.subr.mxu0 0.0
    %957 = vmatpush1.msra.mxu0 0.0
    %958 = vmatprep.subr.mxu0 0.0
    %959 = vmatpush1.msra.mxu0 0.0
    %960 = vmatprep.subr.mxu0 0.0
    %961 = vmatpush1.msra.mxu0 0.0
    %962 = vmatprep.subr.mxu0 0.0
    %963 = vmatpush1.msra.mxu0 0.0
    %964 = vmatprep.subr.mxu0 0.0
    %965 = vmatpush1.msra.mxu0 0.0
    %966 = vmatprep.subr.mxu0 0.0
    %967 = vmatpush1.msra.mxu0 0.0
    %968 = vmatprep.subr.mxu0 0.0
    %969 = vmatpush1.msra.mxu0 0.0
    %970 = vmatprep.mubr.f32.mxu0 0.0
    %971 = vmatmul.mubr.f32.gmra.mrb[0].mxu0 %v317
    %v972 = vpop.f32.mrb[0].mxu0
    %v973 = vadd.f32 0.0, %v972
    %v974 = vpop.f32.mrb[0].mxu0
    %v975 = vadd.f32 0.0, %v974
    %976 = vmatprep.mubr.f32.mxu0 0.0
    %977 = vmatmul.mubr.f32.gmra.mrb[0].mxu0 %v320
    %v978 = vpop.f32.mrb[0].mxu0
    %v979 = vadd.f32 0.0, %v978
    %v980 = vpop.f32.mrb[0].mxu0
    %v981 = vadd.f32 0.0, %v980
    %982 = vmatprep.mubr.f32.mxu0 0.0
    %983 = vmatmul.mubr.f32.gmra.mrb[0].mxu0 %v323
    %v984 = vpop.f32.mrb[0].mxu0
    %v985 = vadd.f32 0.0, %v984
    %v986 = vpop.f32.mrb[0].mxu0
    %v987 = vadd.f32 0.0, %v986
    %988 = vdwg.mxu0
    %989 = vrot.lane.b32.xlu0 %v392, 1
    %v990 = vpop.permute.xlu0 %989
    %991 = vrot.lane.b32.xlu0 %v394, 1
    %v992 = vpop.permute.xlu0 %991
    %993 = vrot.lane.b32.xlu0 %v475, 1
    %v994 = vpop.permute.xlu0 %993
    %995 = vrot.lane.b32.xlu0 %v477, 1
    %v996 = vpop.permute.xlu0 %995
    %997 = vrot.lane.b32.xlu0 %v558, 1
    %v998 = vpop.permute.xlu0 %997
    %999 = vrot.lane.b32.xlu0 %v560, 1
    %v1000 = vpop.permute.xlu0 %999
    %1001 = vrot.lane.b32.xlu0 %v641, 1
    %v1002 = vpop.permute.xlu0 %1001
    %1003 = vrot.lane.b32.xlu0 %v643, 1
    %v1004 = vpop.permute.xlu0 %1003
    %1005 = vrot.lane.b32.xlu0 %v724, 1
    %v1006 = vpop.permute.xlu0 %1005
    %1007 = vrot.lane.b32.xlu0 %v726, 1
    %v1008 = vpop.permute.xlu0 %1007
    %1009 = vrot.lane.b32.xlu0 %v807, 1
    %v1010 = vpop.permute.xlu0 %1009
    %1011 = vrot.lane.b32.xlu0 %v809, 1
    %v1012 = vpop.permute.xlu0 %1011
    %1013 = vrot.lane.b32.xlu0 %v890, 1
    %v1014 = vpop.permute.xlu0 %1013
    %1015 = vrot.lane.b32.xlu0 %v892, 1
    %v1016 = vpop.permute.xlu0 %1015
    %1017 = vrot.lane.b32.xlu0 %v973, 1
    %v1018 = vpop.permute.xlu0 %1017
    %1019 = vrot.lane.b32.xlu0 %v975, 1
    %v1020 = vpop.permute.xlu0 %1019
    %vm1021 = vcmp.lt.s32.totalorder %v56, 1
    %v1022 = vsel %vm1021, %v1018, %v1020
    %v1023 = vsel %vm1021, %v1016, %v1018
    %v1024 = vsel %vm1021, %v1014, %v1016
    %v1025 = vsel %vm1021, %v1012, %v1014
    %v1026 = vsel %vm1021, %v1010, %v1012
    %v1027 = vsel %vm1021, %v1008, %v1010
    %v1028 = vsel %vm1021, %v1006, %v1008
    %v1029 = vsel %vm1021, %v1004, %v1006
    %v1030 = vsel %vm1021, %v1002, %v1004
    %v1031 = vsel %vm1021, %v1000, %v1002
    %v1032 = vsel %vm1021, %v998, %v1000
    %v1033 = vsel %vm1021, %v996, %v998
    %v1034 = vsel %vm1021, %v994, %v996
    %v1035 = vsel %vm1021, %v992, %v994
    %v1036 = vsel %vm1021, %v990, %v992
    %v1037 = vsel %vm1021, %v1020, %v990
    %v1038 = vmul.f32 %v1037, %v120
    %v1039 = vmul.f32 %v1036, %v121
    %v1040 = vmul.f32 %v1035, %v122
    %v1041 = vmul.f32 %v1034, %v123
    %v1042 = vmul.f32 %v1033, %v124
    %v1043 = vmul.f32 %v1032, %v125
    %v1044 = vmul.f32 %v1031, %v126
    %v1045 = vmul.f32 %v1030, %v127
    %v1046 = vmul.f32 %v1029, %v128
    %v1047 = vmul.f32 %v1028, %v129
    %v1048 = vmul.f32 %v1027, %v130
    %v1049 = vmul.f32 %v1026, %v131
    %v1050 = vmul.f32 %v1025, %v132
    %v1051 = vmul.f32 %v1024, %v133
    %v1052 = vmul.f32 %v1023, %v134
    %v1053 = vmul.f32 %v1022, %v135
    %v1054 = vadd.f32 %v1038, %v398
    %v1055 = vadd.f32 %v1039, %v400
    %v1056 = vadd.f32 %v1040, %v481
    %v1057 = vadd.f32 %v1041, %v483
    %v1058 = vadd.f32 %v1042, %v564
    %v1059 = vadd.f32 %v1043, %v566
    %v1060 = vadd.f32 %v1044, %v647
    %v1061 = vadd.f32 %v1045, %v649
    %v1062 = vadd.f32 %v1046, %v730
    %v1063 = vadd.f32 %v1047, %v732
    %v1064 = vadd.f32 %v1048, %v813
    %v1065 = vadd.f32 %v1049, %v815
    %v1066 = vadd.f32 %v1050, %v896
    %v1067 = vadd.f32 %v1051, %v898
    %v1068 = vadd.f32 %v1052, %v979
    %v1069 = vadd.f32 %v1053, %v981
    %1070 = vrot.lane.b32.xlu0 %v404, 127
    %v1071 = vpop.permute.xlu0 %1070
    %1072 = vrot.lane.b32.xlu0 %v406, 127
    %v1073 = vpop.permute.xlu0 %1072
    %1074 = vrot.lane.b32.xlu0 %v487, 127
    %v1075 = vpop.permute.xlu0 %1074
    %1076 = vrot.lane.b32.xlu0 %v489, 127
    %v1077 = vpop.permute.xlu0 %1076
    %1078 = vrot.lane.b32.xlu0 %v570, 127
    %v1079 = vpop.permute.xlu0 %1078
    %1080 = vrot.lane.b32.xlu0 %v572, 127
    %v1081 = vpop.permute.xlu0 %1080
    %1082 = vrot.lane.b32.xlu0 %v653, 127
    %v1083 = vpop.permute.xlu0 %1082
    %1084 = vrot.lane.b32.xlu0 %v655, 127
    %v1085 = vpop.permute.xlu0 %1084
    %1086 = vrot.lane.b32.xlu0 %v736, 127
    %v1087 = vpop.permute.xlu0 %1086
    %1088 = vrot.lane.b32.xlu0 %v738, 127
    %v1089 = vpop.permute.xlu0 %1088
    %1090 = vrot.lane.b32.xlu0 %v819, 127
    %v1091 = vpop.permute.xlu0 %1090
    %1092 = vrot.lane.b32.xlu0 %v821, 127
    %v1093 = vpop.permute.xlu0 %1092
    %1094 = vrot.lane.b32.xlu0 %v902, 127
    %v1095 = vpop.permute.xlu0 %1094
    %1096 = vrot.lane.b32.xlu0 %v904, 127
    %v1097 = vpop.permute.xlu0 %1096
    %1098 = vrot.lane.b32.xlu0 %v985, 127
    %v1099 = vpop.permute.xlu0 %1098
    %1100 = vrot.lane.b32.xlu0 %v987, 127
    %v1101 = vpop.permute.xlu0 %1100
    %vm1102 = vcmp.lt.s32.totalorder %v56, 127
    %v1103 = vsel %vm1102, %v1099, %v1101
    %v1104 = vsel %vm1102, %v1097, %v1099
    %v1105 = vsel %vm1102, %v1095, %v1097
    %v1106 = vsel %vm1102, %v1093, %v1095
    %v1107 = vsel %vm1102, %v1091, %v1093
    %v1108 = vsel %vm1102, %v1089, %v1091
    %v1109 = vsel %vm1102, %v1087, %v1089
    %v1110 = vsel %vm1102, %v1085, %v1087
    %v1111 = vsel %vm1102, %v1083, %v1085
    %v1112 = vsel %vm1102, %v1081, %v1083
    %v1113 = vsel %vm1102, %v1079, %v1081
    %v1114 = vsel %vm1102, %v1077, %v1079
    %v1115 = vsel %vm1102, %v1075, %v1077
    %v1116 = vsel %vm1102, %v1073, %v1075
    %v1117 = vsel %vm1102, %v1071, %v1073
    %v1118 = vsel %vm1102, %v1101, %v1071
    %v1119 = vmul.f32 %v1117, %v168
    %v1120 = vmul.f32 %v1116, %v169
    %v1121 = vmul.f32 %v1115, %v170
    %v1122 = vmul.f32 %v1114, %v171
    %v1123 = vmul.f32 %v1113, %v172
    %v1124 = vmul.f32 %v1112, %v173
    %v1125 = vmul.f32 %v1111, %v174
    %v1126 = vmul.f32 %v1110, %v175
    %v1127 = vmul.f32 %v1109, %v176
    %v1128 = vmul.f32 %v1108, %v177
    %v1129 = vmul.f32 %v1107, %v178
    %v1130 = vmul.f32 %v1106, %v179
    %v1131 = vmul.f32 %v1105, %v180
    %v1132 = vmul.f32 %v1104, %v181
    %v1133 = vmul.f32 %v1103, %v182
    %v1134 = vmul.f32 %v1118, %v183
    %v1135 = vadd.f32 %v1054, %v1119
    %v1136 = vadd.f32 %v1055, %v1120
    %v1137 = vadd.f32 %v1056, %v1121
    %v1138 = vadd.f32 %v1057, %v1122
    %v1139 = vadd.f32 %v1058, %v1123
    %v1140 = vadd.f32 %v1059, %v1124
    %v1141 = vadd.f32 %v1060, %v1125
    %v1142 = vadd.f32 %v1061, %v1126
    %v1143 = vadd.f32 %v1062, %v1127
    %v1144 = vadd.f32 %v1063, %v1128
    %v1145 = vadd.f32 %v1064, %v1129
    %v1146 = vadd.f32 %v1065, %v1130
    %v1147 = vadd.f32 %v1066, %v1131
    %v1148 = vadd.f32 %v1067, %v1132
    %v1149 = vadd.f32 %v1068, %v1133
    %v1150 = vadd.f32 %v1069, %v1134
    %v1151 = vld [vmem:[%s2] sm:$0xff]
    %1153 = vset.pattern.permute.xlu0 0
    %1154 = vperm.xlu0 %1153, %v1151
    %v1155 = vpop.permute.xlu0 %1154
    %v1157 = vadd.f32 %v1135, %v1155
    %v1158 = vadd.f32 %v1136, %v1155
    %v1159 = vadd.f32 %v1137, %v1155
    %v1160 = vadd.f32 %v1138, %v1155
    %v1161 = vadd.f32 %v1139, %v1155
    %v1162 = vadd.f32 %v1140, %v1155
    %v1163 = vadd.f32 %v1141, %v1155
    %v1164 = vadd.f32 %v1142, %v1155
    %v1165 = vadd.f32 %v1143, %v1155
    %v1166 = vadd.f32 %v1144, %v1155
    %v1167 = vadd.f32 %v1145, %v1155
    %v1168 = vadd.f32 %v1146, %v1155
    %v1169 = vadd.f32 %v1147, %v1155
    %v1170 = vadd.f32 %v1148, %v1155
    %v1171 = vadd.f32 %v1149, %v1155
    %v1172 = vadd.f32 %v1150, %v1155
    %v1173 = vmax.f32 %v1157, 0.0
    %v1174 = vmax.f32 %v1158, 0.0
    %v1175 = vmax.f32 %v1159, 0.0
    %v1176 = vmax.f32 %v1160, 0.0
    %v1177 = vmax.f32 %v1161, 0.0
    %v1178 = vmax.f32 %v1162, 0.0
    %v1179 = vmax.f32 %v1163, 0.0
    %v1180 = vmax.f32 %v1164, 0.0
    %v1181 = vmax.f32 %v1165, 0.0
    %v1182 = vmax.f32 %v1166, 0.0
    %v1183 = vmax.f32 %v1167, 0.0
    %v1184 = vmax.f32 %v1168, 0.0
    %v1185 = vmax.f32 %v1169, 0.0
    %v1186 = vmax.f32 %v1170, 0.0
    %v1187 = vmax.f32 %v1171, 0.0
    %v1188 = vmax.f32 %v1172, 0.0
    %v1189 = vld [vmem:[%s3] sm:$0xff]
    %v1190 = vld [vmem:[%s3 + $0x8] sm:$0xff]
    %v1191 = vld [vmem:[%s3 + $0x10] sm:$0xff]
    %vm1192 = vcmask 64512
    %v1194 = vsel %vm1192, %v1189, 0
    %v1197 = vsel %vm1192, %v1190, 0
    %v1200 = vsel %vm1192, %v1191, 0
    %1202 = vmatprep.subr.mxu0 %v1174
    %1203 = vmatpush1.msra.mxu0 %v1173
    %1204 = vmatprep.subr.mxu0 0.0
    %1205 = vmatpush1.msra.mxu0 0.0
    %1206 = vmatprep.subr.mxu0 0.0
    %1207 = vmatpush1.msra.mxu0 0.0
    %1208 = vmatprep.subr.mxu0 0.0
    %1209 = vmatpush1.msra.mxu0 0.0
    %1210 = vmatprep.subr.mxu0 0.0
    %1211 = vmatpush1.msra.mxu0 0.0
    %1212 = vmatprep.subr.mxu0 0.0
    %1213 = vmatpush1.msra.mxu0 0.0
    %1214 = vmatprep.subr.mxu0 0.0
    %1215 = vmatpush1.msra.mxu0 0.0
    %1216 = vmatprep.subr.mxu0 0.0
    %1217 = vmatpush1.msra.mxu0 0.0
    %1218 = vmatprep.subr.mxu0 0.0
    %1219 = vmatpush1.msra.mxu0 0.0
    %1220 = vmatprep.subr.mxu0 0.0
    %1221 = vmatpush1.msra.mxu0 0.0
    %1222 = vmatprep.subr.mxu0 0.0
    %1223 = vmatpush1.msra.mxu0 0.0
    %1224 = vmatprep.subr.mxu0 0.0
    %1225 = vmatpush1.msra.mxu0 0.0
    %1226 = vmatprep.subr.mxu0 0.0
    %1227 = vmatpush1.msra.mxu0 0.0
    %1228 = vmatprep.subr.mxu0 0.0
    %1229 = vmatpush1.msra.mxu0 0.0
    %1230 = vmatprep.subr.mxu0 0.0
    %1231 = vmatpush1.msra.mxu0 0.0
    %1232 = vmatprep.subr.mxu0 0.0
    %1233 = vmatpush1.msra.mxu0 0.0
    %1234 = vmatprep.subr.mxu0 0.0
    %1235 = vmatpush1.msra.mxu0 0.0
    %1236 = vmatprep.subr.mxu0 0.0
    %1237 = vmatpush1.msra.mxu0 0.0
    %1238 = vmatprep.subr.mxu0 0.0
    %1239 = vmatpush1.msra.mxu0 0.0
    %1240 = vmatprep.subr.mxu0 0.0
    %1241 = vmatpush1.msra.mxu0 0.0
    %1242 = vmatprep.subr.mxu0 0.0
    %1243 = vmatpush1.msra.mxu0 0.0
    %1244 = vmatprep.subr.mxu0 0.0
    %1245 = vmatpush1.msra.mxu0 0.0
    %1246 = vmatprep.subr.mxu0 0.0
    %1247 = vmatpush1.msra.mxu0 0.0
    %1248 = vmatprep.subr.mxu0 0.0
    %1249 = vmatpush1.msra.mxu0 0.0
    %1250 = vmatprep.subr.mxu0 0.0
    %1251 = vmatpush1.msra.mxu0 0.0
    %1252 = vmatprep.subr.mxu0 0.0
    %1253 = vmatpush1.msra.mxu0 0.0
    %1254 = vmatprep.subr.mxu0 0.0
    %1255 = vmatpush1.msra.mxu0 0.0
    %1256 = vmatprep.subr.mxu0 0.0
    %1257 = vmatpush1.msra.mxu0 0.0
    %1258 = vmatprep.subr.mxu0 0.0
    %1259 = vmatpush1.msra.mxu0 0.0
    %1260 = vmatprep.subr.mxu0 0.0
    %1261 = vmatpush1.msra.mxu0 0.0
    %1262 = vmatprep.subr.mxu0 0.0
    %1263 = vmatpush1.msra.mxu0 0.0
    %1264 = vmatprep.subr.mxu0 0.0
    %1265 = vmatpush1.msra.mxu0 0.0
    %1266 = vmatprep.mubr.f32.mxu0 0.0
    %1267 = vmatmul.mubr.f32.gmra.mrb[0].mxu0 %v1194
    %v1268 = vpop.f32.mrb[0].mxu0
    %v1269 = vadd.f32 0.0, %v1268
    %v1270 = vpop.f32.mrb[0].mxu0
    %v1271 = vadd.f32 0.0, %v1270
    %1272 = vmatprep.mubr.f32.mxu0 0.0
    %1273 = vmatmul.mubr.f32.gmra.mrb[0].mxu0 %v1197
    %v1274 = vpop.f32.mrb[0].mxu0
    %v1275 = vadd.f32 0.0, %v1274
    %v1276 = vpop.f32.mrb[0].mxu0
    %v1277 = vadd.f32 0.0, %v1276
    %1278 = vmatprep.mubr.f32.mxu0 0.0
    %1279 = vmatmul.mubr.f32.gmra.mrb[0].mxu0 %v1200
    %v1280 = vpop.f32.mrb[0].mxu0
    %v1281 = vadd.f32 0.0, %v1280
    %v1282 = vpop.f32.mrb[0].mxu0
    %v1283 = vadd.f32 0.0, %v1282
    %1284 = vdwg.mxu0
    %1285 = vmatprep.subr.mxu0 %v1176
    %1286 = vmatpush1.msra.mxu0 %v1175
    %1287 = vmatprep.subr.mxu0 0.0
    %1288 = vmatpush1.msra.mxu0 0.0
    %1289 = vmatprep.subr.mxu0 0.0
    %1290 = vmatpush1.msra.mxu0 0.0
    %1291 = vmatprep.subr.mxu0 0.0
    %1292 = vmatpush1.msra.mxu0 0.0
    %1293 = vmatprep.subr.mxu0 0.0
    %1294 = vmatpush1.msra.mxu0 0.0
    %1295 = vmatprep.subr.mxu0 0.0
    %1296 = vmatpush1.msra.mxu0 0.0
    %1297 = vmatprep.subr.mxu0 0.0
    %1298 = vmatpush1.msra.mxu0 0.0
    %1299 = vmatprep.subr.mxu0 0.0
    %1300 = vmatpush1.msra.mxu0 0.0
    %1301 = vmatprep.subr.mxu0 0.0
    %1302 = vmatpush1.msra.mxu0 0.0
    %1303 = vmatprep.subr.mxu0 0.0
    %1304 = vmatpush1.msra.mxu0 0.0
    %1305 = vmatprep.subr.mxu0 0.0
    %1306 = vmatpush1.msra.mxu0 0.0
    %1307 = vmatprep.subr.mxu0 0.0
    %1308 = vmatpush1.msra.mxu0 0.0
    %1309 = vmatprep.subr.mxu0 0.0
    %1310 = vmatpush1.msra.mxu0 0.0
    %1311 = vmatprep.subr.mxu0 0.0
    %1312 = vmatpush1.msra.mxu0 0.0
    %1313 = vmatprep.subr.mxu0 0.0
    %1314 = vmatpush1.msra.mxu0 0.0
    %1315 = vmatprep.subr.mxu0 0.0
    %1316 = vmatpush1.msra.mxu0 0.0
    %1317 = vmatprep.subr.mxu0 0.0
    %1318 = vmatpush1.msra.mxu0 0.0
    %1319 = vmatprep.subr.mxu0 0.0
    %1320 = vmatpush1.msra.mxu0 0.0
    %1321 = vmatprep.subr.mxu0 0.0
    %1322 = vmatpush1.msra.mxu0 0.0
    %1323 = vmatprep.subr.mxu0 0.0
    %1324 = vmatpush1.msra.mxu0 0.0
    %1325 = vmatprep.subr.mxu0 0.0
    %1326 = vmatpush1.msra.mxu0 0.0
    %1327 = vmatprep.subr.mxu0 0.0
    %1328 = vmatpush1.msra.mxu0 0.0
    %1329 = vmatprep.subr.mxu0 0.0
    %1330 = vmatpush1.msra.mxu0 0.0
    %1331 = vmatprep.subr.mxu0 0.0
    %1332 = vmatpush1.msra.mxu0 0.0
    %1333 = vmatprep.subr.mxu0 0.0
    %1334 = vmatpush1.msra.mxu0 0.0
    %1335 = vmatprep.subr.mxu0 0.0
    %1336 = vmatpush1.msra.mxu0 0.0
    %1337 = vmatprep.subr.mxu0 0.0
    %1338 = vmatpush1.msra.mxu0 0.0
    %1339 = vmatprep.subr.mxu0 0.0
    %1340 = vmatpush1.msra.mxu0 0.0
    %1341 = vmatprep.subr.mxu0 0.0
    %1342 = vmatpush1.msra.mxu0 0.0
    %1343 = vmatprep.subr.mxu0 0.0
    %1344 = vmatpush1.msra.mxu0 0.0
    %1345 = vmatprep.subr.mxu0 0.0
    %1346 = vmatpush1.msra.mxu0 0.0
    %1347 = vmatprep.subr.mxu0 0.0
    %1348 = vmatpush1.msra.mxu0 0.0
    %1349 = vmatprep.mubr.f32.mxu0 0.0
    %1350 = vmatmul.mubr.f32.gmra.mrb[0].mxu0 %v1194
    %v1351 = vpop.f32.mrb[0].mxu0
    %v1352 = vadd.f32 0.0, %v1351
    %v1353 = vpop.f32.mrb[0].mxu0
    %v1354 = vadd.f32 0.0, %v1353
    %1355 = vmatprep.mubr.f32.mxu0 0.0
    %1356 = vmatmul.mubr.f32.gmra.mrb[0].mxu0 %v1197
    %v1357 = vpop.f32.mrb[0].mxu0
    %v1358 = vadd.f32 0.0, %v1357
    %v1359 = vpop.f32.mrb[0].mxu0
    %v1360 = vadd.f32 0.0, %v1359
    %1361 = vmatprep.mubr.f32.mxu0 0.0
    %1362 = vmatmul.mubr.f32.gmra.mrb[0].mxu0 %v1200
    %v1363 = vpop.f32.mrb[0].mxu0
    %v1364 = vadd.f32 0.0, %v1363
    %v1365 = vpop.f32.mrb[0].mxu0
    %v1366 = vadd.f32 0.0, %v1365
    %1367 = vdwg.mxu0
    %1368 = vmatprep.subr.mxu0 %v1178
    %1369 = vmatpush1.msra.mxu0 %v1177
    %1370 = vmatprep.subr.mxu0 0.0
    %1371 = vmatpush1.msra.mxu0 0.0
    %1372 = vmatprep.subr.mxu0 0.0
    %1373 = vmatpush1.msra.mxu0 0.0
    %1374 = vmatprep.subr.mxu0 0.0
    %1375 = vmatpush1.msra.mxu0 0.0
    %1376 = vmatprep.subr.mxu0 0.0
    %1377 = vmatpush1.msra.mxu0 0.0
    %1378 = vmatprep.subr.mxu0 0.0
    %1379 = vmatpush1.msra.mxu0 0.0
    %1380 = vmatprep.subr.mxu0 0.0
    %1381 = vmatpush1.msra.mxu0 0.0
    %1382 = vmatprep.subr.mxu0 0.0
    %1383 = vmatpush1.msra.mxu0 0.0
    %1384 = vmatprep.subr.mxu0 0.0
    %1385 = vmatpush1.msra.mxu0 0.0
    %1386 = vmatprep.subr.mxu0 0.0
    %1387 = vmatpush1.msra.mxu0 0.0
    %1388 = vmatprep.subr.mxu0 0.0
    %1389 = vmatpush1.msra.mxu0 0.0
    %1390 = vmatprep.subr.mxu0 0.0
    %1391 = vmatpush1.msra.mxu0 0.0
    %1392 = vmatprep.subr.mxu0 0.0
    %1393 = vmatpush1.msra.mxu0 0.0
    %1394 = vmatprep.subr.mxu0 0.0
    %1395 = vmatpush1.msra.mxu0 0.0
    %1396 = vmatprep.subr.mxu0 0.0
    %1397 = vmatpush1.msra.mxu0 0.0
    %1398 = vmatprep.subr.mxu0 0.0
    %1399 = vmatpush1.msra.mxu0 0.0
    %1400 = vmatprep.subr.mxu0 0.0
    %1401 = vmatpush1.msra.mxu0 0.0
    %1402 = vmatprep.subr.mxu0 0.0
    %1403 = vmatpush1.msra.mxu0 0.0
    %1404 = vmatprep.subr.mxu0 0.0
    %1405 = vmatpush1.msra.mxu0 0.0
    %1406 = vmatprep.subr.mxu0 0.0
    %1407 = vmatpush1.msra.mxu0 0.0
    %1408 = vmatprep.subr.mxu0 0.0
    %1409 = vmatpush1.msra.mxu0 0.0
    %1410 = vmatprep.subr.mxu0 0.0
    %1411 = vmatpush1.msra.mxu0 0.0
    %1412 = vmatprep.subr.mxu0 0.0
    %1413 = vmatpush1.msra.mxu0 0.0
    %1414 = vmatprep.subr.mxu0 0.0
    %1415 = vmatpush1.msra.mxu0 0.0
    %1416 = vmatprep.subr.mxu0 0.0
    %1417 = vmatpush1.msra.mxu0 0.0
    %1418 = vmatprep.subr.mxu0 0.0
    %1419 = vmatpush1.msra.mxu0 0.0
    %1420 = vmatprep.subr.mxu0 0.0
    %1421 = vmatpush1.msra.mxu0 0.0
    %1422 = vmatprep.subr.mxu0 0.0
    %1423 = vmatpush1.msra.mxu0 0.0
    %1424 = vmatprep.subr.mxu0 0.0
    %1425 = vmatpush1.msra.mxu0 0.0
    %1426 = vmatprep.subr.mxu0 0.0
    %1427 = vmatpush1.msra.mxu0 0.0
    %1428 = vmatprep.subr.mxu0 0.0
    %1429 = vmatpush1.msra.mxu0 0.0
    %1430 = vmatprep.subr.mxu0 0.0
    %1431 = vmatpush1.msra.mxu0 0.0
    %1432 = vmatprep.mubr.f32.mxu0 0.0
    %1433 = vmatmul.mubr.f32.gmra.mrb[0].mxu0 %v1194
    %v1434 = vpop.f32.mrb[0].mxu0
    %v1435 = vadd.f32 0.0, %v1434
    %v1436 = vpop.f32.mrb[0].mxu0
    %v1437 = vadd.f32 0.0, %v1436
    %1438 = vmatprep.mubr.f32.mxu0 0.0
    %1439 = vmatmul.mubr.f32.gmra.mrb[0].mxu0 %v1197
    %v1440 = vpop.f32.mrb[0].mxu0
    %v1441 = vadd.f32 0.0, %v1440
    %v1442 = vpop.f32.mrb[0].mxu0
    %v1443 = vadd.f32 0.0, %v1442
    %1444 = vmatprep.mubr.f32.mxu0 0.0
    %1445 = vmatmul.mubr.f32.gmra.mrb[0].mxu0 %v1200
    %v1446 = vpop.f32.mrb[0].mxu0
    %v1447 = vadd.f32 0.0, %v1446
    %v1448 = vpop.f32.mrb[0].mxu0
    %v1449 = vadd.f32 0.0, %v1448
    %1450 = vdwg.mxu0
    %1451 = vmatprep.subr.mxu0 %v1180
    %1452 = vmatpush1.msra.mxu0 %v1179
    %1453 = vmatprep.subr.mxu0 0.0
    %1454 = vmatpush1.msra.mxu0 0.0
    %1455 = vmatprep.subr.mxu0 0.0
    %1456 = vmatpush1.msra.mxu0 0.0
    %1457 = vmatprep.subr.mxu0 0.0
    %1458 = vmatpush1.msra.mxu0 0.0
    %1459 = vmatprep.subr.mxu0 0.0
    %1460 = vmatpush1.msra.mxu0 0.0
    %1461 = vmatprep.subr.mxu0 0.0
    %1462 = vmatpush1.msra.mxu0 0.0
    %1463 = vmatprep.subr.mxu0 0.0
    %1464 = vmatpush1.msra.mxu0 0.0
    %1465 = vmatprep.subr.mxu0 0.0
    %1466 = vmatpush1.msra.mxu0 0.0
    %1467 = vmatprep.subr.mxu0 0.0
    %1468 = vmatpush1.msra.mxu0 0.0
    %1469 = vmatprep.subr.mxu0 0.0
    %1470 = vmatpush1.msra.mxu0 0.0
    %1471 = vmatprep.subr.mxu0 0.0
    %1472 = vmatpush1.msra.mxu0 0.0
    %1473 = vmatprep.subr.mxu0 0.0
    %1474 = vmatpush1.msra.mxu0 0.0
    %1475 = vmatprep.subr.mxu0 0.0
    %1476 = vmatpush1.msra.mxu0 0.0
    %1477 = vmatprep.subr.mxu0 0.0
    %1478 = vmatpush1.msra.mxu0 0.0
    %1479 = vmatprep.subr.mxu0 0.0
    %1480 = vmatpush1.msra.mxu0 0.0
    %1481 = vmatprep.subr.mxu0 0.0
    %1482 = vmatpush1.msra.mxu0 0.0
    %1483 = vmatprep.subr.mxu0 0.0
    %1484 = vmatpush1.msra.mxu0 0.0
    %1485 = vmatprep.subr.mxu0 0.0
    %1486 = vmatpush1.msra.mxu0 0.0
    %1487 = vmatprep.subr.mxu0 0.0
    %1488 = vmatpush1.msra.mxu0 0.0
    %1489 = vmatprep.subr.mxu0 0.0
    %1490 = vmatpush1.msra.mxu0 0.0
    %1491 = vmatprep.subr.mxu0 0.0
    %1492 = vmatpush1.msra.mxu0 0.0
    %1493 = vmatprep.subr.mxu0 0.0
    %1494 = vmatpush1.msra.mxu0 0.0
    %1495 = vmatprep.subr.mxu0 0.0
    %1496 = vmatpush1.msra.mxu0 0.0
    %1497 = vmatprep.subr.mxu0 0.0
    %1498 = vmatpush1.msra.mxu0 0.0
    %1499 = vmatprep.subr.mxu0 0.0
    %1500 = vmatpush1.msra.mxu0 0.0
    %1501 = vmatprep.subr.mxu0 0.0
    %1502 = vmatpush1.msra.mxu0 0.0
    %1503 = vmatprep.subr.mxu0 0.0
    %1504 = vmatpush1.msra.mxu0 0.0
    %1505 = vmatprep.subr.mxu0 0.0
    %1506 = vmatpush1.msra.mxu0 0.0
    %1507 = vmatprep.subr.mxu0 0.0
    %1508 = vmatpush1.msra.mxu0 0.0
    %1509 = vmatprep.subr.mxu0 0.0
    %1510 = vmatpush1.msra.mxu0 0.0
    %1511 = vmatprep.subr.mxu0 0.0
    %1512 = vmatpush1.msra.mxu0 0.0
    %1513 = vmatprep.subr.mxu0 0.0
    %1514 = vmatpush1.msra.mxu0 0.0
    %1515 = vmatprep.mubr.f32.mxu0 0.0
    %1516 = vmatmul.mubr.f32.gmra.mrb[0].mxu0 %v1194
    %v1517 = vpop.f32.mrb[0].mxu0
    %v1518 = vadd.f32 0.0, %v1517
    %v1519 = vpop.f32.mrb[0].mxu0
    %v1520 = vadd.f32 0.0, %v1519
    %1521 = vmatprep.mubr.f32.mxu0 0.0
    %1522 = vmatmul.mubr.f32.gmra.mrb[0].mxu0 %v1197
    %v1523 = vpop.f32.mrb[0].mxu0
    %v1524 = vadd.f32 0.0, %v1523
    %v1525 = vpop.f32.mrb[0].mxu0
    %v1526 = vadd.f32 0.0, %v1525
    %1527 = vmatprep.mubr.f32.mxu0 0.0
    %1528 = vmatmul.mubr.f32.gmra.mrb[0].mxu0 %v1200
    %v1529 = vpop.f32.mrb[0].mxu0
    %v1530 = vadd.f32 0.0, %v1529
    %v1531 = vpop.f32.mrb[0].mxu0
    %v1532 = vadd.f32 0.0, %v1531
    %1533 = vdwg.mxu0
    %1534 = vmatprep.subr.mxu0 %v1182
    %1535 = vmatpush1.msra.mxu0 %v1181
    %1536 = vmatprep.subr.mxu0 0.0
    %1537 = vmatpush1.msra.mxu0 0.0
    %1538 = vmatprep.subr.mxu0 0.0
    %1539 = vmatpush1.msra.mxu0 0.0
    %1540 = vmatprep.subr.mxu0 0.0
    %1541 = vmatpush1.msra.mxu0 0.0
    %1542 = vmatprep.subr.mxu0 0.0
    %1543 = vmatpush1.msra.mxu0 0.0
    %1544 = vmatprep.subr.mxu0 0.0
    %1545 = vmatpush1.msra.mxu0 0.0
    %1546 = vmatprep.subr.mxu0 0.0
    %1547 = vmatpush1.msra.mxu0 0.0
    %1548 = vmatprep.subr.mxu0 0.0
    %1549 = vmatpush1.msra.mxu0 0.0
    %1550 = vmatprep.subr.mxu0 0.0
    %1551 = vmatpush1.msra.mxu0 0.0
    %1552 = vmatprep.subr.mxu0 0.0
    %1553 = vmatpush1.msra.mxu0 0.0
    %1554 = vmatprep.subr.mxu0 0.0
    %1555 = vmatpush1.msra.mxu0 0.0
    %1556 = vmatprep.subr.mxu0 0.0
    %1557 = vmatpush1.msra.mxu0 0.0
    %1558 = vmatprep.subr.mxu0 0.0
    %1559 = vmatpush1.msra.mxu0 0.0
    %1560 = vmatprep.subr.mxu0 0.0
    %1561 = vmatpush1.msra.mxu0 0.0
    %1562 = vmatprep.subr.mxu0 0.0
    %1563 = vmatpush1.msra.mxu0 0.0
    %1564 = vmatprep.subr.mxu0 0.0
    %1565 = vmatpush1.msra.mxu0 0.0
    %1566 = vmatprep.subr.mxu0 0.0
    %1567 = vmatpush1.msra.mxu0 0.0
    %1568 = vmatprep.subr.mxu0 0.0
    %1569 = vmatpush1.msra.mxu0 0.0
    %1570 = vmatprep.subr.mxu0 0.0
    %1571 = vmatpush1.msra.mxu0 0.0
    %1572 = vmatprep.subr.mxu0 0.0
    %1573 = vmatpush1.msra.mxu0 0.0
    %1574 = vmatprep.subr.mxu0 0.0
    %1575 = vmatpush1.msra.mxu0 0.0
    %1576 = vmatprep.subr.mxu0 0.0
    %1577 = vmatpush1.msra.mxu0 0.0
    %1578 = vmatprep.subr.mxu0 0.0
    %1579 = vmatpush1.msra.mxu0 0.0
    %1580 = vmatprep.subr.mxu0 0.0
    %1581 = vmatpush1.msra.mxu0 0.0
    %1582 = vmatprep.subr.mxu0 0.0
    %1583 = vmatpush1.msra.mxu0 0.0
    %1584 = vmatprep.subr.mxu0 0.0
    %1585 = vmatpush1.msra.mxu0 0.0
    %1586 = vmatprep.subr.mxu0 0.0
    %1587 = vmatpush1.msra.mxu0 0.0
    %1588 = vmatprep.subr.mxu0 0.0
    %1589 = vmatpush1.msra.mxu0 0.0
    %1590 = vmatprep.subr.mxu0 0.0
    %1591 = vmatpush1.msra.mxu0 0.0
    %1592 = vmatprep.subr.mxu0 0.0
    %1593 = vmatpush1.msra.mxu0 0.0
    %1594 = vmatprep.subr.mxu0 0.0
    %1595 = vmatpush1.msra.mxu0 0.0
    %1596 = vmatprep.subr.mxu0 0.0
    %1597 = vmatpush1.msra.mxu0 0.0
    %1598 = vmatprep.mubr.f32.mxu0 0.0
    %1599 = vmatmul.mubr.f32.gmra.mrb[0].mxu0 %v1194
    %v1600 = vpop.f32.mrb[0].mxu0
    %v1601 = vadd.f32 0.0, %v1600
    %v1602 = vpop.f32.mrb[0].mxu0
    %v1603 = vadd.f32 0.0, %v1602
    %1604 = vmatprep.mubr.f32.mxu0 0.0
    %1605 = vmatmul.mubr.f32.gmra.mrb[0].mxu0 %v1197
    %v1606 = vpop.f32.mrb[0].mxu0
    %v1607 = vadd.f32 0.0, %v1606
    %v1608 = vpop.f32.mrb[0].mxu0
    %v1609 = vadd.f32 0.0, %v1608
    %1610 = vmatprep.mubr.f32.mxu0 0.0
    %1611 = vmatmul.mubr.f32.gmra.mrb[0].mxu0 %v1200
    %v1612 = vpop.f32.mrb[0].mxu0
    %v1613 = vadd.f32 0.0, %v1612
    %v1614 = vpop.f32.mrb[0].mxu0
    %v1615 = vadd.f32 0.0, %v1614
    %1616 = vdwg.mxu0
    %1617 = vmatprep.subr.mxu0 %v1184
    %1618 = vmatpush1.msra.mxu0 %v1183
    %1619 = vmatprep.subr.mxu0 0.0
    %1620 = vmatpush1.msra.mxu0 0.0
    %1621 = vmatprep.subr.mxu0 0.0
    %1622 = vmatpush1.msra.mxu0 0.0
    %1623 = vmatprep.subr.mxu0 0.0
    %1624 = vmatpush1.msra.mxu0 0.0
    %1625 = vmatprep.subr.mxu0 0.0
    %1626 = vmatpush1.msra.mxu0 0.0
    %1627 = vmatprep.subr.mxu0 0.0
    %1628 = vmatpush1.msra.mxu0 0.0
    %1629 = vmatprep.subr.mxu0 0.0
    %1630 = vmatpush1.msra.mxu0 0.0
    %1631 = vmatprep.subr.mxu0 0.0
    %1632 = vmatpush1.msra.mxu0 0.0
    %1633 = vmatprep.subr.mxu0 0.0
    %1634 = vmatpush1.msra.mxu0 0.0
    %1635 = vmatprep.subr.mxu0 0.0
    %1636 = vmatpush1.msra.mxu0 0.0
    %1637 = vmatprep.subr.mxu0 0.0
    %1638 = vmatpush1.msra.mxu0 0.0
    %1639 = vmatprep.subr.mxu0 0.0
    %1640 = vmatpush1.msra.mxu0 0.0
    %1641 = vmatprep.subr.mxu0 0.0
    %1642 = vmatpush1.msra.mxu0 0.0
    %1643 = vmatprep.subr.mxu0 0.0
    %1644 = vmatpush1.msra.mxu0 0.0
    %1645 = vmatprep.subr.mxu0 0.0
    %1646 = vmatpush1.msra.mxu0 0.0
    %1647 = vmatprep.subr.mxu0 0.0
    %1648 = vmatpush1.msra.mxu0 0.0
    %1649 = vmatprep.subr.mxu0 0.0
    %1650 = vmatpush1.msra.mxu0 0.0
    %1651 = vmatprep.subr.mxu0 0.0
    %1652 = vmatpush1.msra.mxu0 0.0
    %1653 = vmatprep.subr.mxu0 0.0
    %1654 = vmatpush1.msra.mxu0 0.0
    %1655 = vmatprep.subr.mxu0 0.0
    %1656 = vmatpush1.msra.mxu0 0.0
    %1657 = vmatprep.subr.mxu0 0.0
    %1658 = vmatpush1.msra.mxu0 0.0
    %1659 = vmatprep.subr.mxu0 0.0
    %1660 = vmatpush1.msra.mxu0 0.0
    %1661 = vmatprep.subr.mxu0 0.0
    %1662 = vmatpush1.msra.mxu0 0.0
    %1663 = vmatprep.subr.mxu0 0.0
    %1664 = vmatpush1.msra.mxu0 0.0
    %1665 = vmatprep.subr.mxu0 0.0
    %1666 = vmatpush1.msra.mxu0 0.0
    %1667 = vmatprep.subr.mxu0 0.0
    %1668 = vmatpush1.msra.mxu0 0.0
    %1669 = vmatprep.subr.mxu0 0.0
    %1670 = vmatpush1.msra.mxu0 0.0
    %1671 = vmatprep.subr.mxu0 0.0
    %1672 = vmatpush1.msra.mxu0 0.0
    %1673 = vmatprep.subr.mxu0 0.0
    %1674 = vmatpush1.msra.mxu0 0.0
    %1675 = vmatprep.subr.mxu0 0.0
    %1676 = vmatpush1.msra.mxu0 0.0
    %1677 = vmatprep.subr.mxu0 0.0
    %1678 = vmatpush1.msra.mxu0 0.0
    %1679 = vmatprep.subr.mxu0 0.0
    %1680 = vmatpush1.msra.mxu0 0.0
    %1681 = vmatprep.mubr.f32.mxu0 0.0
    %1682 = vmatmul.mubr.f32.gmra.mrb[0].mxu0 %v1194
    %v1683 = vpop.f32.mrb[0].mxu0
    %v1684 = vadd.f32 0.0, %v1683
    %v1685 = vpop.f32.mrb[0].mxu0
    %v1686 = vadd.f32 0.0, %v1685
    %1687 = vmatprep.mubr.f32.mxu0 0.0
    %1688 = vmatmul.mubr.f32.gmra.mrb[0].mxu0 %v1197
    %v1689 = vpop.f32.mrb[0].mxu0
    %v1690 = vadd.f32 0.0, %v1689
    %v1691 = vpop.f32.mrb[0].mxu0
    %v1692 = vadd.f32 0.0, %v1691
    %1693 = vmatprep.mubr.f32.mxu0 0.0
    %1694 = vmatmul.mubr.f32.gmra.mrb[0].mxu0 %v1200
    %v1695 = vpop.f32.mrb[0].mxu0
    %v1696 = vadd.f32 0.0, %v1695
    %v1697 = vpop.f32.mrb[0].mxu0
    %v1698 = vadd.f32 0.0, %v1697
    %1699 = vdwg.mxu0
    %1700 = vmatprep.subr.mxu0 %v1186
    %1701 = vmatpush1.msra.mxu0 %v1185
    %1702 = vmatprep.subr.mxu0 0.0
    %1703 = vmatpush1.msra.mxu0 0.0
    %1704 = vmatprep.subr.mxu0 0.0
    %1705 = vmatpush1.msra.mxu0 0.0
    %1706 = vmatprep.subr.mxu0 0.0
    %1707 = vmatpush1.msra.mxu0 0.0
    %1708 = vmatprep.subr.mxu0 0.0
    %1709 = vmatpush1.msra.mxu0 0.0
    %1710 = vmatprep.subr.mxu0 0.0
    %1711 = vmatpush1.msra.mxu0 0.0
    %1712 = vmatprep.subr.mxu0 0.0
    %1713 = vmatpush1.msra.mxu0 0.0
    %1714 = vmatprep.subr.mxu0 0.0
    %1715 = vmatpush1.msra.mxu0 0.0
    %1716 = vmatprep.subr.mxu0 0.0
    %1717 = vmatpush1.msra.mxu0 0.0
    %1718 = vmatprep.subr.mxu0 0.0
    %1719 = vmatpush1.msra.mxu0 0.0
    %1720 = vmatprep.subr.mxu0 0.0
    %1721 = vmatpush1.msra.mxu0 0.0
    %1722 = vmatprep.subr.mxu0 0.0
    %1723 = vmatpush1.msra.mxu0 0.0
    %1724 = vmatprep.subr.mxu0 0.0
    %1725 = vmatpush1.msra.mxu0 0.0
    %1726 = vmatprep.subr.mxu0 0.0
    %1727 = vmatpush1.msra.mxu0 0.0
    %1728 = vmatprep.subr.mxu0 0.0
    %1729 = vmatpush1.msra.mxu0 0.0
    %1730 = vmatprep.subr.mxu0 0.0
    %1731 = vmatpush1.msra.mxu0 0.0
    %1732 = vmatprep.subr.mxu0 0.0
    %1733 = vmatpush1.msra.mxu0 0.0
    %1734 = vmatprep.subr.mxu0 0.0
    %1735 = vmatpush1.msra.mxu0 0.0
    %1736 = vmatprep.subr.mxu0 0.0
    %1737 = vmatpush1.msra.mxu0 0.0
    %1738 = vmatprep.subr.mxu0 0.0
    %1739 = vmatpush1.msra.mxu0 0.0
    %1740 = vmatprep.subr.mxu0 0.0
    %1741 = vmatpush1.msra.mxu0 0.0
    %1742 = vmatprep.subr.mxu0 0.0
    %1743 = vmatpush1.msra.mxu0 0.0
    %1744 = vmatprep.subr.mxu0 0.0
    %1745 = vmatpush1.msra.mxu0 0.0
    %1746 = vmatprep.subr.mxu0 0.0
    %1747 = vmatpush1.msra.mxu0 0.0
    %1748 = vmatprep.subr.mxu0 0.0
    %1749 = vmatpush1.msra.mxu0 0.0
    %1750 = vmatprep.subr.mxu0 0.0
    %1751 = vmatpush1.msra.mxu0 0.0
    %1752 = vmatprep.subr.mxu0 0.0
    %1753 = vmatpush1.msra.mxu0 0.0
    %1754 = vmatprep.subr.mxu0 0.0
    %1755 = vmatpush1.msra.mxu0 0.0
    %1756 = vmatprep.subr.mxu0 0.0
    %1757 = vmatpush1.msra.mxu0 0.0
    %1758 = vmatprep.subr.mxu0 0.0
    %1759 = vmatpush1.msra.mxu0 0.0
    %1760 = vmatprep.subr.mxu0 0.0
    %1761 = vmatpush1.msra.mxu0 0.0
    %1762 = vmatprep.subr.mxu0 0.0
    %1763 = vmatpush1.msra.mxu0 0.0
    %1764 = vmatprep.mubr.f32.mxu0 0.0
    %1765 = vmatmul.mubr.f32.gmra.mrb[0].mxu0 %v1194
    %v1766 = vpop.f32.mrb[0].mxu0
    %v1767 = vadd.f32 0.0, %v1766
    %v1768 = vpop.f32.mrb[0].mxu0
    %v1769 = vadd.f32 0.0, %v1768
    %1770 = vmatprep.mubr.f32.mxu0 0.0
    %1771 = vmatmul.mubr.f32.gmra.mrb[0].mxu0 %v1197
    %v1772 = vpop.f32.mrb[0].mxu0
    %v1773 = vadd.f32 0.0, %v1772
    %v1774 = vpop.f32.mrb[0].mxu0
    %v1775 = vadd.f32 0.0, %v1774
    %1776 = vmatprep.mubr.f32.mxu0 0.0
    %1777 = vmatmul.mubr.f32.gmra.mrb[0].mxu0 %v1200
    %v1778 = vpop.f32.mrb[0].mxu0
    %v1779 = vadd.f32 0.0, %v1778
    %v1780 = vpop.f32.mrb[0].mxu0
    %v1781 = vadd.f32 0.0, %v1780
    %1782 = vdwg.mxu0
    %1783 = vmatprep.subr.mxu0 %v1188
    %1784 = vmatpush1.msra.mxu0 %v1187
    %1785 = vmatprep.subr.mxu0 0.0
    %1786 = vmatpush1.msra.mxu0 0.0
    %1787 = vmatprep.subr.mxu0 0.0
    %1788 = vmatpush1.msra.mxu0 0.0
    %1789 = vmatprep.subr.mxu0 0.0
    %1790 = vmatpush1.msra.mxu0 0.0
    %1791 = vmatprep.subr.mxu0 0.0
    %1792 = vmatpush1.msra.mxu0 0.0
    %1793 = vmatprep.subr.mxu0 0.0
    %1794 = vmatpush1.msra.mxu0 0.0
    %1795 = vmatprep.subr.mxu0 0.0
    %1796 = vmatpush1.msra.mxu0 0.0
    %1797 = vmatprep.subr.mxu0 0.0
    %1798 = vmatpush1.msra.mxu0 0.0
    %1799 = vmatprep.subr.mxu0 0.0
    %1800 = vmatpush1.msra.mxu0 0.0
    %1801 = vmatprep.subr.mxu0 0.0
    %1802 = vmatpush1.msra.mxu0 0.0
    %1803 = vmatprep.subr.mxu0 0.0
    %1804 = vmatpush1.msra.mxu0 0.0
    %1805 = vmatprep.subr.mxu0 0.0
    %1806 = vmatpush1.msra.mxu0 0.0
    %1807 = vmatprep.subr.mxu0 0.0
    %1808 = vmatpush1.msra.mxu0 0.0
    %1809 = vmatprep.subr.mxu0 0.0
    %1810 = vmatpush1.msra.mxu0 0.0
    %1811 = vmatprep.subr.mxu0 0.0
    %1812 = vmatpush1.msra.mxu0 0.0
    %1813 = vmatprep.subr.mxu0 0.0
    %1814 = vmatpush1.msra.mxu0 0.0
    %1815 = vmatprep.subr.mxu0 0.0
    %1816 = vmatpush1.msra.mxu0 0.0
    %1817 = vmatprep.subr.mxu0 0.0
    %1818 = vmatpush1.msra.mxu0 0.0
    %1819 = vmatprep.subr.mxu0 0.0
    %1820 = vmatpush1.msra.mxu0 0.0
    %1821 = vmatprep.subr.mxu0 0.0
    %1822 = vmatpush1.msra.mxu0 0.0
    %1823 = vmatprep.subr.mxu0 0.0
    %1824 = vmatpush1.msra.mxu0 0.0
    %1825 = vmatprep.subr.mxu0 0.0
    %1826 = vmatpush1.msra.mxu0 0.0
    %1827 = vmatprep.subr.mxu0 0.0
    %1828 = vmatpush1.msra.mxu0 0.0
    %1829 = vmatprep.subr.mxu0 0.0
    %1830 = vmatpush1.msra.mxu0 0.0
    %1831 = vmatprep.subr.mxu0 0.0
    %1832 = vmatpush1.msra.mxu0 0.0
    %1833 = vmatprep.subr.mxu0 0.0
    %1834 = vmatpush1.msra.mxu0 0.0
    %1835 = vmatprep.subr.mxu0 0.0
    %1836 = vmatpush1.msra.mxu0 0.0
    %1837 = vmatprep.subr.mxu0 0.0
    %1838 = vmatpush1.msra.mxu0 0.0
    %1839 = vmatprep.subr.mxu0 0.0
    %1840 = vmatpush1.msra.mxu0 0.0
    %1841 = vmatprep.subr.mxu0 0.0
    %1842 = vmatpush1.msra.mxu0 0.0
    %1843 = vmatprep.subr.mxu0 0.0
    %1844 = vmatpush1.msra.mxu0 0.0
    %1845 = vmatprep.subr.mxu0 0.0
    %1846 = vmatpush1.msra.mxu0 0.0
    %1847 = vmatprep.mubr.f32.mxu0 0.0
    %1848 = vmatmul.mubr.f32.gmra.mrb[0].mxu0 %v1194
    %v1849 = vpop.f32.mrb[0].mxu0
    %v1850 = vadd.f32 0.0, %v1849
    %v1851 = vpop.f32.mrb[0].mxu0
    %v1852 = vadd.f32 0.0, %v1851
    %1853 = vmatprep.mubr.f32.mxu0 0.0
    %1854 = vmatmul.mubr.f32.gmra.mrb[0].mxu0 %v1197
    %v1855 = vpop.f32.mrb[0].mxu0
    %v1856 = vadd.f32 0.0, %v1855
    %v1857 = vpop.f32.mrb[0].mxu0
    %v1858 = vadd.f32 0.0, %v1857
    %1859 = vmatprep.mubr.f32.mxu0 0.0
    %1860 = vmatmul.mubr.f32.gmra.mrb[0].mxu0 %v1200
    %v1861 = vpop.f32.mrb[0].mxu0
    %v1862 = vadd.f32 0.0, %v1861
    %v1863 = vpop.f32.mrb[0].mxu0
    %v1864 = vadd.f32 0.0, %v1863
    %1865 = vdwg.mxu0
    %1866 = vrot.lane.b32.xlu0 %v1269, 1
    %v1867 = vpop.permute.xlu0 %1866
    %1868 = vrot.lane.b32.xlu0 %v1271, 1
    %v1869 = vpop.permute.xlu0 %1868
    %1870 = vrot.lane.b32.xlu0 %v1352, 1
    %v1871 = vpop.permute.xlu0 %1870
    %1872 = vrot.lane.b32.xlu0 %v1354, 1
    %v1873 = vpop.permute.xlu0 %1872
    %1874 = vrot.lane.b32.xlu0 %v1435, 1
    %v1875 = vpop.permute.xlu0 %1874
    %1876 = vrot.lane.b32.xlu0 %v1437, 1
    %v1877 = vpop.permute.xlu0 %1876
    %1878 = vrot.lane.b32.xlu0 %v1518, 1
    %v1879 = vpop.permute.xlu0 %1878
    %1880 = vrot.lane.b32.xlu0 %v1520, 1
    %v1881 = vpop.permute.xlu0 %1880
    %1882 = vrot.lane.b32.xlu0 %v1601, 1
    %v1883 = vpop.permute.xlu0 %1882
    %1884 = vrot.lane.b32.xlu0 %v1603, 1
    %v1885 = vpop.permute.xlu0 %1884
    %1886 = vrot.lane.b32.xlu0 %v1684, 1
    %v1887 = vpop.permute.xlu0 %1886
    %1888 = vrot.lane.b32.xlu0 %v1686, 1
    %v1889 = vpop.permute.xlu0 %1888
    %1890 = vrot.lane.b32.xlu0 %v1767, 1
    %v1891 = vpop.permute.xlu0 %1890
    %1892 = vrot.lane.b32.xlu0 %v1769, 1
    %v1893 = vpop.permute.xlu0 %1892
    %1894 = vrot.lane.b32.xlu0 %v1850, 1
    %v1895 = vpop.permute.xlu0 %1894
    %1896 = vrot.lane.b32.xlu0 %v1852, 1
    %v1897 = vpop.permute.xlu0 %1896
    %v1898 = vsel %vm1021, %v1895, %v1897
    %v1899 = vsel %vm1021, %v1893, %v1895
    %v1900 = vsel %vm1021, %v1891, %v1893
    %v1901 = vsel %vm1021, %v1889, %v1891
    %v1902 = vsel %vm1021, %v1887, %v1889
    %v1903 = vsel %vm1021, %v1885, %v1887
    %v1904 = vsel %vm1021, %v1883, %v1885
    %v1905 = vsel %vm1021, %v1881, %v1883
    %v1906 = vsel %vm1021, %v1879, %v1881
    %v1907 = vsel %vm1021, %v1877, %v1879
    %v1908 = vsel %vm1021, %v1875, %v1877
    %v1909 = vsel %vm1021, %v1873, %v1875
    %v1910 = vsel %vm1021, %v1871, %v1873
    %v1911 = vsel %vm1021, %v1869, %v1871
    %v1912 = vsel %vm1021, %v1867, %v1869
    %v1913 = vsel %vm1021, %v1897, %v1867
    %v1914 = vmul.f32 %v1913, %v120
    %v1915 = vmul.f32 %v1912, %v121
    %v1916 = vmul.f32 %v1911, %v122
    %v1917 = vmul.f32 %v1910, %v123
    %v1918 = vmul.f32 %v1909, %v124
    %v1919 = vmul.f32 %v1908, %v125
    %v1920 = vmul.f32 %v1907, %v126
    %v1921 = vmul.f32 %v1906, %v127
    %v1922 = vmul.f32 %v1905, %v128
    %v1923 = vmul.f32 %v1904, %v129
    %v1924 = vmul.f32 %v1903, %v130
    %v1925 = vmul.f32 %v1902, %v131
    %v1926 = vmul.f32 %v1901, %v132
    %v1927 = vmul.f32 %v1900, %v133
    %v1928 = vmul.f32 %v1899, %v134
    %v1929 = vmul.f32 %v1898, %v135
    %v1930 = vadd.f32 %v1914, %v1275
    %v1931 = vadd.f32 %v1915, %v1277
    %v1932 = vadd.f32 %v1916, %v1358
    %v1933 = vadd.f32 %v1917, %v1360
    %v1934 = vadd.f32 %v1918, %v1441
    %v1935 = vadd.f32 %v1919, %v1443
    %v1936 = vadd.f32 %v1920, %v1524
    %v1937 = vadd.f32 %v1921, %v1526
    %v1938 = vadd.f32 %v1922, %v1607
    %v1939 = vadd.f32 %v1923, %v1609
    %v1940 = vadd.f32 %v1924, %v1690
    %v1941 = vadd.f32 %v1925, %v1692
    %v1942 = vadd.f32 %v1926, %v1773
    %v1943 = vadd.f32 %v1927, %v1775
    %v1944 = vadd.f32 %v1928, %v1856
    %v1945 = vadd.f32 %v1929, %v1858
    %1946 = vrot.lane.b32.xlu0 %v1281, 127
    %v1947 = vpop.permute.xlu0 %1946
    %1948 = vrot.lane.b32.xlu0 %v1283, 127
    %v1949 = vpop.permute.xlu0 %1948
    %1950 = vrot.lane.b32.xlu0 %v1364, 127
    %v1951 = vpop.permute.xlu0 %1950
    %1952 = vrot.lane.b32.xlu0 %v1366, 127
    %v1953 = vpop.permute.xlu0 %1952
    %1954 = vrot.lane.b32.xlu0 %v1447, 127
    %v1955 = vpop.permute.xlu0 %1954
    %1956 = vrot.lane.b32.xlu0 %v1449, 127
    %v1957 = vpop.permute.xlu0 %1956
    %1958 = vrot.lane.b32.xlu0 %v1530, 127
    %v1959 = vpop.permute.xlu0 %1958
    %1960 = vrot.lane.b32.xlu0 %v1532, 127
    %v1961 = vpop.permute.xlu0 %1960
    %1962 = vrot.lane.b32.xlu0 %v1613, 127
    %v1963 = vpop.permute.xlu0 %1962
    %1964 = vrot.lane.b32.xlu0 %v1615, 127
    %v1965 = vpop.permute.xlu0 %1964
    %1966 = vrot.lane.b32.xlu0 %v1696, 127
    %v1967 = vpop.permute.xlu0 %1966
    %1968 = vrot.lane.b32.xlu0 %v1698, 127
    %v1969 = vpop.permute.xlu0 %1968
    %1970 = vrot.lane.b32.xlu0 %v1779, 127
    %v1971 = vpop.permute.xlu0 %1970
    %1972 = vrot.lane.b32.xlu0 %v1781, 127
    %v1973 = vpop.permute.xlu0 %1972
    %1974 = vrot.lane.b32.xlu0 %v1862, 127
    %v1975 = vpop.permute.xlu0 %1974
    %1976 = vrot.lane.b32.xlu0 %v1864, 127
    %v1977 = vpop.permute.xlu0 %1976
    %v1978 = vsel %vm1102, %v1975, %v1977
    %v1979 = vsel %vm1102, %v1973, %v1975
    %v1980 = vsel %vm1102, %v1971, %v1973
    %v1981 = vsel %vm1102, %v1969, %v1971
    %v1982 = vsel %vm1102, %v1967, %v1969
    %v1983 = vsel %vm1102, %v1965, %v1967
    %v1984 = vsel %vm1102, %v1963, %v1965
    %v1985 = vsel %vm1102, %v1961, %v1963
    %v1986 = vsel %vm1102, %v1959, %v1961
    %v1987 = vsel %vm1102, %v1957, %v1959
    %v1988 = vsel %vm1102, %v1955, %v1957
    %v1989 = vsel %vm1102, %v1953, %v1955
    %v1990 = vsel %vm1102, %v1951, %v1953
    %v1991 = vsel %vm1102, %v1949, %v1951
    %v1992 = vsel %vm1102, %v1947, %v1949
    %v1993 = vsel %vm1102, %v1977, %v1947
    %v1994 = vmul.f32 %v1992, %v168
    %v1995 = vmul.f32 %v1991, %v169
    %v1996 = vmul.f32 %v1990, %v170
    %v1997 = vmul.f32 %v1989, %v171
    %v1998 = vmul.f32 %v1988, %v172
    %v1999 = vmul.f32 %v1987, %v173
    %v2000 = vmul.f32 %v1986, %v174
    %v2001 = vmul.f32 %v1985, %v175
    %v2002 = vmul.f32 %v1984, %v176
    %v2003 = vmul.f32 %v1983, %v177
    %v2004 = vmul.f32 %v1982, %v178
    %v2005 = vmul.f32 %v1981, %v179
    %v2006 = vmul.f32 %v1980, %v180
    %v2007 = vmul.f32 %v1979, %v181
    %v2008 = vmul.f32 %v1978, %v182
    %v2009 = vmul.f32 %v1993, %v183
    %v2010 = vadd.f32 %v1930, %v1994
    %v2011 = vadd.f32 %v1931, %v1995
    %v2012 = vadd.f32 %v1932, %v1996
    %v2013 = vadd.f32 %v1933, %v1997
    %v2014 = vadd.f32 %v1934, %v1998
    %v2015 = vadd.f32 %v1935, %v1999
    %v2016 = vadd.f32 %v1936, %v2000
    %v2017 = vadd.f32 %v1937, %v2001
    %v2018 = vadd.f32 %v1938, %v2002
    %v2019 = vadd.f32 %v1939, %v2003
    %v2020 = vadd.f32 %v1940, %v2004
    %v2021 = vadd.f32 %v1941, %v2005
    %v2022 = vadd.f32 %v1942, %v2006
    %v2023 = vadd.f32 %v1943, %v2007
    %v2024 = vadd.f32 %v1944, %v2008
    %v2025 = vadd.f32 %v1945, %v2009
    %v2026 = vld [vmem:[%s4] sm:$0xff]
    %2028 = vset.pattern.permute.xlu0 0
    %2029 = vperm.xlu0 %2028, %v2026
    %v2030 = vpop.permute.xlu0 %2029
    %v2032 = vadd.f32 %v2010, %v2030
    %v2033 = vadd.f32 %v2011, %v2030
    %v2034 = vadd.f32 %v2012, %v2030
    %v2035 = vadd.f32 %v2013, %v2030
    %v2036 = vadd.f32 %v2014, %v2030
    %v2037 = vadd.f32 %v2015, %v2030
    %v2038 = vadd.f32 %v2016, %v2030
    %v2039 = vadd.f32 %v2017, %v2030
    %v2040 = vadd.f32 %v2018, %v2030
    %v2041 = vadd.f32 %v2019, %v2030
    %v2042 = vadd.f32 %v2020, %v2030
    %v2043 = vadd.f32 %v2021, %v2030
    %v2044 = vadd.f32 %v2022, %v2030
    %v2045 = vadd.f32 %v2023, %v2030
    %v2046 = vadd.f32 %v2024, %v2030
    %v2047 = vadd.f32 %v2025, %v2030
    %v2048 = vmax.f32 %v2032, 0.0
    %v2049 = vmax.f32 %v2033, 0.0
    %v2050 = vmax.f32 %v2034, 0.0
    %v2051 = vmax.f32 %v2035, 0.0
    %v2052 = vmax.f32 %v2036, 0.0
    %v2053 = vmax.f32 %v2037, 0.0
    %v2054 = vmax.f32 %v2038, 0.0
    %v2055 = vmax.f32 %v2039, 0.0
    %v2056 = vmax.f32 %v2040, 0.0
    %v2057 = vmax.f32 %v2041, 0.0
    %v2058 = vmax.f32 %v2042, 0.0
    %v2059 = vmax.f32 %v2043, 0.0
    %v2060 = vmax.f32 %v2044, 0.0
    %v2061 = vmax.f32 %v2045, 0.0
    %v2062 = vmax.f32 %v2046, 0.0
    %v2063 = vmax.f32 %v2047, 0.0
    %v2064 = vld [vmem:[%s5] sm:$0xff]
    %v2065 = vld [vmem:[%s5 + $0x8] sm:$0xff]
    %v2066 = vld [vmem:[%s5 + $0x10] sm:$0xff]
    %v2067 = vld [vmem:[%s5 + $0x18] sm:$0xff]
    %v2068 = vld [vmem:[%s5 + $0x20] sm:$0xff]
    %v2069 = vld [vmem:[%s5 + $0x28] sm:$0xff]
    %v2071 = vsel %vm1192, %v2064, 0
    %v2074 = vsel %vm1192, %v2065, 0
    %v2077 = vsel %vm1192, %v2066, 0
    %v2080 = vsel %vm1192, %v2067, 0
    %v2083 = vsel %vm1192, %v2068, 0
    %v2086 = vsel %vm1192, %v2069, 0
    %2088 = vmatprep.subr.mxu0 %v2049
    %2089 = vmatpush1.msra.mxu0 %v2048
    %2090 = vmatprep.subr.mxu0 0.0
    %2091 = vmatpush1.msra.mxu0 0.0
    %2092 = vmatprep.subr.mxu0 0.0
    %2093 = vmatpush1.msra.mxu0 0.0
    %2094 = vmatprep.subr.mxu0 0.0
    %2095 = vmatpush1.msra.mxu0 0.0
    %2096 = vmatprep.subr.mxu0 0.0
    %2097 = vmatpush1.msra.mxu0 0.0
    %2098 = vmatprep.subr.mxu0 0.0
    %2099 = vmatpush1.msra.mxu0 0.0
    %2100 = vmatprep.subr.mxu0 0.0
    %2101 = vmatpush1.msra.mxu0 0.0
    %2102 = vmatprep.subr.mxu0 0.0
    %2103 = vmatpush1.msra.mxu0 0.0
    %2104 = vmatprep.subr.mxu0 0.0
    %2105 = vmatpush1.msra.mxu0 0.0
    %2106 = vmatprep.subr.mxu0 0.0
    %2107 = vmatpush1.msra.mxu0 0.0
    %2108 = vmatprep.subr.mxu0 0.0
    %2109 = vmatpush1.msra.mxu0 0.0
    %2110 = vmatprep.subr.mxu0 0.0
    %2111 = vmatpush1.msra.mxu0 0.0
    %2112 = vmatprep.subr.mxu0 0.0
    %2113 = vmatpush1.msra.mxu0 0.0
    %2114 = vmatprep.subr.mxu0 0.0
    %2115 = vmatpush1.msra.mxu0 0.0
    %2116 = vmatprep.subr.mxu0 0.0
    %2117 = vmatpush1.msra.mxu0 0.0
    %2118 = vmatprep.subr.mxu0 0.0
    %2119 = vmatpush1.msra.mxu0 0.0
    %2120 = vmatprep.subr.mxu0 0.0
    %2121 = vmatpush1.msra.mxu0 0.0
    %2122 = vmatprep.subr.mxu0 0.0
    %2123 = vmatpush1.msra.mxu0 0.0
    %2124 = vmatprep.subr.mxu0 0.0
    %2125 = vmatpush1.msra.mxu0 0.0
    %2126 = vmatprep.subr.mxu0 0.0
    %2127 = vmatpush1.msra.mxu0 0.0
    %2128 = vmatprep.subr.mxu0 0.0
    %2129 = vmatpush1.msra.mxu0 0.0
    %2130 = vmatprep.subr.mxu0 0.0
    %2131 = vmatpush1.msra.mxu0 0.0
    %2132 = vmatprep.subr.mxu0 0.0
    %2133 = vmatpush1.msra.mxu0 0.0
    %2134 = vmatprep.subr.mxu0 0.0
    %2135 = vmatpush1.msra.mxu0 0.0
    %2136 = vmatprep.subr.mxu0 0.0
    %2137 = vmatpush1.msra.mxu0 0.0
    %2138 = vmatprep.subr.mxu0 0.0
    %2139 = vmatpush1.msra.mxu0 0.0
    %2140 = vmatprep.subr.mxu0 0.0
    %2141 = vmatpush1.msra.mxu0 0.0
    %2142 = vmatprep.subr.mxu0 0.0
    %2143 = vmatpush1.msra.mxu0 0.0
    %2144 = vmatprep.subr.mxu0 0.0
    %2145 = vmatpush1.msra.mxu0 0.0
    %2146 = vmatprep.subr.mxu0 0.0
    %2147 = vmatpush1.msra.mxu0 0.0
    %2148 = vmatprep.subr.mxu0 0.0
    %2149 = vmatpush1.msra.mxu0 0.0
    %2150 = vmatprep.subr.mxu0 0.0
    %2151 = vmatpush1.msra.mxu0 0.0
    %2152 = vmatprep.mubr.f32.mxu0 0.0
    %2153 = vmatmul.mubr.f32.gmra.mrb[0].mxu0 %v2071
    %v2154 = vpop.f32.mrb[0].mxu0
    %v2155 = vadd.f32 0.0, %v2154
    %v2156 = vpop.f32.mrb[0].mxu0
    %v2157 = vadd.f32 0.0, %v2156
    %2158 = vmatprep.mubr.f32.mxu0 0.0
    %2159 = vmatmul.mubr.f32.gmra.mrb[0].mxu0 %v2074
    %v2160 = vpop.f32.mrb[0].mxu0
    %v2161 = vadd.f32 0.0, %v2160
    %v2162 = vpop.f32.mrb[0].mxu0
    %v2163 = vadd.f32 0.0, %v2162
    %2164 = vmatprep.mubr.f32.mxu0 0.0
    %2165 = vmatmul.mubr.f32.gmra.mrb[0].mxu0 %v2077
    %v2166 = vpop.f32.mrb[0].mxu0
    %v2167 = vadd.f32 0.0, %v2166
    %v2168 = vpop.f32.mrb[0].mxu0
    %v2169 = vadd.f32 0.0, %v2168
    %2170 = vmatprep.mubr.f32.mxu0 0.0
    %2171 = vmatmul.mubr.f32.gmra.mrb[0].mxu0 %v2080
    %v2172 = vpop.f32.mrb[0].mxu0
    %v2173 = vadd.f32 0.0, %v2172
    %v2174 = vpop.f32.mrb[0].mxu0
    %v2175 = vadd.f32 0.0, %v2174
    %2176 = vmatprep.mubr.f32.mxu0 0.0
    %2177 = vmatmul.mubr.f32.gmra.mrb[0].mxu0 %v2083
    %v2178 = vpop.f32.mrb[0].mxu0
    %v2179 = vadd.f32 0.0, %v2178
    %v2180 = vpop.f32.mrb[0].mxu0
    %v2181 = vadd.f32 0.0, %v2180
    %2182 = vmatprep.mubr.f32.mxu0 0.0
    %2183 = vmatmul.mubr.f32.gmra.mrb[0].mxu0 %v2086
    %v2184 = vpop.f32.mrb[0].mxu0
    %v2185 = vadd.f32 0.0, %v2184
    %v2186 = vpop.f32.mrb[0].mxu0
    %v2187 = vadd.f32 0.0, %v2186
    %2188 = vdwg.mxu0
    %2189 = vmatprep.subr.mxu0 %v2051
    %2190 = vmatpush1.msra.mxu0 %v2050
    %2191 = vmatprep.subr.mxu0 0.0
    %2192 = vmatpush1.msra.mxu0 0.0
    %2193 = vmatprep.subr.mxu0 0.0
    %2194 = vmatpush1.msra.mxu0 0.0
    %2195 = vmatprep.subr.mxu0 0.0
    %2196 = vmatpush1.msra.mxu0 0.0
    %2197 = vmatprep.subr.mxu0 0.0
    %2198 = vmatpush1.msra.mxu0 0.0
    %2199 = vmatprep.subr.mxu0 0.0
    %2200 = vmatpush1.msra.mxu0 0.0
    %2201 = vmatprep.subr.mxu0 0.0
    %2202 = vmatpush1.msra.mxu0 0.0
    %2203 = vmatprep.subr.mxu0 0.0
    %2204 = vmatpush1.msra.mxu0 0.0
    %2205 = vmatprep.subr.mxu0 0.0
    %2206 = vmatpush1.msra.mxu0 0.0
    %2207 = vmatprep.subr.mxu0 0.0
    %2208 = vmatpush1.msra.mxu0 0.0
    %2209 = vmatprep.subr.mxu0 0.0
    %2210 = vmatpush1.msra.mxu0 0.0
    %2211 = vmatprep.subr.mxu0 0.0
    %2212 = vmatpush1.msra.mxu0 0.0
    %2213 = vmatprep.subr.mxu0 0.0
    %2214 = vmatpush1.msra.mxu0 0.0
    %2215 = vmatprep.subr.mxu0 0.0
    %2216 = vmatpush1.msra.mxu0 0.0
    %2217 = vmatprep.subr.mxu0 0.0
    %2218 = vmatpush1.msra.mxu0 0.0
    %2219 = vmatprep.subr.mxu0 0.0
    %2220 = vmatpush1.msra.mxu0 0.0
    %2221 = vmatprep.subr.mxu0 0.0
    %2222 = vmatpush1.msra.mxu0 0.0
    %2223 = vmatprep.subr.mxu0 0.0
    %2224 = vmatpush1.msra.mxu0 0.0
    %2225 = vmatprep.subr.mxu0 0.0
    %2226 = vmatpush1.msra.mxu0 0.0
    %2227 = vmatprep.subr.mxu0 0.0
    %2228 = vmatpush1.msra.mxu0 0.0
    %2229 = vmatprep.subr.mxu0 0.0
    %2230 = vmatpush1.msra.mxu0 0.0
    %2231 = vmatprep.subr.mxu0 0.0
    %2232 = vmatpush1.msra.mxu0 0.0
    %2233 = vmatprep.subr.mxu0 0.0
    %2234 = vmatpush1.msra.mxu0 0.0
    %2235 = vmatprep.subr.mxu0 0.0
    %2236 = vmatpush1.msra.mxu0 0.0
    %2237 = vmatprep.subr.mxu0 0.0
    %2238 = vmatpush1.msra.mxu0 0.0
    %2239 = vmatprep.subr.mxu0 0.0
    %2240 = vmatpush1.msra.mxu0 0.0
    %2241 = vmatprep.subr.mxu0 0.0
    %2242 = vmatpush1.msra.mxu0 0.0
    %2243 = vmatprep.subr.mxu0 0.0
    %2244 = vmatpush1.msra.mxu0 0.0
    %2245 = vmatprep.subr.mxu0 0.0
    %2246 = vmatpush1.msra.mxu0 0.0
    %2247 = vmatprep.subr.mxu0 0.0
    %2248 = vmatpush1.msra.mxu0 0.0
    %2249 = vmatprep.subr.mxu0 0.0
    %2250 = vmatpush1.msra.mxu0 0.0
    %2251 = vmatprep.subr.mxu0 0.0
    %2252 = vmatpush1.msra.mxu0 0.0
    %2253 = vmatprep.mubr.f32.mxu0 0.0
    %2254 = vmatmul.mubr.f32.gmra.mrb[0].mxu0 %v2071
    %v2255 = vpop.f32.mrb[0].mxu0
    %v2256 = vadd.f32 0.0, %v2255
    %v2257 = vpop.f32.mrb[0].mxu0
    %v2258 = vadd.f32 0.0, %v2257
    %2259 = vmatprep.mubr.f32.mxu0 0.0
    %2260 = vmatmul.mubr.f32.gmra.mrb[0].mxu0 %v2074
    %v2261 = vpop.f32.mrb[0].mxu0
    %v2262 = vadd.f32 0.0, %v2261
    %v2263 = vpop.f32.mrb[0].mxu0
    %v2264 = vadd.f32 0.0, %v2263
    %2265 = vmatprep.mubr.f32.mxu0 0.0
    %2266 = vmatmul.mubr.f32.gmra.mrb[0].mxu0 %v2077
    %v2267 = vpop.f32.mrb[0].mxu0
    %v2268 = vadd.f32 0.0, %v2267
    %v2269 = vpop.f32.mrb[0].mxu0
    %v2270 = vadd.f32 0.0, %v2269
    %2271 = vmatprep.mubr.f32.mxu0 0.0
    %2272 = vmatmul.mubr.f32.gmra.mrb[0].mxu0 %v2080
    %v2273 = vpop.f32.mrb[0].mxu0
    %v2274 = vadd.f32 0.0, %v2273
    %v2275 = vpop.f32.mrb[0].mxu0
    %v2276 = vadd.f32 0.0, %v2275
    %2277 = vmatprep.mubr.f32.mxu0 0.0
    %2278 = vmatmul.mubr.f32.gmra.mrb[0].mxu0 %v2083
    %v2279 = vpop.f32.mrb[0].mxu0
    %v2280 = vadd.f32 0.0, %v2279
    %v2281 = vpop.f32.mrb[0].mxu0
    %v2282 = vadd.f32 0.0, %v2281
    %2283 = vmatprep.mubr.f32.mxu0 0.0
    %2284 = vmatmul.mubr.f32.gmra.mrb[0].mxu0 %v2086
    %v2285 = vpop.f32.mrb[0].mxu0
    %v2286 = vadd.f32 0.0, %v2285
    %v2287 = vpop.f32.mrb[0].mxu0
    %v2288 = vadd.f32 0.0, %v2287
    %2289 = vdwg.mxu0
    %2290 = vmatprep.subr.mxu0 %v2053
    %2291 = vmatpush1.msra.mxu0 %v2052
    %2292 = vmatprep.subr.mxu0 0.0
    %2293 = vmatpush1.msra.mxu0 0.0
    %2294 = vmatprep.subr.mxu0 0.0
    %2295 = vmatpush1.msra.mxu0 0.0
    %2296 = vmatprep.subr.mxu0 0.0
    %2297 = vmatpush1.msra.mxu0 0.0
    %2298 = vmatprep.subr.mxu0 0.0
    %2299 = vmatpush1.msra.mxu0 0.0
    %2300 = vmatprep.subr.mxu0 0.0
    %2301 = vmatpush1.msra.mxu0 0.0
    %2302 = vmatprep.subr.mxu0 0.0
    %2303 = vmatpush1.msra.mxu0 0.0
    %2304 = vmatprep.subr.mxu0 0.0
    %2305 = vmatpush1.msra.mxu0 0.0
    %2306 = vmatprep.subr.mxu0 0.0
    %2307 = vmatpush1.msra.mxu0 0.0
    %2308 = vmatprep.subr.mxu0 0.0
    %2309 = vmatpush1.msra.mxu0 0.0
    %2310 = vmatprep.subr.mxu0 0.0
    %2311 = vmatpush1.msra.mxu0 0.0
    %2312 = vmatprep.subr.mxu0 0.0
    %2313 = vmatpush1.msra.mxu0 0.0
    %2314 = vmatprep.subr.mxu0 0.0
    %2315 = vmatpush1.msra.mxu0 0.0
    %2316 = vmatprep.subr.mxu0 0.0
    %2317 = vmatpush1.msra.mxu0 0.0
    %2318 = vmatprep.subr.mxu0 0.0
    %2319 = vmatpush1.msra.mxu0 0.0
    %2320 = vmatprep.subr.mxu0 0.0
    %2321 = vmatpush1.msra.mxu0 0.0
    %2322 = vmatprep.subr.mxu0 0.0
    %2323 = vmatpush1.msra.mxu0 0.0
    %2324 = vmatprep.subr.mxu0 0.0
    %2325 = vmatpush1.msra.mxu0 0.0
    %2326 = vmatprep.subr.mxu0 0.0
    %2327 = vmatpush1.msra.mxu0 0.0
    %2328 = vmatprep.subr.mxu0 0.0
    %2329 = vmatpush1.msra.mxu0 0.0
    %2330 = vmatprep.subr.mxu0 0.0
    %2331 = vmatpush1.msra.mxu0 0.0
    %2332 = vmatprep.subr.mxu0 0.0
    %2333 = vmatpush1.msra.mxu0 0.0
    %2334 = vmatprep.subr.mxu0 0.0
    %2335 = vmatpush1.msra.mxu0 0.0
    %2336 = vmatprep.subr.mxu0 0.0
    %2337 = vmatpush1.msra.mxu0 0.0
    %2338 = vmatprep.subr.mxu0 0.0
    %2339 = vmatpush1.msra.mxu0 0.0
    %2340 = vmatprep.subr.mxu0 0.0
    %2341 = vmatpush1.msra.mxu0 0.0
    %2342 = vmatprep.subr.mxu0 0.0
    %2343 = vmatpush1.msra.mxu0 0.0
    %2344 = vmatprep.subr.mxu0 0.0
    %2345 = vmatpush1.msra.mxu0 0.0
    %2346 = vmatprep.subr.mxu0 0.0
    %2347 = vmatpush1.msra.mxu0 0.0
    %2348 = vmatprep.subr.mxu0 0.0
    %2349 = vmatpush1.msra.mxu0 0.0
    %2350 = vmatprep.subr.mxu0 0.0
    %2351 = vmatpush1.msra.mxu0 0.0
    %2352 = vmatprep.subr.mxu0 0.0
    %2353 = vmatpush1.msra.mxu0 0.0
    %2354 = vmatprep.mubr.f32.mxu0 0.0
    %2355 = vmatmul.mubr.f32.gmra.mrb[0].mxu0 %v2071
    %v2356 = vpop.f32.mrb[0].mxu0
    %v2357 = vadd.f32 0.0, %v2356
    %v2358 = vpop.f32.mrb[0].mxu0
    %v2359 = vadd.f32 0.0, %v2358
    %2360 = vmatprep.mubr.f32.mxu0 0.0
    %2361 = vmatmul.mubr.f32.gmra.mrb[0].mxu0 %v2074
    %v2362 = vpop.f32.mrb[0].mxu0
    %v2363 = vadd.f32 0.0, %v2362
    %v2364 = vpop.f32.mrb[0].mxu0
    %v2365 = vadd.f32 0.0, %v2364
    %2366 = vmatprep.mubr.f32.mxu0 0.0
    %2367 = vmatmul.mubr.f32.gmra.mrb[0].mxu0 %v2077
    %v2368 = vpop.f32.mrb[0].mxu0
    %v2369 = vadd.f32 0.0, %v2368
    %v2370 = vpop.f32.mrb[0].mxu0
    %v2371 = vadd.f32 0.0, %v2370
    %2372 = vmatprep.mubr.f32.mxu0 0.0
    %2373 = vmatmul.mubr.f32.gmra.mrb[0].mxu0 %v2080
    %v2374 = vpop.f32.mrb[0].mxu0
    %v2375 = vadd.f32 0.0, %v2374
    %v2376 = vpop.f32.mrb[0].mxu0
    %v2377 = vadd.f32 0.0, %v2376
    %2378 = vmatprep.mubr.f32.mxu0 0.0
    %2379 = vmatmul.mubr.f32.gmra.mrb[0].mxu0 %v2083
    %v2380 = vpop.f32.mrb[0].mxu0
    %v2381 = vadd.f32 0.0, %v2380
    %v2382 = vpop.f32.mrb[0].mxu0
    %v2383 = vadd.f32 0.0, %v2382
    %2384 = vmatprep.mubr.f32.mxu0 0.0
    %2385 = vmatmul.mubr.f32.gmra.mrb[0].mxu0 %v2086
    %v2386 = vpop.f32.mrb[0].mxu0
    %v2387 = vadd.f32 0.0, %v2386
    %v2388 = vpop.f32.mrb[0].mxu0
    %v2389 = vadd.f32 0.0, %v2388
    %2390 = vdwg.mxu0
    %2391 = vmatprep.subr.mxu0 %v2055
    %2392 = vmatpush1.msra.mxu0 %v2054
    %2393 = vmatprep.subr.mxu0 0.0
    %2394 = vmatpush1.msra.mxu0 0.0
    %2395 = vmatprep.subr.mxu0 0.0
    %2396 = vmatpush1.msra.mxu0 0.0
    %2397 = vmatprep.subr.mxu0 0.0
    %2398 = vmatpush1.msra.mxu0 0.0
    %2399 = vmatprep.subr.mxu0 0.0
    %2400 = vmatpush1.msra.mxu0 0.0
    %2401 = vmatprep.subr.mxu0 0.0
    %2402 = vmatpush1.msra.mxu0 0.0
    %2403 = vmatprep.subr.mxu0 0.0
    %2404 = vmatpush1.msra.mxu0 0.0
    %2405 = vmatprep.subr.mxu0 0.0
    %2406 = vmatpush1.msra.mxu0 0.0
    %2407 = vmatprep.subr.mxu0 0.0
    %2408 = vmatpush1.msra.mxu0 0.0
    %2409 = vmatprep.subr.mxu0 0.0
    %2410 = vmatpush1.msra.mxu0 0.0
    %2411 = vmatprep.subr.mxu0 0.0
    %2412 = vmatpush1.msra.mxu0 0.0
    %2413 = vmatprep.subr.mxu0 0.0
    %2414 = vmatpush1.msra.mxu0 0.0
    %2415 = vmatprep.subr.mxu0 0.0
    %2416 = vmatpush1.msra.mxu0 0.0
    %2417 = vmatprep.subr.mxu0 0.0
    %2418 = vmatpush1.msra.mxu0 0.0
    %2419 = vmatprep.subr.mxu0 0.0
    %2420 = vmatpush1.msra.mxu0 0.0
    %2421 = vmatprep.subr.mxu0 0.0
    %2422 = vmatpush1.msra.mxu0 0.0
    %2423 = vmatprep.subr.mxu0 0.0
    %2424 = vmatpush1.msra.mxu0 0.0
    %2425 = vmatprep.subr.mxu0 0.0
    %2426 = vmatpush1.msra.mxu0 0.0
    %2427 = vmatprep.subr.mxu0 0.0
    %2428 = vmatpush1.msra.mxu0 0.0
    %2429 = vmatprep.subr.mxu0 0.0
    %2430 = vmatpush1.msra.mxu0 0.0
    %2431 = vmatprep.subr.mxu0 0.0
    %2432 = vmatpush1.msra.mxu0 0.0
    %2433 = vmatprep.subr.mxu0 0.0
    %2434 = vmatpush1.msra.mxu0 0.0
    %2435 = vmatprep.subr.mxu0 0.0
    %2436 = vmatpush1.msra.mxu0 0.0
    %2437 = vmatprep.subr.mxu0 0.0
    %2438 = vmatpush1.msra.mxu0 0.0
    %2439 = vmatprep.subr.mxu0 0.0
    %2440 = vmatpush1.msra.mxu0 0.0
    %2441 = vmatprep.subr.mxu0 0.0
    %2442 = vmatpush1.msra.mxu0 0.0
    %2443 = vmatprep.subr.mxu0 0.0
    %2444 = vmatpush1.msra.mxu0 0.0
    %2445 = vmatprep.subr.mxu0 0.0
    %2446 = vmatpush1.msra.mxu0 0.0
    %2447 = vmatprep.subr.mxu0 0.0
    %2448 = vmatpush1.msra.mxu0 0.0
    %2449 = vmatprep.subr.mxu0 0.0
    %2450 = vmatpush1.msra.mxu0 0.0
    %2451 = vmatprep.subr.mxu0 0.0
    %2452 = vmatpush1.msra.mxu0 0.0
    %2453 = vmatprep.subr.mxu0 0.0
    %2454 = vmatpush1.msra.mxu0 0.0
    %2455 = vmatprep.mubr.f32.mxu0 0.0
    %2456 = vmatmul.mubr.f32.gmra.mrb[0].mxu0 %v2071
    %v2457 = vpop.f32.mrb[0].mxu0
    %v2458 = vadd.f32 0.0, %v2457
    %v2459 = vpop.f32.mrb[0].mxu0
    %v2460 = vadd.f32 0.0, %v2459
    %2461 = vmatprep.mubr.f32.mxu0 0.0
    %2462 = vmatmul.mubr.f32.gmra.mrb[0].mxu0 %v2074
    %v2463 = vpop.f32.mrb[0].mxu0
    %v2464 = vadd.f32 0.0, %v2463
    %v2465 = vpop.f32.mrb[0].mxu0
    %v2466 = vadd.f32 0.0, %v2465
    %2467 = vmatprep.mubr.f32.mxu0 0.0
    %2468 = vmatmul.mubr.f32.gmra.mrb[0].mxu0 %v2077
    %v2469 = vpop.f32.mrb[0].mxu0
    %v2470 = vadd.f32 0.0, %v2469
    %v2471 = vpop.f32.mrb[0].mxu0
    %v2472 = vadd.f32 0.0, %v2471
    %2473 = vmatprep.mubr.f32.mxu0 0.0
    %2474 = vmatmul.mubr.f32.gmra.mrb[0].mxu0 %v2080
    %v2475 = vpop.f32.mrb[0].mxu0
    %v2476 = vadd.f32 0.0, %v2475
    %v2477 = vpop.f32.mrb[0].mxu0
    %v2478 = vadd.f32 0.0, %v2477
    %2479 = vmatprep.mubr.f32.mxu0 0.0
    %2480 = vmatmul.mubr.f32.gmra.mrb[0].mxu0 %v2083
    %v2481 = vpop.f32.mrb[0].mxu0
    %v2482 = vadd.f32 0.0, %v2481
    %v2483 = vpop.f32.mrb[0].mxu0
    %v2484 = vadd.f32 0.0, %v2483
    %2485 = vmatprep.mubr.f32.mxu0 0.0
    %2486 = vmatmul.mubr.f32.gmra.mrb[0].mxu0 %v2086
    %v2487 = vpop.f32.mrb[0].mxu0
    %v2488 = vadd.f32 0.0, %v2487
    %v2489 = vpop.f32.mrb[0].mxu0
    %v2490 = vadd.f32 0.0, %v2489
    %2491 = vdwg.mxu0
    %2492 = vmatprep.subr.mxu0 %v2057
    %2493 = vmatpush1.msra.mxu0 %v2056
    %2494 = vmatprep.subr.mxu0 0.0
    %2495 = vmatpush1.msra.mxu0 0.0
    %2496 = vmatprep.subr.mxu0 0.0
    %2497 = vmatpush1.msra.mxu0 0.0
    %2498 = vmatprep.subr.mxu0 0.0
    %2499 = vmatpush1.msra.mxu0 0.0
    %2500 = vmatprep.subr.mxu0 0.0
    %2501 = vmatpush1.msra.mxu0 0.0
    %2502 = vmatprep.subr.mxu0 0.0
    %2503 = vmatpush1.msra.mxu0 0.0
    %2504 = vmatprep.subr.mxu0 0.0
    %2505 = vmatpush1.msra.mxu0 0.0
    %2506 = vmatprep.subr.mxu0 0.0
    %2507 = vmatpush1.msra.mxu0 0.0
    %2508 = vmatprep.subr.mxu0 0.0
    %2509 = vmatpush1.msra.mxu0 0.0
    %2510 = vmatprep.subr.mxu0 0.0
    %2511 = vmatpush1.msra.mxu0 0.0
    %2512 = vmatprep.subr.mxu0 0.0
    %2513 = vmatpush1.msra.mxu0 0.0
    %2514 = vmatprep.subr.mxu0 0.0
    %2515 = vmatpush1.msra.mxu0 0.0
    %2516 = vmatprep.subr.mxu0 0.0
    %2517 = vmatpush1.msra.mxu0 0.0
    %2518 = vmatprep.subr.mxu0 0.0
    %2519 = vmatpush1.msra.mxu0 0.0
    %2520 = vmatprep.subr.mxu0 0.0
    %2521 = vmatpush1.msra.mxu0 0.0
    %2522 = vmatprep.subr.mxu0 0.0
    %2523 = vmatpush1.msra.mxu0 0.0
    %2524 = vmatprep.subr.mxu0 0.0
    %2525 = vmatpush1.msra.mxu0 0.0
    %2526 = vmatprep.subr.mxu0 0.0
    %2527 = vmatpush1.msra.mxu0 0.0
    %2528 = vmatprep.subr.mxu0 0.0
    %2529 = vmatpush1.msra.mxu0 0.0
    %2530 = vmatprep.subr.mxu0 0.0
    %2531 = vmatpush1.msra.mxu0 0.0
    %2532 = vmatprep.subr.mxu0 0.0
    %2533 = vmatpush1.msra.mxu0 0.0
    %2534 = vmatprep.subr.mxu0 0.0
    %2535 = vmatpush1.msra.mxu0 0.0
    %2536 = vmatprep.subr.mxu0 0.0
    %2537 = vmatpush1.msra.mxu0 0.0
    %2538 = vmatprep.subr.mxu0 0.0
    %2539 = vmatpush1.msra.mxu0 0.0
    %2540 = vmatprep.subr.mxu0 0.0
    %2541 = vmatpush1.msra.mxu0 0.0
    %2542 = vmatprep.subr.mxu0 0.0
    %2543 = vmatpush1.msra.mxu0 0.0
    %2544 = vmatprep.subr.mxu0 0.0
    %2545 = vmatpush1.msra.mxu0 0.0
    %2546 = vmatprep.subr.mxu0 0.0
    %2547 = vmatpush1.msra.mxu0 0.0
    %2548 = vmatprep.subr.mxu0 0.0
    %2549 = vmatpush1.msra.mxu0 0.0
    %2550 = vmatprep.subr.mxu0 0.0
    %2551 = vmatpush1.msra.mxu0 0.0
    %2552 = vmatprep.subr.mxu0 0.0
    %2553 = vmatpush1.msra.mxu0 0.0
    %2554 = vmatprep.subr.mxu0 0.0
    %2555 = vmatpush1.msra.mxu0 0.0
    %2556 = vmatprep.mubr.f32.mxu0 0.0
    %2557 = vmatmul.mubr.f32.gmra.mrb[0].mxu0 %v2071
    %v2558 = vpop.f32.mrb[0].mxu0
    %v2559 = vadd.f32 0.0, %v2558
    %v2560 = vpop.f32.mrb[0].mxu0
    %v2561 = vadd.f32 0.0, %v2560
    %2562 = vmatprep.mubr.f32.mxu0 0.0
    %2563 = vmatmul.mubr.f32.gmra.mrb[0].mxu0 %v2074
    %v2564 = vpop.f32.mrb[0].mxu0
    %v2565 = vadd.f32 0.0, %v2564
    %v2566 = vpop.f32.mrb[0].mxu0
    %v2567 = vadd.f32 0.0, %v2566
    %2568 = vmatprep.mubr.f32.mxu0 0.0
    %2569 = vmatmul.mubr.f32.gmra.mrb[0].mxu0 %v2077
    %v2570 = vpop.f32.mrb[0].mxu0
    %v2571 = vadd.f32 0.0, %v2570
    %v2572 = vpop.f32.mrb[0].mxu0
    %v2573 = vadd.f32 0.0, %v2572
    %2574 = vmatprep.mubr.f32.mxu0 0.0
    %2575 = vmatmul.mubr.f32.gmra.mrb[0].mxu0 %v2080
    %v2576 = vpop.f32.mrb[0].mxu0
    %v2577 = vadd.f32 0.0, %v2576
    %v2578 = vpop.f32.mrb[0].mxu0
    %v2579 = vadd.f32 0.0, %v2578
    %2580 = vmatprep.mubr.f32.mxu0 0.0
    %2581 = vmatmul.mubr.f32.gmra.mrb[0].mxu0 %v2083
    %v2582 = vpop.f32.mrb[0].mxu0
    %v2583 = vadd.f32 0.0, %v2582
    %v2584 = vpop.f32.mrb[0].mxu0
    %v2585 = vadd.f32 0.0, %v2584
    %2586 = vmatprep.mubr.f32.mxu0 0.0
    %2587 = vmatmul.mubr.f32.gmra.mrb[0].mxu0 %v2086
    %v2588 = vpop.f32.mrb[0].mxu0
    %v2589 = vadd.f32 0.0, %v2588
    %v2590 = vpop.f32.mrb[0].mxu0
    %v2591 = vadd.f32 0.0, %v2590
    %2592 = vdwg.mxu0
    %2593 = vmatprep.subr.mxu0 %v2059
    %2594 = vmatpush1.msra.mxu0 %v2058
    %2595 = vmatprep.subr.mxu0 0.0
    %2596 = vmatpush1.msra.mxu0 0.0
    %2597 = vmatprep.subr.mxu0 0.0
    %2598 = vmatpush1.msra.mxu0 0.0
    %2599 = vmatprep.subr.mxu0 0.0
    %2600 = vmatpush1.msra.mxu0 0.0
    %2601 = vmatprep.subr.mxu0 0.0
    %2602 = vmatpush1.msra.mxu0 0.0
    %2603 = vmatprep.subr.mxu0 0.0
    %2604 = vmatpush1.msra.mxu0 0.0
    %2605 = vmatprep.subr.mxu0 0.0
    %2606 = vmatpush1.msra.mxu0 0.0
    %2607 = vmatprep.subr.mxu0 0.0
    %2608 = vmatpush1.msra.mxu0 0.0
    %2609 = vmatprep.subr.mxu0 0.0
    %2610 = vmatpush1.msra.mxu0 0.0
    %2611 = vmatprep.subr.mxu0 0.0
    %2612 = vmatpush1.msra.mxu0 0.0
    %2613 = vmatprep.subr.mxu0 0.0
    %2614 = vmatpush1.msra.mxu0 0.0
    %2615 = vmatprep.subr.mxu0 0.0
    %2616 = vmatpush1.msra.mxu0 0.0
    %2617 = vmatprep.subr.mxu0 0.0
    %2618 = vmatpush1.msra.mxu0 0.0
    %2619 = vmatprep.subr.mxu0 0.0
    %2620 = vmatpush1.msra.mxu0 0.0
    %2621 = vmatprep.subr.mxu0 0.0
    %2622 = vmatpush1.msra.mxu0 0.0
    %2623 = vmatprep.subr.mxu0 0.0
    %2624 = vmatpush1.msra.mxu0 0.0
    %2625 = vmatprep.subr.mxu0 0.0
    %2626 = vmatpush1.msra.mxu0 0.0
    %2627 = vmatprep.subr.mxu0 0.0
    %2628 = vmatpush1.msra.mxu0 0.0
    %2629 = vmatprep.subr.mxu0 0.0
    %2630 = vmatpush1.msra.mxu0 0.0
    %2631 = vmatprep.subr.mxu0 0.0
    %2632 = vmatpush1.msra.mxu0 0.0
    %2633 = vmatprep.subr.mxu0 0.0
    %2634 = vmatpush1.msra.mxu0 0.0
    %2635 = vmatprep.subr.mxu0 0.0
    %2636 = vmatpush1.msra.mxu0 0.0
    %2637 = vmatprep.subr.mxu0 0.0
    %2638 = vmatpush1.msra.mxu0 0.0
    %2639 = vmatprep.subr.mxu0 0.0
    %2640 = vmatpush1.msra.mxu0 0.0
    %2641 = vmatprep.subr.mxu0 0.0
    %2642 = vmatpush1.msra.mxu0 0.0
    %2643 = vmatprep.subr.mxu0 0.0
    %2644 = vmatpush1.msra.mxu0 0.0
    %2645 = vmatprep.subr.mxu0 0.0
    %2646 = vmatpush1.msra.mxu0 0.0
    %2647 = vmatprep.subr.mxu0 0.0
    %2648 = vmatpush1.msra.mxu0 0.0
    %2649 = vmatprep.subr.mxu0 0.0
    %2650 = vmatpush1.msra.mxu0 0.0
    %2651 = vmatprep.subr.mxu0 0.0
    %2652 = vmatpush1.msra.mxu0 0.0
    %2653 = vmatprep.subr.mxu0 0.0
    %2654 = vmatpush1.msra.mxu0 0.0
    %2655 = vmatprep.subr.mxu0 0.0
    %2656 = vmatpush1.msra.mxu0 0.0
    %2657 = vmatprep.mubr.f32.mxu0 0.0
    %2658 = vmatmul.mubr.f32.gmra.mrb[0].mxu0 %v2071
    %v2659 = vpop.f32.mrb[0].mxu0
    %v2660 = vadd.f32 0.0, %v2659
    %v2661 = vpop.f32.mrb[0].mxu0
    %v2662 = vadd.f32 0.0, %v2661
    %2663 = vmatprep.mubr.f32.mxu0 0.0
    %2664 = vmatmul.mubr.f32.gmra.mrb[0].mxu0 %v2074
    %v2665 = vpop.f32.mrb[0].mxu0
    %v2666 = vadd.f32 0.0, %v2665
    %v2667 = vpop.f32.mrb[0].mxu0
    %v2668 = vadd.f32 0.0, %v2667
    %2669 = vmatprep.mubr.f32.mxu0 0.0
    %2670 = vmatmul.mubr.f32.gmra.mrb[0].mxu0 %v2077
    %v2671 = vpop.f32.mrb[0].mxu0
    %v2672 = vadd.f32 0.0, %v2671
    %v2673 = vpop.f32.mrb[0].mxu0
    %v2674 = vadd.f32 0.0, %v2673
    %2675 = vmatprep.mubr.f32.mxu0 0.0
    %2676 = vmatmul.mubr.f32.gmra.mrb[0].mxu0 %v2080
    %v2677 = vpop.f32.mrb[0].mxu0
    %v2678 = vadd.f32 0.0, %v2677
    %v2679 = vpop.f32.mrb[0].mxu0
    %v2680 = vadd.f32 0.0, %v2679
    %2681 = vmatprep.mubr.f32.mxu0 0.0
    %2682 = vmatmul.mubr.f32.gmra.mrb[0].mxu0 %v2083
    %v2683 = vpop.f32.mrb[0].mxu0
    %v2684 = vadd.f32 0.0, %v2683
    %v2685 = vpop.f32.mrb[0].mxu0
    %v2686 = vadd.f32 0.0, %v2685
    %2687 = vmatprep.mubr.f32.mxu0 0.0
    %2688 = vmatmul.mubr.f32.gmra.mrb[0].mxu0 %v2086
    %v2689 = vpop.f32.mrb[0].mxu0
    %v2690 = vadd.f32 0.0, %v2689
    %v2691 = vpop.f32.mrb[0].mxu0
    %v2692 = vadd.f32 0.0, %v2691
    %2693 = vdwg.mxu0
    %2694 = vmatprep.subr.mxu0 %v2061
    %2695 = vmatpush1.msra.mxu0 %v2060
    %2696 = vmatprep.subr.mxu0 0.0
    %2697 = vmatpush1.msra.mxu0 0.0
    %2698 = vmatprep.subr.mxu0 0.0
    %2699 = vmatpush1.msra.mxu0 0.0
    %2700 = vmatprep.subr.mxu0 0.0
    %2701 = vmatpush1.msra.mxu0 0.0
    %2702 = vmatprep.subr.mxu0 0.0
    %2703 = vmatpush1.msra.mxu0 0.0
    %2704 = vmatprep.subr.mxu0 0.0
    %2705 = vmatpush1.msra.mxu0 0.0
    %2706 = vmatprep.subr.mxu0 0.0
    %2707 = vmatpush1.msra.mxu0 0.0
    %2708 = vmatprep.subr.mxu0 0.0
    %2709 = vmatpush1.msra.mxu0 0.0
    %2710 = vmatprep.subr.mxu0 0.0
    %2711 = vmatpush1.msra.mxu0 0.0
    %2712 = vmatprep.subr.mxu0 0.0
    %2713 = vmatpush1.msra.mxu0 0.0
    %2714 = vmatprep.subr.mxu0 0.0
    %2715 = vmatpush1.msra.mxu0 0.0
    %2716 = vmatprep.subr.mxu0 0.0
    %2717 = vmatpush1.msra.mxu0 0.0
    %2718 = vmatprep.subr.mxu0 0.0
    %2719 = vmatpush1.msra.mxu0 0.0
    %2720 = vmatprep.subr.mxu0 0.0
    %2721 = vmatpush1.msra.mxu0 0.0
    %2722 = vmatprep.subr.mxu0 0.0
    %2723 = vmatpush1.msra.mxu0 0.0
    %2724 = vmatprep.subr.mxu0 0.0
    %2725 = vmatpush1.msra.mxu0 0.0
    %2726 = vmatprep.subr.mxu0 0.0
    %2727 = vmatpush1.msra.mxu0 0.0
    %2728 = vmatprep.subr.mxu0 0.0
    %2729 = vmatpush1.msra.mxu0 0.0
    %2730 = vmatprep.subr.mxu0 0.0
    %2731 = vmatpush1.msra.mxu0 0.0
    %2732 = vmatprep.subr.mxu0 0.0
    %2733 = vmatpush1.msra.mxu0 0.0
    %2734 = vmatprep.subr.mxu0 0.0
    %2735 = vmatpush1.msra.mxu0 0.0
    %2736 = vmatprep.subr.mxu0 0.0
    %2737 = vmatpush1.msra.mxu0 0.0
    %2738 = vmatprep.subr.mxu0 0.0
    %2739 = vmatpush1.msra.mxu0 0.0
    %2740 = vmatprep.subr.mxu0 0.0
    %2741 = vmatpush1.msra.mxu0 0.0
    %2742 = vmatprep.subr.mxu0 0.0
    %2743 = vmatpush1.msra.mxu0 0.0
    %2744 = vmatprep.subr.mxu0 0.0
    %2745 = vmatpush1.msra.mxu0 0.0
    %2746 = vmatprep.subr.mxu0 0.0
    %2747 = vmatpush1.msra.mxu0 0.0
    %2748 = vmatprep.subr.mxu0 0.0
    %2749 = vmatpush1.msra.mxu0 0.0
    %2750 = vmatprep.subr.mxu0 0.0
    %2751 = vmatpush1.msra.mxu0 0.0
    %2752 = vmatprep.subr.mxu0 0.0
    %2753 = vmatpush1.msra.mxu0 0.0
    %2754 = vmatprep.subr.mxu0 0.0
    %2755 = vmatpush1.msra.mxu0 0.0
    %2756 = vmatprep.subr.mxu0 0.0
    %2757 = vmatpush1.msra.mxu0 0.0
    %2758 = vmatprep.mubr.f32.mxu0 0.0
    %2759 = vmatmul.mubr.f32.gmra.mrb[0].mxu0 %v2071
    %v2760 = vpop.f32.mrb[0].mxu0
    %v2761 = vadd.f32 0.0, %v2760
    %v2762 = vpop.f32.mrb[0].mxu0
    %v2763 = vadd.f32 0.0, %v2762
    %2764 = vmatprep.mubr.f32.mxu0 0.0
    %2765 = vmatmul.mubr.f32.gmra.mrb[0].mxu0 %v2074
    %v2766 = vpop.f32.mrb[0].mxu0
    %v2767 = vadd.f32 0.0, %v2766
    %v2768 = vpop.f32.mrb[0].mxu0
    %v2769 = vadd.f32 0.0, %v2768
    %2770 = vmatprep.mubr.f32.mxu0 0.0
    %2771 = vmatmul.mubr.f32.gmra.mrb[0].mxu0 %v2077
    %v2772 = vpop.f32.mrb[0].mxu0
    %v2773 = vadd.f32 0.0, %v2772
    %v2774 = vpop.f32.mrb[0].mxu0
    %v2775 = vadd.f32 0.0, %v2774
    %2776 = vmatprep.mubr.f32.mxu0 0.0
    %2777 = vmatmul.mubr.f32.gmra.mrb[0].mxu0 %v2080
    %v2778 = vpop.f32.mrb[0].mxu0
    %v2779 = vadd.f32 0.0, %v2778
    %v2780 = vpop.f32.mrb[0].mxu0
    %v2781 = vadd.f32 0.0, %v2780
    %2782 = vmatprep.mubr.f32.mxu0 0.0
    %2783 = vmatmul.mubr.f32.gmra.mrb[0].mxu0 %v2083
    %v2784 = vpop.f32.mrb[0].mxu0
    %v2785 = vadd.f32 0.0, %v2784
    %v2786 = vpop.f32.mrb[0].mxu0
    %v2787 = vadd.f32 0.0, %v2786
    %2788 = vmatprep.mubr.f32.mxu0 0.0
    %2789 = vmatmul.mubr.f32.gmra.mrb[0].mxu0 %v2086
    %v2790 = vpop.f32.mrb[0].mxu0
    %v2791 = vadd.f32 0.0, %v2790
    %v2792 = vpop.f32.mrb[0].mxu0
    %v2793 = vadd.f32 0.0, %v2792
    %2794 = vdwg.mxu0
    %2795 = vmatprep.subr.mxu0 %v2063
    %2796 = vmatpush1.msra.mxu0 %v2062
    %2797 = vmatprep.subr.mxu0 0.0
    %2798 = vmatpush1.msra.mxu0 0.0
    %2799 = vmatprep.subr.mxu0 0.0
    %2800 = vmatpush1.msra.mxu0 0.0
    %2801 = vmatprep.subr.mxu0 0.0
    %2802 = vmatpush1.msra.mxu0 0.0
    %2803 = vmatprep.subr.mxu0 0.0
    %2804 = vmatpush1.msra.mxu0 0.0
    %2805 = vmatprep.subr.mxu0 0.0
    %2806 = vmatpush1.msra.mxu0 0.0
    %2807 = vmatprep.subr.mxu0 0.0
    %2808 = vmatpush1.msra.mxu0 0.0
    %2809 = vmatprep.subr.mxu0 0.0
    %2810 = vmatpush1.msra.mxu0 0.0
    %2811 = vmatprep.subr.mxu0 0.0
    %2812 = vmatpush1.msra.mxu0 0.0
    %2813 = vmatprep.subr.mxu0 0.0
    %2814 = vmatpush1.msra.mxu0 0.0
    %2815 = vmatprep.subr.mxu0 0.0
    %2816 = vmatpush1.msra.mxu0 0.0
    %2817 = vmatprep.subr.mxu0 0.0
    %2818 = vmatpush1.msra.mxu0 0.0
    %2819 = vmatprep.subr.mxu0 0.0
    %2820 = vmatpush1.msra.mxu0 0.0
    %2821 = vmatprep.subr.mxu0 0.0
    %2822 = vmatpush1.msra.mxu0 0.0
    %2823 = vmatprep.subr.mxu0 0.0
    %2824 = vmatpush1.msra.mxu0 0.0
    %2825 = vmatprep.subr.mxu0 0.0
    %2826 = vmatpush1.msra.mxu0 0.0
    %2827 = vmatprep.subr.mxu0 0.0
    %2828 = vmatpush1.msra.mxu0 0.0
    %2829 = vmatprep.subr.mxu0 0.0
    %2830 = vmatpush1.msra.mxu0 0.0
    %2831 = vmatprep.subr.mxu0 0.0
    %2832 = vmatpush1.msra.mxu0 0.0
    %2833 = vmatprep.subr.mxu0 0.0
    %2834 = vmatpush1.msra.mxu0 0.0
    %2835 = vmatprep.subr.mxu0 0.0
    %2836 = vmatpush1.msra.mxu0 0.0
    %2837 = vmatprep.subr.mxu0 0.0
    %2838 = vmatpush1.msra.mxu0 0.0
    %2839 = vmatprep.subr.mxu0 0.0
    %2840 = vmatpush1.msra.mxu0 0.0
    %2841 = vmatprep.subr.mxu0 0.0
    %2842 = vmatpush1.msra.mxu0 0.0
    %2843 = vmatprep.subr.mxu0 0.0
    %2844 = vmatpush1.msra.mxu0 0.0
    %2845 = vmatprep.subr.mxu0 0.0
    %2846 = vmatpush1.msra.mxu0 0.0
    %2847 = vmatprep.subr.mxu0 0.0
    %2848 = vmatpush1.msra.mxu0 0.0
    %2849 = vmatprep.subr.mxu0 0.0
    %2850 = vmatpush1.msra.mxu0 0.0
    %2851 = vmatprep.subr.mxu0 0.0
    %2852 = vmatpush1.msra.mxu0 0.0
    %2853 = vmatprep.subr.mxu0 0.0
    %2854 = vmatpush1.msra.mxu0 0.0
    %2855 = vmatprep.subr.mxu0 0.0
    %2856 = vmatpush1.msra.mxu0 0.0
    %2857 = vmatprep.subr.mxu0 0.0
    %2858 = vmatpush1.msra.mxu0 0.0
    %2859 = vmatprep.mubr.f32.mxu0 0.0
    %2860 = vmatmul.mubr.f32.gmra.mrb[0].mxu0 %v2071
    %v2861 = vpop.f32.mrb[0].mxu0
    %v2862 = vadd.f32 0.0, %v2861
    %v2863 = vpop.f32.mrb[0].mxu0
    %v2864 = vadd.f32 0.0, %v2863
    %2865 = vmatprep.mubr.f32.mxu0 0.0
    %2866 = vmatmul.mubr.f32.gmra.mrb[0].mxu0 %v2074
    %v2867 = vpop.f32.mrb[0].mxu0
    %v2868 = vadd.f32 0.0, %v2867
    %v2869 = vpop.f32.mrb[0].mxu0
    %v2870 = vadd.f32 0.0, %v2869
    %2871 = vmatprep.mubr.f32.mxu0 0.0
    %2872 = vmatmul.mubr.f32.gmra.mrb[0].mxu0 %v2077
    %v2873 = vpop.f32.mrb[0].mxu0
    %v2874 = vadd.f32 0.0, %v2873
    %v2875 = vpop.f32.mrb[0].mxu0
    %v2876 = vadd.f32 0.0, %v2875
    %2877 = vmatprep.mubr.f32.mxu0 0.0
    %2878 = vmatmul.mubr.f32.gmra.mrb[0].mxu0 %v2080
    %v2879 = vpop.f32.mrb[0].mxu0
    %v2880 = vadd.f32 0.0, %v2879
    %v2881 = vpop.f32.mrb[0].mxu0
    %v2882 = vadd.f32 0.0, %v2881
    %2883 = vmatprep.mubr.f32.mxu0 0.0
    %2884 = vmatmul.mubr.f32.gmra.mrb[0].mxu0 %v2083
    %v2885 = vpop.f32.mrb[0].mxu0
    %v2886 = vadd.f32 0.0, %v2885
    %v2887 = vpop.f32.mrb[0].mxu0
    %v2888 = vadd.f32 0.0, %v2887
    %2889 = vmatprep.mubr.f32.mxu0 0.0
    %2890 = vmatmul.mubr.f32.gmra.mrb[0].mxu0 %v2086
    %v2891 = vpop.f32.mrb[0].mxu0
    %v2892 = vadd.f32 0.0, %v2891
    %v2893 = vpop.f32.mrb[0].mxu0
    %v2894 = vadd.f32 0.0, %v2893
    %2895 = vdwg.mxu0
    %2896 = vrot.lane.b32.xlu0 %v2155, 1
    %v2897 = vpop.permute.xlu0 %2896
    %2898 = vrot.lane.b32.xlu0 %v2161, 1
    %v2899 = vpop.permute.xlu0 %2898
    %2900 = vrot.lane.b32.xlu0 %v2157, 1
    %v2901 = vpop.permute.xlu0 %2900
    %2902 = vrot.lane.b32.xlu0 %v2163, 1
    %v2903 = vpop.permute.xlu0 %2902
    %2904 = vrot.lane.b32.xlu0 %v2256, 1
    %v2905 = vpop.permute.xlu0 %2904
    %2906 = vrot.lane.b32.xlu0 %v2262, 1
    %v2907 = vpop.permute.xlu0 %2906
    %2908 = vrot.lane.b32.xlu0 %v2258, 1
    %v2909 = vpop.permute.xlu0 %2908
    %2910 = vrot.lane.b32.xlu0 %v2264, 1
    %v2911 = vpop.permute.xlu0 %2910
    %2912 = vrot.lane.b32.xlu0 %v2357, 1
    %v2913 = vpop.permute.xlu0 %2912
    %2914 = vrot.lane.b32.xlu0 %v2363, 1
    %v2915 = vpop.permute.xlu0 %2914
    %2916 = vrot.lane.b32.xlu0 %v2359, 1
    %v2917 = vpop.permute.xlu0 %2916
    %2918 = vrot.lane.b32.xlu0 %v2365, 1
    %v2919 = vpop.permute.xlu0 %2918
    %2920 = vrot.lane.b32.xlu0 %v2458, 1
    %v2921 = vpop.permute.xlu0 %2920
    %2922 = vrot.lane.b32.xlu0 %v2464, 1
    %v2923 = vpop.permute.xlu0 %2922
    %2924 = vrot.lane.b32.xlu0 %v2460, 1
    %v2925 = vpop.permute.xlu0 %2924
    %2926 = vrot.lane.b32.xlu0 %v2466, 1
    %v2927 = vpop.permute.xlu0 %2926
    %2928 = vrot.lane.b32.xlu0 %v2559, 1
    %v2929 = vpop.permute.xlu0 %2928
    %2930 = vrot.lane.b32.xlu0 %v2565, 1
    %v2931 = vpop.permute.xlu0 %2930
    %2932 = vrot.lane.b32.xlu0 %v2561, 1
    %v2933 = vpop.permute.xlu0 %2932
    %2934 = vrot.lane.b32.xlu0 %v2567, 1
    %v2935 = vpop.permute.xlu0 %2934
    %2936 = vrot.lane.b32.xlu0 %v2660, 1
    %v2937 = vpop.permute.xlu0 %2936
    %2938 = vrot.lane.b32.xlu0 %v2666, 1
    %v2939 = vpop.permute.xlu0 %2938
    %2940 = vrot.lane.b32.xlu0 %v2662, 1
    %v2941 = vpop.permute.xlu0 %2940
    %2942 = vrot.lane.b32.xlu0 %v2668, 1
    %v2943 = vpop.permute.xlu0 %2942
    %2944 = vrot.lane.b32.xlu0 %v2761, 1
    %v2945 = vpop.permute.xlu0 %2944
    %2946 = vrot.lane.b32.xlu0 %v2767, 1
    %v2947 = vpop.permute.xlu0 %2946
    %2948 = vrot.lane.b32.xlu0 %v2763, 1
    %v2949 = vpop.permute.xlu0 %2948
    %2950 = vrot.lane.b32.xlu0 %v2769, 1
    %v2951 = vpop.permute.xlu0 %2950
    %2952 = vrot.lane.b32.xlu0 %v2862, 1
    %v2953 = vpop.permute.xlu0 %2952
    %2954 = vrot.lane.b32.xlu0 %v2868, 1
    %v2955 = vpop.permute.xlu0 %2954
    %2956 = vrot.lane.b32.xlu0 %v2864, 1
    %v2957 = vpop.permute.xlu0 %2956
    %2958 = vrot.lane.b32.xlu0 %v2870, 1
    %v2959 = vpop.permute.xlu0 %2958
    %v2960 = vsel %vm1021, %v2953, %v2957
    %v2961 = vsel %vm1021, %v2955, %v2959
    %v2962 = vsel %vm1021, %v2949, %v2953
    %v2963 = vsel %vm1021, %v2951, %v2955
    %v2964 = vsel %vm1021, %v2945, %v2949
    %v2965 = vsel %vm1021, %v2947, %v2951
    %v2966 = vsel %vm1021, %v2941, %v2945
    %v2967 = vsel %vm1021, %v2943, %v2947
    %v2968 = vsel %vm1021, %v2937, %v2941
    %v2969 = vsel %vm1021, %v2939, %v2943
    %v2970 = vsel %vm1021, %v2933, %v2937
    %v2971 = vsel %vm1021, %v2935, %v2939
    %v2972 = vsel %vm1021, %v2929, %v2933
    %v2973 = vsel %vm1021, %v2931, %v2935
    %v2974 = vsel %vm1021, %v2925, %v2929
    %v2975 = vsel %vm1021, %v2927, %v2931
    %v2976 = vsel %vm1021, %v2921, %v2925
    %v2977 = vsel %vm1021, %v2923, %v2927
    %v2978 = vsel %vm1021, %v2917, %v2921
    %v2979 = vsel %vm1021, %v2919, %v2923
    %v2980 = vsel %vm1021, %v2913, %v2917
    %v2981 = vsel %vm1021, %v2915, %v2919
    %v2982 = vsel %vm1021, %v2909, %v2913
    %v2983 = vsel %vm1021, %v2911, %v2915
    %v2984 = vsel %vm1021, %v2905, %v2909
    %v2985 = vsel %vm1021, %v2907, %v2911
    %v2986 = vsel %vm1021, %v2901, %v2905
    %v2987 = vsel %vm1021, %v2903, %v2907
    %v2988 = vsel %vm1021, %v2897, %v2901
    %v2989 = vsel %vm1021, %v2899, %v2903
    %v2990 = vsel %vm1021, %v2957, %v2897
    %v2991 = vsel %vm1021, %v2959, %v2899
    %v2992 = vmul.f32 %v2990, %v120
    %v2993 = vmul.f32 %v2988, %v121
    %v2994 = vmul.f32 %v2986, %v122
    %v2995 = vmul.f32 %v2984, %v123
    %v2996 = vmul.f32 %v2982, %v124
    %v2997 = vmul.f32 %v2980, %v125
    %v2998 = vmul.f32 %v2978, %v126
    %v2999 = vmul.f32 %v2976, %v127
    %v3000 = vmul.f32 %v2974, %v128
    %v3001 = vmul.f32 %v2972, %v129
    %v3002 = vmul.f32 %v2970, %v130
    %v3003 = vmul.f32 %v2968, %v131
    %v3004 = vmul.f32 %v2966, %v132
    %v3005 = vmul.f32 %v2964, %v133
    %v3006 = vmul.f32 %v2962, %v134
    %v3007 = vmul.f32 %v2960, %v135
    %v3008 = vmul.f32 %v2991, %v120
    %v3009 = vmul.f32 %v2989, %v121
    %v3010 = vmul.f32 %v2987, %v122
    %v3011 = vmul.f32 %v2985, %v123
    %v3012 = vmul.f32 %v2983, %v124
    %v3013 = vmul.f32 %v2981, %v125
    %v3014 = vmul.f32 %v2979, %v126
    %v3015 = vmul.f32 %v2977, %v127
    %v3016 = vmul.f32 %v2975, %v128
    %v3017 = vmul.f32 %v2973, %v129
    %v3018 = vmul.f32 %v2971, %v130
    %v3019 = vmul.f32 %v2969, %v131
    %v3020 = vmul.f32 %v2967, %v132
    %v3021 = vmul.f32 %v2965, %v133
    %v3022 = vmul.f32 %v2963, %v134
    %v3023 = vmul.f32 %v2961, %v135
    %v3024 = vadd.f32 %v2992, %v2167
    %v3025 = vadd.f32 %v2993, %v2169
    %v3026 = vadd.f32 %v2994, %v2268
    %v3027 = vadd.f32 %v2995, %v2270
    %v3028 = vadd.f32 %v2996, %v2369
    %v3029 = vadd.f32 %v2997, %v2371
    %v3030 = vadd.f32 %v2998, %v2470
    %v3031 = vadd.f32 %v2999, %v2472
    %v3032 = vadd.f32 %v3000, %v2571
    %v3033 = vadd.f32 %v3001, %v2573
    %v3034 = vadd.f32 %v3002, %v2672
    %v3035 = vadd.f32 %v3003, %v2674
    %v3036 = vadd.f32 %v3004, %v2773
    %v3037 = vadd.f32 %v3005, %v2775
    %v3038 = vadd.f32 %v3006, %v2874
    %v3039 = vadd.f32 %v3007, %v2876
    %v3040 = vadd.f32 %v3008, %v2173
    %v3041 = vadd.f32 %v3009, %v2175
    %v3042 = vadd.f32 %v3010, %v2274
    %v3043 = vadd.f32 %v3011, %v2276
    %v3044 = vadd.f32 %v3012, %v2375
    %v3045 = vadd.f32 %v3013, %v2377
    %v3046 = vadd.f32 %v3014, %v2476
    %v3047 = vadd.f32 %v3015, %v2478
    %v3048 = vadd.f32 %v3016, %v2577
    %v3049 = vadd.f32 %v3017, %v2579
    %v3050 = vadd.f32 %v3018, %v2678
    %v3051 = vadd.f32 %v3019, %v2680
    %v3052 = vadd.f32 %v3020, %v2779
    %v3053 = vadd.f32 %v3021, %v2781
    %v3054 = vadd.f32 %v3022, %v2880
    %v3055 = vadd.f32 %v3023, %v2882
    %3056 = vrot.lane.b32.xlu0 %v2179, 127
    %v3057 = vpop.permute.xlu0 %3056
    %3058 = vrot.lane.b32.xlu0 %v2185, 127
    %v3059 = vpop.permute.xlu0 %3058
    %3060 = vrot.lane.b32.xlu0 %v2181, 127
    %v3061 = vpop.permute.xlu0 %3060
    %3062 = vrot.lane.b32.xlu0 %v2187, 127
    %v3063 = vpop.permute.xlu0 %3062
    %3064 = vrot.lane.b32.xlu0 %v2280, 127
    %v3065 = vpop.permute.xlu0 %3064
    %3066 = vrot.lane.b32.xlu0 %v2286, 127
    %v3067 = vpop.permute.xlu0 %3066
    %3068 = vrot.lane.b32.xlu0 %v2282, 127
    %v3069 = vpop.permute.xlu0 %3068
    %3070 = vrot.lane.b32.xlu0 %v2288, 127
    %v3071 = vpop.permute.xlu0 %3070
    %3072 = vrot.lane.b32.xlu0 %v2381, 127
    %v3073 = vpop.permute.xlu0 %3072
    %3074 = vrot.lane.b32.xlu0 %v2387, 127
    %v3075 = vpop.permute.xlu0 %3074
    %3076 = vrot.lane.b32.xlu0 %v2383, 127
    %v3077 = vpop.permute.xlu0 %3076
    %3078 = vrot.lane.b32.xlu0 %v2389, 127
    %v3079 = vpop.permute.xlu0 %3078
    %3080 = vrot.lane.b32.xlu0 %v2482, 127
    %v3081 = vpop.permute.xlu0 %3080
    %3082 = vrot.lane.b32.xlu0 %v2488, 127
    %v3083 = vpop.permute.xlu0 %3082
    %3084 = vrot.lane.b32.xlu0 %v2484, 127
    %v3085 = vpop.permute.xlu0 %3084
    %3086 = vrot.lane.b32.xlu0 %v2490, 127
    %v3087 = vpop.permute.xlu0 %3086
    %3088 = vrot.lane.b32.xlu0 %v2583, 127
    %v3089 = vpop.permute.xlu0 %3088
    %3090 = vrot.lane.b32.xlu0 %v2589, 127
    %v3091 = vpop.permute.xlu0 %3090
    %3092 = vrot.lane.b32.xlu0 %v2585, 127
    %v3093 = vpop.permute.xlu0 %3092
    %3094 = vrot.lane.b32.xlu0 %v2591, 127
    %v3095 = vpop.permute.xlu0 %3094
    %3096 = vrot.lane.b32.xlu0 %v2684, 127
    %v3097 = vpop.permute.xlu0 %3096
    %3098 = vrot.lane.b32.xlu0 %v2690, 127
    %v3099 = vpop.permute.xlu0 %3098
    %3100 = vrot.lane.b32.xlu0 %v2686, 127
    %v3101 = vpop.permute.xlu0 %3100
    %3102 = vrot.lane.b32.xlu0 %v2692, 127
    %v3103 = vpop.permute.xlu0 %3102
    %3104 = vrot.lane.b32.xlu0 %v2785, 127
    %v3105 = vpop.permute.xlu0 %3104
    %3106 = vrot.lane.b32.xlu0 %v2791, 127
    %v3107 = vpop.permute.xlu0 %3106
    %3108 = vrot.lane.b32.xlu0 %v2787, 127
    %v3109 = vpop.permute.xlu0 %3108
    %3110 = vrot.lane.b32.xlu0 %v2793, 127
    %v3111 = vpop.permute.xlu0 %3110
    %3112 = vrot.lane.b32.xlu0 %v2886, 127
    %v3113 = vpop.permute.xlu0 %3112
    %3114 = vrot.lane.b32.xlu0 %v2892, 127
    %v3115 = vpop.permute.xlu0 %3114
    %3116 = vrot.lane.b32.xlu0 %v2888, 127
    %v3117 = vpop.permute.xlu0 %3116
    %3118 = vrot.lane.b32.xlu0 %v2894, 127
    %v3119 = vpop.permute.xlu0 %3118
    %v3120 = vsel %vm1102, %v3113, %v3117
    %v3121 = vsel %vm1102, %v3115, %v3119
    %v3122 = vsel %vm1102, %v3109, %v3113
    %v3123 = vsel %vm1102, %v3111, %v3115
    %v3124 = vsel %vm1102, %v3105, %v3109
    %v3125 = vsel %vm1102, %v3107, %v3111
    %v3126 = vsel %vm1102, %v3101, %v3105
    %v3127 = vsel %vm1102, %v3103, %v3107
    %v3128 = vsel %vm1102, %v3097, %v3101
    %v3129 = vsel %vm1102, %v3099, %v3103
    %v3130 = vsel %vm1102, %v3093, %v3097
    %v3131 = vsel %vm1102, %v3095, %v3099
    %v3132 = vsel %vm1102, %v3089, %v3093
    %v3133 = vsel %vm1102, %v3091, %v3095
    %v3134 = vsel %vm1102, %v3085, %v3089
    %v3135 = vsel %vm1102, %v3087, %v3091
    %v3136 = vsel %vm1102, %v3081, %v3085
    %v3137 = vsel %vm1102, %v3083, %v3087
    %v3138 = vsel %vm1102, %v3077, %v3081
    %v3139 = vsel %vm1102, %v3079, %v3083
    %v3140 = vsel %vm1102, %v3073, %v3077
    %v3141 = vsel %vm1102, %v3075, %v3079
    %v3142 = vsel %vm1102, %v3069, %v3073
    %v3143 = vsel %vm1102, %v3071, %v3075
    %v3144 = vsel %vm1102, %v3065, %v3069
    %v3145 = vsel %vm1102, %v3067, %v3071
    %v3146 = vsel %vm1102, %v3061, %v3065
    %v3147 = vsel %vm1102, %v3063, %v3067
    %v3148 = vsel %vm1102, %v3057, %v3061
    %v3149 = vsel %vm1102, %v3059, %v3063
    %v3150 = vsel %vm1102, %v3117, %v3057
    %v3151 = vsel %vm1102, %v3119, %v3059
    %v3152 = vmul.f32 %v3148, %v168
    %v3153 = vmul.f32 %v3146, %v169
    %v3154 = vmul.f32 %v3144, %v170
    %v3155 = vmul.f32 %v3142, %v171
    %v3156 = vmul.f32 %v3140, %v172
    %v3157 = vmul.f32 %v3138, %v173
    %v3158 = vmul.f32 %v3136, %v174
    %v3159 = vmul.f32 %v3134, %v175
    %v3160 = vmul.f32 %v3132, %v176
    %v3161 = vmul.f32 %v3130, %v177
    %v3162 = vmul.f32 %v3128, %v178
    %v3163 = vmul.f32 %v3126, %v179
    %v3164 = vmul.f32 %v3124, %v180
    %v3165 = vmul.f32 %v3122, %v181
    %v3166 = vmul.f32 %v3120, %v182
    %v3167 = vmul.f32 %v3150, %v183
    %v3168 = vmul.f32 %v3149, %v168
    %v3169 = vmul.f32 %v3147, %v169
    %v3170 = vmul.f32 %v3145, %v170
    %v3171 = vmul.f32 %v3143, %v171
    %v3172 = vmul.f32 %v3141, %v172
    %v3173 = vmul.f32 %v3139, %v173
    %v3174 = vmul.f32 %v3137, %v174
    %v3175 = vmul.f32 %v3135, %v175
    %v3176 = vmul.f32 %v3133, %v176
    %v3177 = vmul.f32 %v3131, %v177
    %v3178 = vmul.f32 %v3129, %v178
    %v3179 = vmul.f32 %v3127, %v179
    %v3180 = vmul.f32 %v3125, %v180
    %v3181 = vmul.f32 %v3123, %v181
    %v3182 = vmul.f32 %v3121, %v182
    %v3183 = vmul.f32 %v3151, %v183
    %v3184 = vadd.f32 %v3024, %v3152
    %v3185 = vadd.f32 %v3025, %v3153
    %v3186 = vadd.f32 %v3026, %v3154
    %v3187 = vadd.f32 %v3027, %v3155
    %v3188 = vadd.f32 %v3028, %v3156
    %v3189 = vadd.f32 %v3029, %v3157
    %v3190 = vadd.f32 %v3030, %v3158
    %v3191 = vadd.f32 %v3031, %v3159
    %v3192 = vadd.f32 %v3032, %v3160
    %v3193 = vadd.f32 %v3033, %v3161
    %v3194 = vadd.f32 %v3034, %v3162
    %v3195 = vadd.f32 %v3035, %v3163
    %v3196 = vadd.f32 %v3036, %v3164
    %v3197 = vadd.f32 %v3037, %v3165
    %v3198 = vadd.f32 %v3038, %v3166
    %v3199 = vadd.f32 %v3039, %v3167
    %v3200 = vadd.f32 %v3040, %v3168
    %v3201 = vadd.f32 %v3041, %v3169
    %v3202 = vadd.f32 %v3042, %v3170
    %v3203 = vadd.f32 %v3043, %v3171
    %v3204 = vadd.f32 %v3044, %v3172
    %v3205 = vadd.f32 %v3045, %v3173
    %v3206 = vadd.f32 %v3046, %v3174
    %v3207 = vadd.f32 %v3047, %v3175
    %v3208 = vadd.f32 %v3048, %v3176
    %v3209 = vadd.f32 %v3049, %v3177
    %v3210 = vadd.f32 %v3050, %v3178
    %v3211 = vadd.f32 %v3051, %v3179
    %v3212 = vadd.f32 %v3052, %v3180
    %v3213 = vadd.f32 %v3053, %v3181
    %v3214 = vadd.f32 %v3054, %v3182
    %v3215 = vadd.f32 %v3055, %v3183
    %v3216 = vld [vmem:[%s6] sm:$0xff]
    %v3217 = vld [vmem:[%s6 + $0x8] sm:$0xff]
    %3219 = vset.pattern.permute.xlu0 0
    %3220 = vperm.xlu0 %3219, %v3216
    %v3221 = vpop.permute.xlu0 %3220
    %3224 = vset.pattern.permute.xlu0 0
    %3225 = vperm.xlu0 %3224, %v3217
    %v3226 = vpop.permute.xlu0 %3225
    %v3228 = vadd.f32 %v3184, %v3221
    %v3229 = vadd.f32 %v3185, %v3221
    %v3230 = vadd.f32 %v3186, %v3221
    %v3231 = vadd.f32 %v3187, %v3221
    %v3232 = vadd.f32 %v3188, %v3221
    %v3233 = vadd.f32 %v3189, %v3221
    %v3234 = vadd.f32 %v3190, %v3221
    %v3235 = vadd.f32 %v3191, %v3221
    %v3236 = vadd.f32 %v3192, %v3221
    %v3237 = vadd.f32 %v3193, %v3221
    %v3238 = vadd.f32 %v3194, %v3221
    %v3239 = vadd.f32 %v3195, %v3221
    %v3240 = vadd.f32 %v3196, %v3221
    %v3241 = vadd.f32 %v3197, %v3221
    %v3242 = vadd.f32 %v3198, %v3221
    %v3243 = vadd.f32 %v3199, %v3221
    %v3244 = vadd.f32 %v3200, %v3226
    %v3245 = vadd.f32 %v3201, %v3226
    %v3246 = vadd.f32 %v3202, %v3226
    %v3247 = vadd.f32 %v3203, %v3226
    %v3248 = vadd.f32 %v3204, %v3226
    %v3249 = vadd.f32 %v3205, %v3226
    %v3250 = vadd.f32 %v3206, %v3226
    %v3251 = vadd.f32 %v3207, %v3226
    %v3252 = vadd.f32 %v3208, %v3226
    %v3253 = vadd.f32 %v3209, %v3226
    %v3254 = vadd.f32 %v3210, %v3226
    %v3255 = vadd.f32 %v3211, %v3226
    %v3256 = vadd.f32 %v3212, %v3226
    %v3257 = vadd.f32 %v3213, %v3226
    %v3258 = vadd.f32 %v3214, %v3226
    %v3259 = vadd.f32 %v3215, %v3226
    %v3260 = vmax.f32 %v3228, 0.0
    %v3261 = vmax.f32 %v3229, 0.0
    %v3262 = vmax.f32 %v3230, 0.0
    %v3263 = vmax.f32 %v3231, 0.0
    %v3264 = vmax.f32 %v3232, 0.0
    %v3265 = vmax.f32 %v3233, 0.0
    %v3266 = vmax.f32 %v3234, 0.0
    %v3267 = vmax.f32 %v3235, 0.0
    %v3268 = vmax.f32 %v3236, 0.0
    %v3269 = vmax.f32 %v3237, 0.0
    %v3270 = vmax.f32 %v3238, 0.0
    %v3271 = vmax.f32 %v3239, 0.0
    %v3272 = vmax.f32 %v3240, 0.0
    %v3273 = vmax.f32 %v3241, 0.0
    %v3274 = vmax.f32 %v3242, 0.0
    %v3275 = vmax.f32 %v3243, 0.0
    %v3276 = vmax.f32 %v3244, 0.0
    %v3277 = vmax.f32 %v3245, 0.0
    %v3278 = vmax.f32 %v3246, 0.0
    %v3279 = vmax.f32 %v3247, 0.0
    %v3280 = vmax.f32 %v3248, 0.0
    %v3281 = vmax.f32 %v3249, 0.0
    %v3282 = vmax.f32 %v3250, 0.0
    %v3283 = vmax.f32 %v3251, 0.0
    %v3284 = vmax.f32 %v3252, 0.0
    %v3285 = vmax.f32 %v3253, 0.0
    %v3286 = vmax.f32 %v3254, 0.0
    %v3287 = vmax.f32 %v3255, 0.0
    %v3288 = vmax.f32 %v3256, 0.0
    %v3289 = vmax.f32 %v3257, 0.0
    %v3290 = vmax.f32 %v3258, 0.0
    %v3291 = vmax.f32 %v3259, 0.0
    %v3292 = vld [vmem:[%s7] sm:$0xff]
    %v3293 = vld [vmem:[%s7 + $0x8] sm:$0xff]
    %v3294 = vld [vmem:[%s7 + $0x10] sm:$0xff]
    %v3295 = vld [vmem:[%s7 + $0x18] sm:$0xff]
    %v3296 = vld [vmem:[%s7 + $0x20] sm:$0xff]
    %v3297 = vld [vmem:[%s7 + $0x28] sm:$0xff]
    %vm3298 = vcmask 130048
    %v3300 = vsel %vm3298, %v3292, 0
    %v3303 = vsel %vm3298, %v3293, 0
    %v3306 = vsel %vm3298, %v3294, 0
    %v3309 = vsel %vm3298, %v3295, 0
    %v3312 = vsel %vm3298, %v3296, 0
    %v3315 = vsel %vm3298, %v3297, 0
    %3317 = vmatprep.subr.mxu0 %v3261
    %3318 = vmatpush1.msra.mxu0 %v3260
    %3319 = vmatprep.subr.mxu0 %v3277
    %3320 = vmatpush1.msra.mxu0 %v3276
    %3321 = vmatprep.subr.mxu0 0.0
    %3322 = vmatpush1.msra.mxu0 0.0
    %3323 = vmatprep.subr.mxu0 0.0
    %3324 = vmatpush1.msra.mxu0 0.0
    %3325 = vmatprep.subr.mxu0 0.0
    %3326 = vmatpush1.msra.mxu0 0.0
    %3327 = vmatprep.subr.mxu0 0.0
    %3328 = vmatpush1.msra.mxu0 0.0
    %3329 = vmatprep.subr.mxu0 0.0
    %3330 = vmatpush1.msra.mxu0 0.0
    %3331 = vmatprep.subr.mxu0 0.0
    %3332 = vmatpush1.msra.mxu0 0.0
    %3333 = vmatprep.subr.mxu0 0.0
    %3334 = vmatpush1.msra.mxu0 0.0
    %3335 = vmatprep.subr.mxu0 0.0
    %3336 = vmatpush1.msra.mxu0 0.0
    %3337 = vmatprep.subr.mxu0 0.0
    %3338 = vmatpush1.msra.mxu0 0.0
    %3339 = vmatprep.subr.mxu0 0.0
    %3340 = vmatpush1.msra.mxu0 0.0
    %3341 = vmatprep.subr.mxu0 0.0
    %3342 = vmatpush1.msra.mxu0 0.0
    %3343 = vmatprep.subr.mxu0 0.0
    %3344 = vmatpush1.msra.mxu0 0.0
    %3345 = vmatprep.subr.mxu0 0.0
    %3346 = vmatpush1.msra.mxu0 0.0
    %3347 = vmatprep.subr.mxu0 0.0
    %3348 = vmatpush1.msra.mxu0 0.0
    %3349 = vmatprep.subr.mxu0 0.0
    %3350 = vmatpush1.msra.mxu0 0.0
    %3351 = vmatprep.subr.mxu0 0.0
    %3352 = vmatpush1.msra.mxu0 0.0
    %3353 = vmatprep.subr.mxu0 0.0
    %3354 = vmatpush1.msra.mxu0 0.0
    %3355 = vmatprep.subr.mxu0 0.0
    %3356 = vmatpush1.msra.mxu0 0.0
    %3357 = vmatprep.subr.mxu0 0.0
    %3358 = vmatpush1.msra.mxu0 0.0
    %3359 = vmatprep.subr.mxu0 0.0
    %3360 = vmatpush1.msra.mxu0 0.0
    %3361 = vmatprep.subr.mxu0 0.0
    %3362 = vmatpush1.msra.mxu0 0.0
    %3363 = vmatprep.subr.mxu0 0.0
    %3364 = vmatpush1.msra.mxu0 0.0
    %3365 = vmatprep.subr.mxu0 0.0
    %3366 = vmatpush1.msra.mxu0 0.0
    %3367 = vmatprep.subr.mxu0 0.0
    %3368 = vmatpush1.msra.mxu0 0.0
    %3369 = vmatprep.subr.mxu0 0.0
    %3370 = vmatpush1.msra.mxu0 0.0
    %3371 = vmatprep.subr.mxu0 0.0
    %3372 = vmatpush1.msra.mxu0 0.0
    %3373 = vmatprep.subr.mxu0 0.0
    %3374 = vmatpush1.msra.mxu0 0.0
    %3375 = vmatprep.subr.mxu0 0.0
    %3376 = vmatpush1.msra.mxu0 0.0
    %3377 = vmatprep.subr.mxu0 0.0
    %3378 = vmatpush1.msra.mxu0 0.0
    %3379 = vmatprep.subr.mxu0 0.0
    %3380 = vmatpush1.msra.mxu0 0.0
    %3381 = vmatprep.mubr.f32.mxu0 0.0
    %3382 = vmatmul.mubr.f32.gmra.mrb[0].mxu0 %v3300
    %v3383 = vpop.f32.mrb[0].mxu0
    %v3384 = vadd.f32 0.0, %v3383
    %v3385 = vpop.f32.mrb[0].mxu0
    %v3386 = vadd.f32 0.0, %v3385
    %3387 = vmatprep.mubr.f32.mxu0 0.0
    %3388 = vmatmul.mubr.f32.gmra.mrb[0].mxu0 %v3303
    %v3389 = vpop.f32.mrb[0].mxu0
    %v3390 = vadd.f32 0.0, %v3389
    %v3391 = vpop.f32.mrb[0].mxu0
    %v3392 = vadd.f32 0.0, %v3391
    %3393 = vmatprep.mubr.f32.mxu0 0.0
    %3394 = vmatmul.mubr.f32.gmra.mrb[0].mxu0 %v3306
    %v3395 = vpop.f32.mrb[0].mxu0
    %v3396 = vadd.f32 0.0, %v3395
    %v3397 = vpop.f32.mrb[0].mxu0
    %v3398 = vadd.f32 0.0, %v3397
    %3399 = vmatprep.mubr.f32.mxu0 0.0
    %3400 = vmatmul.mubr.f32.gmra.mrb[0].mxu0 %v3309
    %v3401 = vpop.f32.mrb[0].mxu0
    %v3402 = vadd.f32 0.0, %v3401
    %v3403 = vpop.f32.mrb[0].mxu0
    %v3404 = vadd.f32 0.0, %v3403
    %3405 = vmatprep.mubr.f32.mxu0 0.0
    %3406 = vmatmul.mubr.f32.gmra.mrb[0].mxu0 %v3312
    %v3407 = vpop.f32.mrb[0].mxu0
    %v3408 = vadd.f32 0.0, %v3407
    %v3409 = vpop.f32.mrb[0].mxu0
    %v3410 = vadd.f32 0.0, %v3409
    %3411 = vmatprep.mubr.f32.mxu0 0.0
    %3412 = vmatmul.mubr.f32.gmra.mrb[0].mxu0 %v3315
    %v3413 = vpop.f32.mrb[0].mxu0
    %v3414 = vadd.f32 0.0, %v3413
    %v3415 = vpop.f32.mrb[0].mxu0
    %v3416 = vadd.f32 0.0, %v3415
    %3417 = vdwg.mxu0
    %3418 = vmatprep.subr.mxu0 %v3263
    %3419 = vmatpush1.msra.mxu0 %v3262
    %3420 = vmatprep.subr.mxu0 %v3279
    %3421 = vmatpush1.msra.mxu0 %v3278
    %3422 = vmatprep.subr.mxu0 0.0
    %3423 = vmatpush1.msra.mxu0 0.0
    %3424 = vmatprep.subr.mxu0 0.0
    %3425 = vmatpush1.msra.mxu0 0.0
    %3426 = vmatprep.subr.mxu0 0.0
    %3427 = vmatpush1.msra.mxu0 0.0
    %3428 = vmatprep.subr.mxu0 0.0
    %3429 = vmatpush1.msra.mxu0 0.0
    %3430 = vmatprep.subr.mxu0 0.0
    %3431 = vmatpush1.msra.mxu0 0.0
    %3432 = vmatprep.subr.mxu0 0.0
    %3433 = vmatpush1.msra.mxu0 0.0
    %3434 = vmatprep.subr.mxu0 0.0
    %3435 = vmatpush1.msra.mxu0 0.0
    %3436 = vmatprep.subr.mxu0 0.0
    %3437 = vmatpush1.msra.mxu0 0.0
    %3438 = vmatprep.subr.mxu0 0.0
    %3439 = vmatpush1.msra.mxu0 0.0
    %3440 = vmatprep.subr.mxu0 0.0
    %3441 = vmatpush1.msra.mxu0 0.0
    %3442 = vmatprep.subr.mxu0 0.0
    %3443 = vmatpush1.msra.mxu0 0.0
    %3444 = vmatprep.subr.mxu0 0.0
    %3445 = vmatpush1.msra.mxu0 0.0
    %3446 = vmatprep.subr.mxu0 0.0
    %3447 = vmatpush1.msra.mxu0 0.0
    %3448 = vmatprep.subr.mxu0 0.0
    %3449 = vmatpush1.msra.mxu0 0.0
    %3450 = vmatprep.subr.mxu0 0.0
    %3451 = vmatpush1.msra.mxu0 0.0
    %3452 = vmatprep.subr.mxu0 0.0
    %3453 = vmatpush1.msra.mxu0 0.0
    %3454 = vmatprep.subr.mxu0 0.0
    %3455 = vmatpush1.msra.mxu0 0.0
    %3456 = vmatprep.subr.mxu0 0.0
    %3457 = vmatpush1.msra.mxu0 0.0
    %3458 = vmatprep.subr.mxu0 0.0
    %3459 = vmatpush1.msra.mxu0 0.0
    %3460 = vmatprep.subr.mxu0 0.0
    %3461 = vmatpush1.msra.mxu0 0.0
    %3462 = vmatprep.subr.mxu0 0.0
    %3463 = vmatpush1.msra.mxu0 0.0
    %3464 = vmatprep.subr.mxu0 0.0
    %3465 = vmatpush1.msra.mxu0 0.0
    %3466 = vmatprep.subr.mxu0 0.0
    %3467 = vmatpush1.msra.mxu0 0.0
    %3468 = vmatprep.subr.mxu0 0.0
    %3469 = vmatpush1.msra.mxu0 0.0
    %3470 = vmatprep.subr.mxu0 0.0
    %3471 = vmatpush1.msra.mxu0 0.0
    %3472 = vmatprep.subr.mxu0 0.0
    %3473 = vmatpush1.msra.mxu0 0.0
    %3474 = vmatprep.subr.mxu0 0.0
    %3475 = vmatpush1.msra.mxu0 0.0
    %3476 = vmatprep.subr.mxu0 0.0
    %3477 = vmatpush1.msra.mxu0 0.0
    %3478 = vmatprep.subr.mxu0 0.0
    %3479 = vmatpush1.msra.mxu0 0.0
    %3480 = vmatprep.subr.mxu0 0.0
    %3481 = vmatpush1.msra.mxu0 0.0
    %3482 = vmatprep.mubr.f32.mxu0 0.0
    %3483 = vmatmul.mubr.f32.gmra.mrb[0].mxu0 %v3300
    %v3484 = vpop.f32.mrb[0].mxu0
    %v3485 = vadd.f32 0.0, %v3484
    %v3486 = vpop.f32.mrb[0].mxu0
    %v3487 = vadd.f32 0.0, %v3486
    %3488 = vmatprep.mubr.f32.mxu0 0.0
    %3489 = vmatmul.mubr.f32.gmra.mrb[0].mxu0 %v3303
    %v3490 = vpop.f32.mrb[0].mxu0
    %v3491 = vadd.f32 0.0, %v3490
    %v3492 = vpop.f32.mrb[0].mxu0
    %v3493 = vadd.f32 0.0, %v3492
    %3494 = vmatprep.mubr.f32.mxu0 0.0
    %3495 = vmatmul.mubr.f32.gmra.mrb[0].mxu0 %v3306
    %v3496 = vpop.f32.mrb[0].mxu0
    %v3497 = vadd.f32 0.0, %v3496
    %v3498 = vpop.f32.mrb[0].mxu0
    %v3499 = vadd.f32 0.0, %v3498
    %3500 = vmatprep.mubr.f32.mxu0 0.0
    %3501 = vmatmul.mubr.f32.gmra.mrb[0].mxu0 %v3309
    %v3502 = vpop.f32.mrb[0].mxu0
    %v3503 = vadd.f32 0.0, %v3502
    %v3504 = vpop.f32.mrb[0].mxu0
    %v3505 = vadd.f32 0.0, %v3504
    %3506 = vmatprep.mubr.f32.mxu0 0.0
    %3507 = vmatmul.mubr.f32.gmra.mrb[0].mxu0 %v3312
    %v3508 = vpop.f32.mrb[0].mxu0
    %v3509 = vadd.f32 0.0, %v3508
    %v3510 = vpop.f32.mrb[0].mxu0
    %v3511 = vadd.f32 0.0, %v3510
    %3512 = vmatprep.mubr.f32.mxu0 0.0
    %3513 = vmatmul.mubr.f32.gmra.mrb[0].mxu0 %v3315
    %v3514 = vpop.f32.mrb[0].mxu0
    %v3515 = vadd.f32 0.0, %v3514
    %v3516 = vpop.f32.mrb[0].mxu0
    %v3517 = vadd.f32 0.0, %v3516
    %3518 = vdwg.mxu0
    %3519 = vmatprep.subr.mxu0 %v3265
    %3520 = vmatpush1.msra.mxu0 %v3264
    %3521 = vmatprep.subr.mxu0 %v3281
    %3522 = vmatpush1.msra.mxu0 %v3280
    %3523 = vmatprep.subr.mxu0 0.0
    %3524 = vmatpush1.msra.mxu0 0.0
    %3525 = vmatprep.subr.mxu0 0.0
    %3526 = vmatpush1.msra.mxu0 0.0
    %3527 = vmatprep.subr.mxu0 0.0
    %3528 = vmatpush1.msra.mxu0 0.0
    %3529 = vmatprep.subr.mxu0 0.0
    %3530 = vmatpush1.msra.mxu0 0.0
    %3531 = vmatprep.subr.mxu0 0.0
    %3532 = vmatpush1.msra.mxu0 0.0
    %3533 = vmatprep.subr.mxu0 0.0
    %3534 = vmatpush1.msra.mxu0 0.0
    %3535 = vmatprep.subr.mxu0 0.0
    %3536 = vmatpush1.msra.mxu0 0.0
    %3537 = vmatprep.subr.mxu0 0.0
    %3538 = vmatpush1.msra.mxu0 0.0
    %3539 = vmatprep.subr.mxu0 0.0
    %3540 = vmatpush1.msra.mxu0 0.0
    %3541 = vmatprep.subr.mxu0 0.0
    %3542 = vmatpush1.msra.mxu0 0.0
    %3543 = vmatprep.subr.mxu0 0.0
    %3544 = vmatpush1.msra.mxu0 0.0
    %3545 = vmatprep.subr.mxu0 0.0
    %3546 = vmatpush1.msra.mxu0 0.0
    %3547 = vmatprep.subr.mxu0 0.0
    %3548 = vmatpush1.msra.mxu0 0.0
    %3549 = vmatprep.subr.mxu0 0.0
    %3550 = vmatpush1.msra.mxu0 0.0
    %3551 = vmatprep.subr.mxu0 0.0
    %3552 = vmatpush1.msra.mxu0 0.0
    %3553 = vmatprep.subr.mxu0 0.0
    %3554 = vmatpush1.msra.mxu0 0.0
    %3555 = vmatprep.subr.mxu0 0.0
    %3556 = vmatpush1.msra.mxu0 0.0
    %3557 = vmatprep.subr.mxu0 0.0
    %3558 = vmatpush1.msra.mxu0 0.0
    %3559 = vmatprep.subr.mxu0 0.0
    %3560 = vmatpush1.msra.mxu0 0.0
    %3561 = vmatprep.subr.mxu0 0.0
    %3562 = vmatpush1.msra.mxu0 0.0
    %3563 = vmatprep.subr.mxu0 0.0
    %3564 = vmatpush1.msra.mxu0 0.0
    %3565 = vmatprep.subr.mxu0 0.0
    %3566 = vmatpush1.msra.mxu0 0.0
    %3567 = vmatprep.subr.mxu0 0.0
    %3568 = vmatpush1.msra.mxu0 0.0
    %3569 = vmatprep.subr.mxu0 0.0
    %3570 = vmatpush1.msra.mxu0 0.0
    %3571 = vmatprep.subr.mxu0 0.0
    %3572 = vmatpush1.msra.mxu0 0.0
    %3573 = vmatprep.subr.mxu0 0.0
    %3574 = vmatpush1.msra.mxu0 0.0
    %3575 = vmatprep.subr.mxu0 0.0
    %3576 = vmatpush1.msra.mxu0 0.0
    %3577 = vmatprep.subr.mxu0 0.0
    %3578 = vmatpush1.msra.mxu0 0.0
    %3579 = vmatprep.subr.mxu0 0.0
    %3580 = vmatpush1.msra.mxu0 0.0
    %3581 = vmatprep.subr.mxu0 0.0
    %3582 = vmatpush1.msra.mxu0 0.0
    %3583 = vmatprep.mubr.f32.mxu0 0.0
    %3584 = vmatmul.mubr.f32.gmra.mrb[0].mxu0 %v3300
    %v3585 = vpop.f32.mrb[0].mxu0
    %v3586 = vadd.f32 0.0, %v3585
    %v3587 = vpop.f32.mrb[0].mxu0
    %v3588 = vadd.f32 0.0, %v3587
    %3589 = vmatprep.mubr.f32.mxu0 0.0
    %3590 = vmatmul.mubr.f32.gmra.mrb[0].mxu0 %v3303
    %v3591 = vpop.f32.mrb[0].mxu0
    %v3592 = vadd.f32 0.0, %v3591
    %v3593 = vpop.f32.mrb[0].mxu0
    %v3594 = vadd.f32 0.0, %v3593
    %3595 = vmatprep.mubr.f32.mxu0 0.0
    %3596 = vmatmul.mubr.f32.gmra.mrb[0].mxu0 %v3306
    %v3597 = vpop.f32.mrb[0].mxu0
    %v3598 = vadd.f32 0.0, %v3597
    %v3599 = vpop.f32.mrb[0].mxu0
    %v3600 = vadd.f32 0.0, %v3599
    %3601 = vmatprep.mubr.f32.mxu0 0.0
    %3602 = vmatmul.mubr.f32.gmra.mrb[0].mxu0 %v3309
    %v3603 = vpop.f32.mrb[0].mxu0
    %v3604 = vadd.f32 0.0, %v3603
    %v3605 = vpop.f32.mrb[0].mxu0
    %v3606 = vadd.f32 0.0, %v3605
    %3607 = vmatprep.mubr.f32.mxu0 0.0
    %3608 = vmatmul.mubr.f32.gmra.mrb[0].mxu0 %v3312
    %v3609 = vpop.f32.mrb[0].mxu0
    %v3610 = vadd.f32 0.0, %v3609
    %v3611 = vpop.f32.mrb[0].mxu0
    %v3612 = vadd.f32 0.0, %v3611
    %3613 = vmatprep.mubr.f32.mxu0 0.0
    %3614 = vmatmul.mubr.f32.gmra.mrb[0].mxu0 %v3315
    %v3615 = vpop.f32.mrb[0].mxu0
    %v3616 = vadd.f32 0.0, %v3615
    %v3617 = vpop.f32.mrb[0].mxu0
    %v3618 = vadd.f32 0.0, %v3617
    %3619 = vdwg.mxu0
    %3620 = vmatprep.subr.mxu0 %v3267
    %3621 = vmatpush1.msra.mxu0 %v3266
    %3622 = vmatprep.subr.mxu0 %v3283
    %3623 = vmatpush1.msra.mxu0 %v3282
    %3624 = vmatprep.subr.mxu0 0.0
    %3625 = vmatpush1.msra.mxu0 0.0
    %3626 = vmatprep.subr.mxu0 0.0
    %3627 = vmatpush1.msra.mxu0 0.0
    %3628 = vmatprep.subr.mxu0 0.0
    %3629 = vmatpush1.msra.mxu0 0.0
    %3630 = vmatprep.subr.mxu0 0.0
    %3631 = vmatpush1.msra.mxu0 0.0
    %3632 = vmatprep.subr.mxu0 0.0
    %3633 = vmatpush1.msra.mxu0 0.0
    %3634 = vmatprep.subr.mxu0 0.0
    %3635 = vmatpush1.msra.mxu0 0.0
    %3636 = vmatprep.subr.mxu0 0.0
    %3637 = vmatpush1.msra.mxu0 0.0
    %3638 = vmatprep.subr.mxu0 0.0
    %3639 = vmatpush1.msra.mxu0 0.0
    %3640 = vmatprep.subr.mxu0 0.0
    %3641 = vmatpush1.msra.mxu0 0.0
    %3642 = vmatprep.subr.mxu0 0.0
    %3643 = vmatpush1.msra.mxu0 0.0
    %3644 = vmatprep.subr.mxu0 0.0
    %3645 = vmatpush1.msra.mxu0 0.0
    %3646 = vmatprep.subr.mxu0 0.0
    %3647 = vmatpush1.msra.mxu0 0.0
    %3648 = vmatprep.subr.mxu0 0.0
    %3649 = vmatpush1.msra.mxu0 0.0
    %3650 = vmatprep.subr.mxu0 0.0
    %3651 = vmatpush1.msra.mxu0 0.0
    %3652 = vmatprep.subr.mxu0 0.0
    %3653 = vmatpush1.msra.mxu0 0.0
    %3654 = vmatprep.subr.mxu0 0.0
    %3655 = vmatpush1.msra.mxu0 0.0
    %3656 = vmatprep.subr.mxu0 0.0
    %3657 = vmatpush1.msra.mxu0 0.0
    %3658 = vmatprep.subr.mxu0 0.0
    %3659 = vmatpush1.msra.mxu0 0.0
    %3660 = vmatprep.subr.mxu0 0.0
    %3661 = vmatpush1.msra.mxu0 0.0
    %3662 = vmatprep.subr.mxu0 0.0
    %3663 = vmatpush1.msra.mxu0 0.0
    %3664 = vmatprep.subr.mxu0 0.0
    %3665 = vmatpush1.msra.mxu0 0.0
    %3666 = vmatprep.subr.mxu0 0.0
    %3667 = vmatpush1.msra.mxu0 0.0
    %3668 = vmatprep.subr.mxu0 0.0
    %3669 = vmatpush1.msra.mxu0 0.0
    %3670 = vmatprep.subr.mxu0 0.0
    %3671 = vmatpush1.msra.mxu0 0.0
    %3672 = vmatprep.subr.mxu0 0.0
    %3673 = vmatpush1.msra.mxu0 0.0
    %3674 = vmatprep.subr.mxu0 0.0
    %3675 = vmatpush1.msra.mxu0 0.0
    %3676 = vmatprep.subr.mxu0 0.0
    %3677 = vmatpush1.msra.mxu0 0.0
    %3678 = vmatprep.subr.mxu0 0.0
    %3679 = vmatpush1.msra.mxu0 0.0
    %3680 = vmatprep.subr.mxu0 0.0
    %3681 = vmatpush1.msra.mxu0 0.0
    %3682 = vmatprep.subr.mxu0 0.0
    %3683 = vmatpush1.msra.mxu0 0.0
    %3684 = vmatprep.mubr.f32.mxu0 0.0
    %3685 = vmatmul.mubr.f32.gmra.mrb[0].mxu0 %v3300
    %v3686 = vpop.f32.mrb[0].mxu0
    %v3687 = vadd.f32 0.0, %v3686
    %v3688 = vpop.f32.mrb[0].mxu0
    %v3689 = vadd.f32 0.0, %v3688
    %3690 = vmatprep.mubr.f32.mxu0 0.0
    %3691 = vmatmul.mubr.f32.gmra.mrb[0].mxu0 %v3303
    %v3692 = vpop.f32.mrb[0].mxu0
    %v3693 = vadd.f32 0.0, %v3692
    %v3694 = vpop.f32.mrb[0].mxu0
    %v3695 = vadd.f32 0.0, %v3694
    %3696 = vmatprep.mubr.f32.mxu0 0.0
    %3697 = vmatmul.mubr.f32.gmra.mrb[0].mxu0 %v3306
    %v3698 = vpop.f32.mrb[0].mxu0
    %v3699 = vadd.f32 0.0, %v3698
    %v3700 = vpop.f32.mrb[0].mxu0
    %v3701 = vadd.f32 0.0, %v3700
    %3702 = vmatprep.mubr.f32.mxu0 0.0
    %3703 = vmatmul.mubr.f32.gmra.mrb[0].mxu0 %v3309
    %v3704 = vpop.f32.mrb[0].mxu0
    %v3705 = vadd.f32 0.0, %v3704
    %v3706 = vpop.f32.mrb[0].mxu0
    %v3707 = vadd.f32 0.0, %v3706
    %3708 = vmatprep.mubr.f32.mxu0 0.0
    %3709 = vmatmul.mubr.f32.gmra.mrb[0].mxu0 %v3312
    %v3710 = vpop.f32.mrb[0].mxu0
    %v3711 = vadd.f32 0.0, %v3710
    %v3712 = vpop.f32.mrb[0].mxu0
    %v3713 = vadd.f32 0.0, %v3712
    %3714 = vmatprep.mubr.f32.mxu0 0.0
    %3715 = vmatmul.mubr.f32.gmra.mrb[0].mxu0 %v3315
    %v3716 = vpop.f32.mrb[0].mxu0
    %v3717 = vadd.f32 0.0, %v3716
    %v3718 = vpop.f32.mrb[0].mxu0
    %v3719 = vadd.f32 0.0, %v3718
    %3720 = vdwg.mxu0
    %3721 = vmatprep.subr.mxu0 %v3269
    %3722 = vmatpush1.msra.mxu0 %v3268
    %3723 = vmatprep.subr.mxu0 %v3285
    %3724 = vmatpush1.msra.mxu0 %v3284
    %3725 = vmatprep.subr.mxu0 0.0
    %3726 = vmatpush1.msra.mxu0 0.0
    %3727 = vmatprep.subr.mxu0 0.0
    %3728 = vmatpush1.msra.mxu0 0.0
    %3729 = vmatprep.subr.mxu0 0.0
    %3730 = vmatpush1.msra.mxu0 0.0
    %3731 = vmatprep.subr.mxu0 0.0
    %3732 = vmatpush1.msra.mxu0 0.0
    %3733 = vmatprep.subr.mxu0 0.0
    %3734 = vmatpush1.msra.mxu0 0.0
    %3735 = vmatprep.subr.mxu0 0.0
    %3736 = vmatpush1.msra.mxu0 0.0
    %3737 = vmatprep.subr.mxu0 0.0
    %3738 = vmatpush1.msra.mxu0 0.0
    %3739 = vmatprep.subr.mxu0 0.0
    %3740 = vmatpush1.msra.mxu0 0.0
    %3741 = vmatprep.subr.mxu0 0.0
    %3742 = vmatpush1.msra.mxu0 0.0
    %3743 = vmatprep.subr.mxu0 0.0
    %3744 = vmatpush1.msra.mxu0 0.0
    %3745 = vmatprep.subr.mxu0 0.0
    %3746 = vmatpush1.msra.mxu0 0.0
    %3747 = vmatprep.subr.mxu0 0.0
    %3748 = vmatpush1.msra.mxu0 0.0
    %3749 = vmatprep.subr.mxu0 0.0
    %3750 = vmatpush1.msra.mxu0 0.0
    %3751 = vmatprep.subr.mxu0 0.0
    %3752 = vmatpush1.msra.mxu0 0.0
    %3753 = vmatprep.subr.mxu0 0.0
    %3754 = vmatpush1.msra.mxu0 0.0
    %3755 = vmatprep.subr.mxu0 0.0
    %3756 = vmatpush1.msra.mxu0 0.0
    %3757 = vmatprep.subr.mxu0 0.0
    %3758 = vmatpush1.msra.mxu0 0.0
    %3759 = vmatprep.subr.mxu0 0.0
    %3760 = vmatpush1.msra.mxu0 0.0
    %3761 = vmatprep.subr.mxu0 0.0
    %3762 = vmatpush1.msra.mxu0 0.0
    %3763 = vmatprep.subr.mxu0 0.0
    %3764 = vmatpush1.msra.mxu0 0.0
    %3765 = vmatprep.subr.mxu0 0.0
    %3766 = vmatpush1.msra.mxu0 0.0
    %3767 = vmatprep.subr.mxu0 0.0
    %3768 = vmatpush1.msra.mxu0 0.0
    %3769 = vmatprep.subr.mxu0 0.0
    %3770 = vmatpush1.msra.mxu0 0.0
    %3771 = vmatprep.subr.mxu0 0.0
    %3772 = vmatpush1.msra.mxu0 0.0
    %3773 = vmatprep.subr.mxu0 0.0
    %3774 = vmatpush1.msra.mxu0 0.0
    %3775 = vmatprep.subr.mxu0 0.0
    %3776 = vmatpush1.msra.mxu0 0.0
    %3777 = vmatprep.subr.mxu0 0.0
    %3778 = vmatpush1.msra.mxu0 0.0
    %3779 = vmatprep.subr.mxu0 0.0
    %3780 = vmatpush1.msra.mxu0 0.0
    %3781 = vmatprep.subr.mxu0 0.0
    %3782 = vmatpush1.msra.mxu0 0.0
    %3783 = vmatprep.subr.mxu0 0.0
    %3784 = vmatpush1.msra.mxu0 0.0
    %3785 = vmatprep.mubr.f32.mxu0 0.0
    %3786 = vmatmul.mubr.f32.gmra.mrb[0].mxu0 %v3300
    %v3787 = vpop.f32.mrb[0].mxu0
    %v3788 = vadd.f32 0.0, %v3787
    %v3789 = vpop.f32.mrb[0].mxu0
    %v3790 = vadd.f32 0.0, %v3789
    %3791 = vmatprep.mubr.f32.mxu0 0.0
    %3792 = vmatmul.mubr.f32.gmra.mrb[0].mxu0 %v3303
    %v3793 = vpop.f32.mrb[0].mxu0
    %v3794 = vadd.f32 0.0, %v3793
    %v3795 = vpop.f32.mrb[0].mxu0
    %v3796 = vadd.f32 0.0, %v3795
    %3797 = vmatprep.mubr.f32.mxu0 0.0
    %3798 = vmatmul.mubr.f32.gmra.mrb[0].mxu0 %v3306
    %v3799 = vpop.f32.mrb[0].mxu0
    %v3800 = vadd.f32 0.0, %v3799
    %v3801 = vpop.f32.mrb[0].mxu0
    %v3802 = vadd.f32 0.0, %v3801
    %3803 = vmatprep.mubr.f32.mxu0 0.0
    %3804 = vmatmul.mubr.f32.gmra.mrb[0].mxu0 %v3309
    %v3805 = vpop.f32.mrb[0].mxu0
    %v3806 = vadd.f32 0.0, %v3805
    %v3807 = vpop.f32.mrb[0].mxu0
    %v3808 = vadd.f32 0.0, %v3807
    %3809 = vmatprep.mubr.f32.mxu0 0.0
    %3810 = vmatmul.mubr.f32.gmra.mrb[0].mxu0 %v3312
    %v3811 = vpop.f32.mrb[0].mxu0
    %v3812 = vadd.f32 0.0, %v3811
    %v3813 = vpop.f32.mrb[0].mxu0
    %v3814 = vadd.f32 0.0, %v3813
    %3815 = vmatprep.mubr.f32.mxu0 0.0
    %3816 = vmatmul.mubr.f32.gmra.mrb[0].mxu0 %v3315
    %v3817 = vpop.f32.mrb[0].mxu0
    %v3818 = vadd.f32 0.0, %v3817
    %v3819 = vpop.f32.mrb[0].mxu0
    %v3820 = vadd.f32 0.0, %v3819
    %3821 = vdwg.mxu0
    %3822 = vmatprep.subr.mxu0 %v3271
    %3823 = vmatpush1.msra.mxu0 %v3270
    %3824 = vmatprep.subr.mxu0 %v3287
    %3825 = vmatpush1.msra.mxu0 %v3286
    %3826 = vmatprep.subr.mxu0 0.0
    %3827 = vmatpush1.msra.mxu0 0.0
    %3828 = vmatprep.subr.mxu0 0.0
    %3829 = vmatpush1.msra.mxu0 0.0
    %3830 = vmatprep.subr.mxu0 0.0
    %3831 = vmatpush1.msra.mxu0 0.0
    %3832 = vmatprep.subr.mxu0 0.0
    %3833 = vmatpush1.msra.mxu0 0.0
    %3834 = vmatprep.subr.mxu0 0.0
    %3835 = vmatpush1.msra.mxu0 0.0
    %3836 = vmatprep.subr.mxu0 0.0
    %3837 = vmatpush1.msra.mxu0 0.0
    %3838 = vmatprep.subr.mxu0 0.0
    %3839 = vmatpush1.msra.mxu0 0.0
    %3840 = vmatprep.subr.mxu0 0.0
    %3841 = vmatpush1.msra.mxu0 0.0
    %3842 = vmatprep.subr.mxu0 0.0
    %3843 = vmatpush1.msra.mxu0 0.0
    %3844 = vmatprep.subr.mxu0 0.0
    %3845 = vmatpush1.msra.mxu0 0.0
    %3846 = vmatprep.subr.mxu0 0.0
    %3847 = vmatpush1.msra.mxu0 0.0
    %3848 = vmatprep.subr.mxu0 0.0
    %3849 = vmatpush1.msra.mxu0 0.0
    %3850 = vmatprep.subr.mxu0 0.0
    %3851 = vmatpush1.msra.mxu0 0.0
    %3852 = vmatprep.subr.mxu0 0.0
    %3853 = vmatpush1.msra.mxu0 0.0
    %3854 = vmatprep.subr.mxu0 0.0
    %3855 = vmatpush1.msra.mxu0 0.0
    %3856 = vmatprep.subr.mxu0 0.0
    %3857 = vmatpush1.msra.mxu0 0.0
    %3858 = vmatprep.subr.mxu0 0.0
    %3859 = vmatpush1.msra.mxu0 0.0
    %3860 = vmatprep.subr.mxu0 0.0
    %3861 = vmatpush1.msra.mxu0 0.0
    %3862 = vmatprep.subr.mxu0 0.0
    %3863 = vmatpush1.msra.mxu0 0.0
    %3864 = vmatprep.subr.mxu0 0.0
    %3865 = vmatpush1.msra.mxu0 0.0
    %3866 = vmatprep.subr.mxu0 0.0
    %3867 = vmatpush1.msra.mxu0 0.0
    %3868 = vmatprep.subr.mxu0 0.0
    %3869 = vmatpush1.msra.mxu0 0.0
    %3870 = vmatprep.subr.mxu0 0.0
    %3871 = vmatpush1.msra.mxu0 0.0
    %3872 = vmatprep.subr.mxu0 0.0
    %3873 = vmatpush1.msra.mxu0 0.0
    %3874 = vmatprep.subr.mxu0 0.0
    %3875 = vmatpush1.msra.mxu0 0.0
    %3876 = vmatprep.subr.mxu0 0.0
    %3877 = vmatpush1.msra.mxu0 0.0
    %3878 = vmatprep.subr.mxu0 0.0
    %3879 = vmatpush1.msra.mxu0 0.0
    %3880 = vmatprep.subr.mxu0 0.0
    %3881 = vmatpush1.msra.mxu0 0.0
    %3882 = vmatprep.subr.mxu0 0.0
    %3883 = vmatpush1.msra.mxu0 0.0
    %3884 = vmatprep.subr.mxu0 0.0
    %3885 = vmatpush1.msra.mxu0 0.0
    %3886 = vmatprep.mubr.f32.mxu0 0.0
    %3887 = vmatmul.mubr.f32.gmra.mrb[0].mxu0 %v3300
    %v3888 = vpop.f32.mrb[0].mxu0
    %v3889 = vadd.f32 0.0, %v3888
    %v3890 = vpop.f32.mrb[0].mxu0
    %v3891 = vadd.f32 0.0, %v3890
    %3892 = vmatprep.mubr.f32.mxu0 0.0
    %3893 = vmatmul.mubr.f32.gmra.mrb[0].mxu0 %v3303
    %v3894 = vpop.f32.mrb[0].mxu0
    %v3895 = vadd.f32 0.0, %v3894
    %v3896 = vpop.f32.mrb[0].mxu0
    %v3897 = vadd.f32 0.0, %v3896
    %3898 = vmatprep.mubr.f32.mxu0 0.0
    %3899 = vmatmul.mubr.f32.gmra.mrb[0].mxu0 %v3306
    %v3900 = vpop.f32.mrb[0].mxu0
    %v3901 = vadd.f32 0.0, %v3900
    %v3902 = vpop.f32.mrb[0].mxu0
    %v3903 = vadd.f32 0.0, %v3902
    %3904 = vmatprep.mubr.f32.mxu0 0.0
    %3905 = vmatmul.mubr.f32.gmra.mrb[0].mxu0 %v3309
    %v3906 = vpop.f32.mrb[0].mxu0
    %v3907 = vadd.f32 0.0, %v3906
    %v3908 = vpop.f32.mrb[0].mxu0
    %v3909 = vadd.f32 0.0, %v3908
    %3910 = vmatprep.mubr.f32.mxu0 0.0
    %3911 = vmatmul.mubr.f32.gmra.mrb[0].mxu0 %v3312
    %v3912 = vpop.f32.mrb[0].mxu0
    %v3913 = vadd.f32 0.0, %v3912
    %v3914 = vpop.f32.mrb[0].mxu0
    %v3915 = vadd.f32 0.0, %v3914
    %3916 = vmatprep.mubr.f32.mxu0 0.0
    %3917 = vmatmul.mubr.f32.gmra.mrb[0].mxu0 %v3315
    %v3918 = vpop.f32.mrb[0].mxu0
    %v3919 = vadd.f32 0.0, %v3918
    %v3920 = vpop.f32.mrb[0].mxu0
    %v3921 = vadd.f32 0.0, %v3920
    %3922 = vdwg.mxu0
    %3923 = vmatprep.subr.mxu0 %v3273
    %3924 = vmatpush1.msra.mxu0 %v3272
    %3925 = vmatprep.subr.mxu0 %v3289
    %3926 = vmatpush1.msra.mxu0 %v3288
    %3927 = vmatprep.subr.mxu0 0.0
    %3928 = vmatpush1.msra.mxu0 0.0
    %3929 = vmatprep.subr.mxu0 0.0
    %3930 = vmatpush1.msra.mxu0 0.0
    %3931 = vmatprep.subr.mxu0 0.0
    %3932 = vmatpush1.msra.mxu0 0.0
    %3933 = vmatprep.subr.mxu0 0.0
    %3934 = vmatpush1.msra.mxu0 0.0
    %3935 = vmatprep.subr.mxu0 0.0
    %3936 = vmatpush1.msra.mxu0 0.0
    %3937 = vmatprep.subr.mxu0 0.0
    %3938 = vmatpush1.msra.mxu0 0.0
    %3939 = vmatprep.subr.mxu0 0.0
    %3940 = vmatpush1.msra.mxu0 0.0
    %3941 = vmatprep.subr.mxu0 0.0
    %3942 = vmatpush1.msra.mxu0 0.0
    %3943 = vmatprep.subr.mxu0 0.0
    %3944 = vmatpush1.msra.mxu0 0.0
    %3945 = vmatprep.subr.mxu0 0.0
    %3946 = vmatpush1.msra.mxu0 0.0
    %3947 = vmatprep.subr.mxu0 0.0
    %3948 = vmatpush1.msra.mxu0 0.0
    %3949 = vmatprep.subr.mxu0 0.0
    %3950 = vmatpush1.msra.mxu0 0.0
    %3951 = vmatprep.subr.mxu0 0.0
    %3952 = vmatpush1.msra.mxu0 0.0
    %3953 = vmatprep.subr.mxu0 0.0
    %3954 = vmatpush1.msra.mxu0 0.0
    %3955 = vmatprep.subr.mxu0 0.0
    %3956 = vmatpush1.msra.mxu0 0.0
    %3957 = vmatprep.subr.mxu0 0.0
    %3958 = vmatpush1.msra.mxu0 0.0
    %3959 = vmatprep.subr.mxu0 0.0
    %3960 = vmatpush1.msra.mxu0 0.0
    %3961 = vmatprep.subr.mxu0 0.0
    %3962 = vmatpush1.msra.mxu0 0.0
    %3963 = vmatprep.subr.mxu0 0.0
    %3964 = vmatpush1.msra.mxu0 0.0
    %3965 = vmatprep.subr.mxu0 0.0
    %3966 = vmatpush1.msra.mxu0 0.0
    %3967 = vmatprep.subr.mxu0 0.0
    %3968 = vmatpush1.msra.mxu0 0.0
    %3969 = vmatprep.subr.mxu0 0.0
    %3970 = vmatpush1.msra.mxu0 0.0
    %3971 = vmatprep.subr.mxu0 0.0
    %3972 = vmatpush1.msra.mxu0 0.0
    %3973 = vmatprep.subr.mxu0 0.0
    %3974 = vmatpush1.msra.mxu0 0.0
    %3975 = vmatprep.subr.mxu0 0.0
    %3976 = vmatpush1.msra.mxu0 0.0
    %3977 = vmatprep.subr.mxu0 0.0
    %3978 = vmatpush1.msra.mxu0 0.0
    %3979 = vmatprep.subr.mxu0 0.0
    %3980 = vmatpush1.msra.mxu0 0.0
    %3981 = vmatprep.subr.mxu0 0.0
    %3982 = vmatpush1.msra.mxu0 0.0
    %3983 = vmatprep.subr.mxu0 0.0
    %3984 = vmatpush1.msra.mxu0 0.0
    %3985 = vmatprep.subr.mxu0 0.0
    %3986 = vmatpush1.msra.mxu0 0.0
    %3987 = vmatprep.mubr.f32.mxu0 0.0
    %3988 = vmatmul.mubr.f32.gmra.mrb[0].mxu0 %v3300
    %v3989 = vpop.f32.mrb[0].mxu0
    %v3990 = vadd.f32 0.0, %v3989
    %v3991 = vpop.f32.mrb[0].mxu0
    %v3992 = vadd.f32 0.0, %v3991
    %3993 = vmatprep.mubr.f32.mxu0 0.0
    %3994 = vmatmul.mubr.f32.gmra.mrb[0].mxu0 %v3303
    %v3995 = vpop.f32.mrb[0].mxu0
    %v3996 = vadd.f32 0.0, %v3995
    %v3997 = vpop.f32.mrb[0].mxu0
    %v3998 = vadd.f32 0.0, %v3997
    %3999 = vmatprep.mubr.f32.mxu0 0.0
    %4000 = vmatmul.mubr.f32.gmra.mrb[0].mxu0 %v3306
    %v4001 = vpop.f32.mrb[0].mxu0
    %v4002 = vadd.f32 0.0, %v4001
    %v4003 = vpop.f32.mrb[0].mxu0
    %v4004 = vadd.f32 0.0, %v4003
    %4005 = vmatprep.mubr.f32.mxu0 0.0
    %4006 = vmatmul.mubr.f32.gmra.mrb[0].mxu0 %v3309
    %v4007 = vpop.f32.mrb[0].mxu0
    %v4008 = vadd.f32 0.0, %v4007
    %v4009 = vpop.f32.mrb[0].mxu0
    %v4010 = vadd.f32 0.0, %v4009
    %4011 = vmatprep.mubr.f32.mxu0 0.0
    %4012 = vmatmul.mubr.f32.gmra.mrb[0].mxu0 %v3312
    %v4013 = vpop.f32.mrb[0].mxu0
    %v4014 = vadd.f32 0.0, %v4013
    %v4015 = vpop.f32.mrb[0].mxu0
    %v4016 = vadd.f32 0.0, %v4015
    %4017 = vmatprep.mubr.f32.mxu0 0.0
    %4018 = vmatmul.mubr.f32.gmra.mrb[0].mxu0 %v3315
    %v4019 = vpop.f32.mrb[0].mxu0
    %v4020 = vadd.f32 0.0, %v4019
    %v4021 = vpop.f32.mrb[0].mxu0
    %v4022 = vadd.f32 0.0, %v4021
    %4023 = vdwg.mxu0
    %4024 = vmatprep.subr.mxu0 %v3275
    %4025 = vmatpush1.msra.mxu0 %v3274
    %4026 = vmatprep.subr.mxu0 %v3291
    %4027 = vmatpush1.msra.mxu0 %v3290
    %4028 = vmatprep.subr.mxu0 0.0
    %4029 = vmatpush1.msra.mxu0 0.0
    %4030 = vmatprep.subr.mxu0 0.0
    %4031 = vmatpush1.msra.mxu0 0.0
    %4032 = vmatprep.subr.mxu0 0.0
    %4033 = vmatpush1.msra.mxu0 0.0
    %4034 = vmatprep.subr.mxu0 0.0
    %4035 = vmatpush1.msra.mxu0 0.0
    %4036 = vmatprep.subr.mxu0 0.0
    %4037 = vmatpush1.msra.mxu0 0.0
    %4038 = vmatprep.subr.mxu0 0.0
    %4039 = vmatpush1.msra.mxu0 0.0
    %4040 = vmatprep.subr.mxu0 0.0
    %4041 = vmatpush1.msra.mxu0 0.0
    %4042 = vmatprep.subr.mxu0 0.0
    %4043 = vmatpush1.msra.mxu0 0.0
    %4044 = vmatprep.subr.mxu0 0.0
    %4045 = vmatpush1.msra.mxu0 0.0
    %4046 = vmatprep.subr.mxu0 0.0
    %4047 = vmatpush1.msra.mxu0 0.0
    %4048 = vmatprep.subr.mxu0 0.0
    %4049 = vmatpush1.msra.mxu0 0.0
    %4050 = vmatprep.subr.mxu0 0.0
    %4051 = vmatpush1.msra.mxu0 0.0
    %4052 = vmatprep.subr.mxu0 0.0
    %4053 = vmatpush1.msra.mxu0 0.0
    %4054 = vmatprep.subr.mxu0 0.0
    %4055 = vmatpush1.msra.mxu0 0.0
    %4056 = vmatprep.subr.mxu0 0.0
    %4057 = vmatpush1.msra.mxu0 0.0
    %4058 = vmatprep.subr.mxu0 0.0
    %4059 = vmatpush1.msra.mxu0 0.0
    %4060 = vmatprep.subr.mxu0 0.0
    %4061 = vmatpush1.msra.mxu0 0.0
    %4062 = vmatprep.subr.mxu0 0.0
    %4063 = vmatpush1.msra.mxu0 0.0
    %4064 = vmatprep.subr.mxu0 0.0
    %4065 = vmatpush1.msra.mxu0 0.0
    %4066 = vmatprep.subr.mxu0 0.0
    %4067 = vmatpush1.msra.mxu0 0.0
    %4068 = vmatprep.subr.mxu0 0.0
    %4069 = vmatpush1.msra.mxu0 0.0
    %4070 = vmatprep.subr.mxu0 0.0
    %4071 = vmatpush1.msra.mxu0 0.0
    %4072 = vmatprep.subr.mxu0 0.0
    %4073 = vmatpush1.msra.mxu0 0.0
    %4074 = vmatprep.subr.mxu0 0.0
    %4075 = vmatpush1.msra.mxu0 0.0
    %4076 = vmatprep.subr.mxu0 0.0
    %4077 = vmatpush1.msra.mxu0 0.0
    %4078 = vmatprep.subr.mxu0 0.0
    %4079 = vmatpush1.msra.mxu0 0.0
    %4080 = vmatprep.subr.mxu0 0.0
    %4081 = vmatpush1.msra.mxu0 0.0
    %4082 = vmatprep.subr.mxu0 0.0
    %4083 = vmatpush1.msra.mxu0 0.0
    %4084 = vmatprep.subr.mxu0 0.0
    %4085 = vmatpush1.msra.mxu0 0.0
    %4086 = vmatprep.subr.mxu0 0.0
    %4087 = vmatpush1.msra.mxu0 0.0
    %4088 = vmatprep.mubr.f32.mxu0 0.0
    %4089 = vmatmul.mubr.f32.gmra.mrb[0].mxu0 %v3300
    %v4090 = vpop.f32.mrb[0].mxu0
    %v4091 = vadd.f32 0.0, %v4090
    %v4092 = vpop.f32.mrb[0].mxu0
    %v4093 = vadd.f32 0.0, %v4092
    %4094 = vmatprep.mubr.f32.mxu0 0.0
    %4095 = vmatmul.mubr.f32.gmra.mrb[0].mxu0 %v3303
    %v4096 = vpop.f32.mrb[0].mxu0
    %v4097 = vadd.f32 0.0, %v4096
    %v4098 = vpop.f32.mrb[0].mxu0
    %v4099 = vadd.f32 0.0, %v4098
    %4100 = vmatprep.mubr.f32.mxu0 0.0
    %4101 = vmatmul.mubr.f32.gmra.mrb[0].mxu0 %v3306
    %v4102 = vpop.f32.mrb[0].mxu0
    %v4103 = vadd.f32 0.0, %v4102
    %v4104 = vpop.f32.mrb[0].mxu0
    %v4105 = vadd.f32 0.0, %v4104
    %4106 = vmatprep.mubr.f32.mxu0 0.0
    %4107 = vmatmul.mubr.f32.gmra.mrb[0].mxu0 %v3309
    %v4108 = vpop.f32.mrb[0].mxu0
    %v4109 = vadd.f32 0.0, %v4108
    %v4110 = vpop.f32.mrb[0].mxu0
    %v4111 = vadd.f32 0.0, %v4110
    %4112 = vmatprep.mubr.f32.mxu0 0.0
    %4113 = vmatmul.mubr.f32.gmra.mrb[0].mxu0 %v3312
    %v4114 = vpop.f32.mrb[0].mxu0
    %v4115 = vadd.f32 0.0, %v4114
    %v4116 = vpop.f32.mrb[0].mxu0
    %v4117 = vadd.f32 0.0, %v4116
    %4118 = vmatprep.mubr.f32.mxu0 0.0
    %4119 = vmatmul.mubr.f32.gmra.mrb[0].mxu0 %v3315
    %v4120 = vpop.f32.mrb[0].mxu0
    %v4121 = vadd.f32 0.0, %v4120
    %v4122 = vpop.f32.mrb[0].mxu0
    %v4123 = vadd.f32 0.0, %v4122
    %4124 = vdwg.mxu0
    %4125 = vrot.lane.b32.xlu0 %v3384, 1
    %v4126 = vpop.permute.xlu0 %4125
    %4127 = vrot.lane.b32.xlu0 %v3390, 1
    %v4128 = vpop.permute.xlu0 %4127
    %4129 = vrot.lane.b32.xlu0 %v3386, 1
    %v4130 = vpop.permute.xlu0 %4129
    %4131 = vrot.lane.b32.xlu0 %v3392, 1
    %v4132 = vpop.permute.xlu0 %4131
    %4133 = vrot.lane.b32.xlu0 %v3485, 1
    %v4134 = vpop.permute.xlu0 %4133
    %4135 = vrot.lane.b32.xlu0 %v3491, 1
    %v4136 = vpop.permute.xlu0 %4135
    %4137 = vrot.lane.b32.xlu0 %v3487, 1
    %v4138 = vpop.permute.xlu0 %4137
    %4139 = vrot.lane.b32.xlu0 %v3493, 1
    %v4140 = vpop.permute.xlu0 %4139
    %4141 = vrot.lane.b32.xlu0 %v3586, 1
    %v4142 = vpop.permute.xlu0 %4141
    %4143 = vrot.lane.b32.xlu0 %v3592, 1
    %v4144 = vpop.permute.xlu0 %4143
    %4145 = vrot.lane.b32.xlu0 %v3588, 1
    %v4146 = vpop.permute.xlu0 %4145
    %4147 = vrot.lane.b32.xlu0 %v3594, 1
    %v4148 = vpop.permute.xlu0 %4147
    %4149 = vrot.lane.b32.xlu0 %v3687, 1
    %v4150 = vpop.permute.xlu0 %4149
    %4151 = vrot.lane.b32.xlu0 %v3693, 1
    %v4152 = vpop.permute.xlu0 %4151
    %4153 = vrot.lane.b32.xlu0 %v3689, 1
    %v4154 = vpop.permute.xlu0 %4153
    %4155 = vrot.lane.b32.xlu0 %v3695, 1
    %v4156 = vpop.permute.xlu0 %4155
    %4157 = vrot.lane.b32.xlu0 %v3788, 1
    %v4158 = vpop.permute.xlu0 %4157
    %4159 = vrot.lane.b32.xlu0 %v3794, 1
    %v4160 = vpop.permute.xlu0 %4159
    %4161 = vrot.lane.b32.xlu0 %v3790, 1
    %v4162 = vpop.permute.xlu0 %4161
    %4163 = vrot.lane.b32.xlu0 %v3796, 1
    %v4164 = vpop.permute.xlu0 %4163
    %4165 = vrot.lane.b32.xlu0 %v3889, 1
    %v4166 = vpop.permute.xlu0 %4165
    %4167 = vrot.lane.b32.xlu0 %v3895, 1
    %v4168 = vpop.permute.xlu0 %4167
    %4169 = vrot.lane.b32.xlu0 %v3891, 1
    %v4170 = vpop.permute.xlu0 %4169
    %4171 = vrot.lane.b32.xlu0 %v3897, 1
    %v4172 = vpop.permute.xlu0 %4171
    %4173 = vrot.lane.b32.xlu0 %v3990, 1
    %v4174 = vpop.permute.xlu0 %4173
    %4175 = vrot.lane.b32.xlu0 %v3996, 1
    %v4176 = vpop.permute.xlu0 %4175
    %4177 = vrot.lane.b32.xlu0 %v3992, 1
    %v4178 = vpop.permute.xlu0 %4177
    %4179 = vrot.lane.b32.xlu0 %v3998, 1
    %v4180 = vpop.permute.xlu0 %4179
    %4181 = vrot.lane.b32.xlu0 %v4091, 1
    %v4182 = vpop.permute.xlu0 %4181
    %4183 = vrot.lane.b32.xlu0 %v4097, 1
    %v4184 = vpop.permute.xlu0 %4183
    %4185 = vrot.lane.b32.xlu0 %v4093, 1
    %v4186 = vpop.permute.xlu0 %4185
    %4187 = vrot.lane.b32.xlu0 %v4099, 1
    %v4188 = vpop.permute.xlu0 %4187
    %v4189 = vsel %vm1021, %v4182, %v4186
    %v4190 = vsel %vm1021, %v4184, %v4188
    %v4191 = vsel %vm1021, %v4178, %v4182
    %v4192 = vsel %vm1021, %v4180, %v4184
    %v4193 = vsel %vm1021, %v4174, %v4178
    %v4194 = vsel %vm1021, %v4176, %v4180
    %v4195 = vsel %vm1021, %v4170, %v4174
    %v4196 = vsel %vm1021, %v4172, %v4176
    %v4197 = vsel %vm1021, %v4166, %v4170
    %v4198 = vsel %vm1021, %v4168, %v4172
    %v4199 = vsel %vm1021, %v4162, %v4166
    %v4200 = vsel %vm1021, %v4164, %v4168
    %v4201 = vsel %vm1021, %v4158, %v4162
    %v4202 = vsel %vm1021, %v4160, %v4164
    %v4203 = vsel %vm1021, %v4154, %v4158
    %v4204 = vsel %vm1021, %v4156, %v4160
    %v4205 = vsel %vm1021, %v4150, %v4154
    %v4206 = vsel %vm1021, %v4152, %v4156
    %v4207 = vsel %vm1021, %v4146, %v4150
    %v4208 = vsel %vm1021, %v4148, %v4152
    %v4209 = vsel %vm1021, %v4142, %v4146
    %v4210 = vsel %vm1021, %v4144, %v4148
    %v4211 = vsel %vm1021, %v4138, %v4142
    %v4212 = vsel %vm1021, %v4140, %v4144
    %v4213 = vsel %vm1021, %v4134, %v4138
    %v4214 = vsel %vm1021, %v4136, %v4140
    %v4215 = vsel %vm1021, %v4130, %v4134
    %v4216 = vsel %vm1021, %v4132, %v4136
    %v4217 = vsel %vm1021, %v4126, %v4130
    %v4218 = vsel %vm1021, %v4128, %v4132
    %v4219 = vsel %vm1021, %v4186, %v4126
    %v4220 = vsel %vm1021, %v4188, %v4128
    %v4221 = vmul.f32 %v4219, %v120
    %v4222 = vmul.f32 %v4217, %v121
    %v4223 = vmul.f32 %v4215, %v122
    %v4224 = vmul.f32 %v4213, %v123
    %v4225 = vmul.f32 %v4211, %v124
    %v4226 = vmul.f32 %v4209, %v125
    %v4227 = vmul.f32 %v4207, %v126
    %v4228 = vmul.f32 %v4205, %v127
    %v4229 = vmul.f32 %v4203, %v128
    %v4230 = vmul.f32 %v4201, %v129
    %v4231 = vmul.f32 %v4199, %v130
    %v4232 = vmul.f32 %v4197, %v131
    %v4233 = vmul.f32 %v4195, %v132
    %v4234 = vmul.f32 %v4193, %v133
    %v4235 = vmul.f32 %v4191, %v134
    %v4236 = vmul.f32 %v4189, %v135
    %v4237 = vmul.f32 %v4220, %v120
    %v4238 = vmul.f32 %v4218, %v121
    %v4239 = vmul.f32 %v4216, %v122
    %v4240 = vmul.f32 %v4214, %v123
    %v4241 = vmul.f32 %v4212, %v124
    %v4242 = vmul.f32 %v4210, %v125
    %v4243 = vmul.f32 %v4208, %v126
    %v4244 = vmul.f32 %v4206, %v127
    %v4245 = vmul.f32 %v4204, %v128
    %v4246 = vmul.f32 %v4202, %v129
    %v4247 = vmul.f32 %v4200, %v130
    %v4248 = vmul.f32 %v4198, %v131
    %v4249 = vmul.f32 %v4196, %v132
    %v4250 = vmul.f32 %v4194, %v133
    %v4251 = vmul.f32 %v4192, %v134
    %v4252 = vmul.f32 %v4190, %v135
    %v4253 = vadd.f32 %v4221, %v3396
    %v4254 = vadd.f32 %v4222, %v3398
    %v4255 = vadd.f32 %v4223, %v3497
    %v4256 = vadd.f32 %v4224, %v3499
    %v4257 = vadd.f32 %v4225, %v3598
    %v4258 = vadd.f32 %v4226, %v3600
    %v4259 = vadd.f32 %v4227, %v3699
    %v4260 = vadd.f32 %v4228, %v3701
    %v4261 = vadd.f32 %v4229, %v3800
    %v4262 = vadd.f32 %v4230, %v3802
    %v4263 = vadd.f32 %v4231, %v3901
    %v4264 = vadd.f32 %v4232, %v3903
    %v4265 = vadd.f32 %v4233, %v4002
    %v4266 = vadd.f32 %v4234, %v4004
    %v4267 = vadd.f32 %v4235, %v4103
    %v4268 = vadd.f32 %v4236, %v4105
    %v4269 = vadd.f32 %v4237, %v3402
    %v4270 = vadd.f32 %v4238, %v3404
    %v4271 = vadd.f32 %v4239, %v3503
    %v4272 = vadd.f32 %v4240, %v3505
    %v4273 = vadd.f32 %v4241, %v3604
    %v4274 = vadd.f32 %v4242, %v3606
    %v4275 = vadd.f32 %v4243, %v3705
    %v4276 = vadd.f32 %v4244, %v3707
    %v4277 = vadd.f32 %v4245, %v3806
    %v4278 = vadd.f32 %v4246, %v3808
    %v4279 = vadd.f32 %v4247, %v3907
    %v4280 = vadd.f32 %v4248, %v3909
    %v4281 = vadd.f32 %v4249, %v4008
    %v4282 = vadd.f32 %v4250, %v4010
    %v4283 = vadd.f32 %v4251, %v4109
    %v4284 = vadd.f32 %v4252, %v4111
    %4285 = vrot.lane.b32.xlu0 %v3408, 127
    %v4286 = vpop.permute.xlu0 %4285
    %4287 = vrot.lane.b32.xlu0 %v3414, 127
    %v4288 = vpop.permute.xlu0 %4287
    %4289 = vrot.lane.b32.xlu0 %v3410, 127
    %v4290 = vpop.permute.xlu0 %4289
    %4291 = vrot.lane.b32.xlu0 %v3416, 127
    %v4292 = vpop.permute.xlu0 %4291
    %4293 = vrot.lane.b32.xlu0 %v3509, 127
    %v4294 = vpop.permute.xlu0 %4293
    %4295 = vrot.lane.b32.xlu0 %v3515, 127
    %v4296 = vpop.permute.xlu0 %4295
    %4297 = vrot.lane.b32.xlu0 %v3511, 127
    %v4298 = vpop.permute.xlu0 %4297
    %4299 = vrot.lane.b32.xlu0 %v3517, 127
    %v4300 = vpop.permute.xlu0 %4299
    %4301 = vrot.lane.b32.xlu0 %v3610, 127
    %v4302 = vpop.permute.xlu0 %4301
    %4303 = vrot.lane.b32.xlu0 %v3616, 127
    %v4304 = vpop.permute.xlu0 %4303
    %4305 = vrot.lane.b32.xlu0 %v3612, 127
    %v4306 = vpop.permute.xlu0 %4305
    %4307 = vrot.lane.b32.xlu0 %v3618, 127
    %v4308 = vpop.permute.xlu0 %4307
    %4309 = vrot.lane.b32.xlu0 %v3711, 127
    %v4310 = vpop.permute.xlu0 %4309
    %4311 = vrot.lane.b32.xlu0 %v3717, 127
    %v4312 = vpop.permute.xlu0 %4311
    %4313 = vrot.lane.b32.xlu0 %v3713, 127
    %v4314 = vpop.permute.xlu0 %4313
    %4315 = vrot.lane.b32.xlu0 %v3719, 127
    %v4316 = vpop.permute.xlu0 %4315
    %4317 = vrot.lane.b32.xlu0 %v3812, 127
    %v4318 = vpop.permute.xlu0 %4317
    %4319 = vrot.lane.b32.xlu0 %v3818, 127
    %v4320 = vpop.permute.xlu0 %4319
    %4321 = vrot.lane.b32.xlu0 %v3814, 127
    %v4322 = vpop.permute.xlu0 %4321
    %4323 = vrot.lane.b32.xlu0 %v3820, 127
    %v4324 = vpop.permute.xlu0 %4323
    %4325 = vrot.lane.b32.xlu0 %v3913, 127
    %v4326 = vpop.permute.xlu0 %4325
    %4327 = vrot.lane.b32.xlu0 %v3919, 127
    %v4328 = vpop.permute.xlu0 %4327
    %4329 = vrot.lane.b32.xlu0 %v3915, 127
    %v4330 = vpop.permute.xlu0 %4329
    %4331 = vrot.lane.b32.xlu0 %v3921, 127
    %v4332 = vpop.permute.xlu0 %4331
    %4333 = vrot.lane.b32.xlu0 %v4014, 127
    %v4334 = vpop.permute.xlu0 %4333
    %4335 = vrot.lane.b32.xlu0 %v4020, 127
    %v4336 = vpop.permute.xlu0 %4335
    %4337 = vrot.lane.b32.xlu0 %v4016, 127
    %v4338 = vpop.permute.xlu0 %4337
    %4339 = vrot.lane.b32.xlu0 %v4022, 127
    %v4340 = vpop.permute.xlu0 %4339
    %4341 = vrot.lane.b32.xlu0 %v4115, 127
    %v4342 = vpop.permute.xlu0 %4341
    %4343 = vrot.lane.b32.xlu0 %v4121, 127
    %v4344 = vpop.permute.xlu0 %4343
    %4345 = vrot.lane.b32.xlu0 %v4117, 127
    %v4346 = vpop.permute.xlu0 %4345
    %4347 = vrot.lane.b32.xlu0 %v4123, 127
    %v4348 = vpop.permute.xlu0 %4347
    %v4349 = vsel %vm1102, %v4342, %v4346
    %v4350 = vsel %vm1102, %v4344, %v4348
    %v4351 = vsel %vm1102, %v4338, %v4342
    %v4352 = vsel %vm1102, %v4340, %v4344
    %v4353 = vsel %vm1102, %v4334, %v4338
    %v4354 = vsel %vm1102, %v4336, %v4340
    %v4355 = vsel %vm1102, %v4330, %v4334
    %v4356 = vsel %vm1102, %v4332, %v4336
    %v4357 = vsel %vm1102, %v4326, %v4330
    %v4358 = vsel %vm1102, %v4328, %v4332
    %v4359 = vsel %vm1102, %v4322, %v4326
    %v4360 = vsel %vm1102, %v4324, %v4328
    %v4361 = vsel %vm1102, %v4318, %v4322
    %v4362 = vsel %vm1102, %v4320, %v4324
    %v4363 = vsel %vm1102, %v4314, %v4318
    %v4364 = vsel %vm1102, %v4316, %v4320
    %v4365 = vsel %vm1102, %v4310, %v4314
    %v4366 = vsel %vm1102, %v4312, %v4316
    %v4367 = vsel %vm1102, %v4306, %v4310
    %v4368 = vsel %vm1102, %v4308, %v4312
    %v4369 = vsel %vm1102, %v4302, %v4306
    %v4370 = vsel %vm1102, %v4304, %v4308
    %v4371 = vsel %vm1102, %v4298, %v4302
    %v4372 = vsel %vm1102, %v4300, %v4304
    %v4373 = vsel %vm1102, %v4294, %v4298
    %v4374 = vsel %vm1102, %v4296, %v4300
    %v4375 = vsel %vm1102, %v4290, %v4294
    %v4376 = vsel %vm1102, %v4292, %v4296
    %v4377 = vsel %vm1102, %v4286, %v4290
    %v4378 = vsel %vm1102, %v4288, %v4292
    %v4379 = vsel %vm1102, %v4346, %v4286
    %v4380 = vsel %vm1102, %v4348, %v4288
    %v4381 = vmul.f32 %v4377, %v168
    %v4382 = vmul.f32 %v4375, %v169
    %v4383 = vmul.f32 %v4373, %v170
    %v4384 = vmul.f32 %v4371, %v171
    %v4385 = vmul.f32 %v4369, %v172
    %v4386 = vmul.f32 %v4367, %v173
    %v4387 = vmul.f32 %v4365, %v174
    %v4388 = vmul.f32 %v4363, %v175
    %v4389 = vmul.f32 %v4361, %v176
    %v4390 = vmul.f32 %v4359, %v177
    %v4391 = vmul.f32 %v4357, %v178
    %v4392 = vmul.f32 %v4355, %v179
    %v4393 = vmul.f32 %v4353, %v180
    %v4394 = vmul.f32 %v4351, %v181
    %v4395 = vmul.f32 %v4349, %v182
    %v4396 = vmul.f32 %v4379, %v183
    %v4397 = vmul.f32 %v4378, %v168
    %v4398 = vmul.f32 %v4376, %v169
    %v4399 = vmul.f32 %v4374, %v170
    %v4400 = vmul.f32 %v4372, %v171
    %v4401 = vmul.f32 %v4370, %v172
    %v4402 = vmul.f32 %v4368, %v173
    %v4403 = vmul.f32 %v4366, %v174
    %v4404 = vmul.f32 %v4364, %v175
    %v4405 = vmul.f32 %v4362, %v176
    %v4406 = vmul.f32 %v4360, %v177
    %v4407 = vmul.f32 %v4358, %v178
    %v4408 = vmul.f32 %v4356, %v179
    %v4409 = vmul.f32 %v4354, %v180
    %v4410 = vmul.f32 %v4352, %v181
    %v4411 = vmul.f32 %v4350, %v182
    %v4412 = vmul.f32 %v4380, %v183
    %v4413 = vadd.f32 %v4253, %v4381
    %v4414 = vadd.f32 %v4254, %v4382
    %v4415 = vadd.f32 %v4255, %v4383
    %v4416 = vadd.f32 %v4256, %v4384
    %v4417 = vadd.f32 %v4257, %v4385
    %v4418 = vadd.f32 %v4258, %v4386
    %v4419 = vadd.f32 %v4259, %v4387
    %v4420 = vadd.f32 %v4260, %v4388
    %v4421 = vadd.f32 %v4261, %v4389
    %v4422 = vadd.f32 %v4262, %v4390
    %v4423 = vadd.f32 %v4263, %v4391
    %v4424 = vadd.f32 %v4264, %v4392
    %v4425 = vadd.f32 %v4265, %v4393
    %v4426 = vadd.f32 %v4266, %v4394
    %v4427 = vadd.f32 %v4267, %v4395
    %v4428 = vadd.f32 %v4268, %v4396
    %v4429 = vadd.f32 %v4269, %v4397
    %v4430 = vadd.f32 %v4270, %v4398
    %v4431 = vadd.f32 %v4271, %v4399
    %v4432 = vadd.f32 %v4272, %v4400
    %v4433 = vadd.f32 %v4273, %v4401
    %v4434 = vadd.f32 %v4274, %v4402
    %v4435 = vadd.f32 %v4275, %v4403
    %v4436 = vadd.f32 %v4276, %v4404
    %v4437 = vadd.f32 %v4277, %v4405
    %v4438 = vadd.f32 %v4278, %v4406
    %v4439 = vadd.f32 %v4279, %v4407
    %v4440 = vadd.f32 %v4280, %v4408
    %v4441 = vadd.f32 %v4281, %v4409
    %v4442 = vadd.f32 %v4282, %v4410
    %v4443 = vadd.f32 %v4283, %v4411
    %v4444 = vadd.f32 %v4284, %v4412
    %v4445 = vld [vmem:[%s8] sm:$0xff]
    %v4446 = vld [vmem:[%s8 + $0x8] sm:$0xff]
    %4448 = vset.pattern.permute.xlu0 0
    %4449 = vperm.xlu0 %4448, %v4445
    %v4450 = vpop.permute.xlu0 %4449
    %4453 = vset.pattern.permute.xlu0 0
    %4454 = vperm.xlu0 %4453, %v4446
    %v4455 = vpop.permute.xlu0 %4454
    %v4457 = vadd.f32 %v4413, %v4450
    %v4458 = vadd.f32 %v4414, %v4450
    %v4459 = vadd.f32 %v4415, %v4450
    %v4460 = vadd.f32 %v4416, %v4450
    %v4461 = vadd.f32 %v4417, %v4450
    %v4462 = vadd.f32 %v4418, %v4450
    %v4463 = vadd.f32 %v4419, %v4450
    %v4464 = vadd.f32 %v4420, %v4450
    %v4465 = vadd.f32 %v4421, %v4450
    %v4466 = vadd.f32 %v4422, %v4450
    %v4467 = vadd.f32 %v4423, %v4450
    %v4468 = vadd.f32 %v4424, %v4450
    %v4469 = vadd.f32 %v4425, %v4450
    %v4470 = vadd.f32 %v4426, %v4450
    %v4471 = vadd.f32 %v4427, %v4450
    %v4472 = vadd.f32 %v4428, %v4450
    %v4473 = vadd.f32 %v4429, %v4455
    %v4474 = vadd.f32 %v4430, %v4455
    %v4475 = vadd.f32 %v4431, %v4455
    %v4476 = vadd.f32 %v4432, %v4455
    %v4477 = vadd.f32 %v4433, %v4455
    %v4478 = vadd.f32 %v4434, %v4455
    %v4479 = vadd.f32 %v4435, %v4455
    %v4480 = vadd.f32 %v4436, %v4455
    %v4481 = vadd.f32 %v4437, %v4455
    %v4482 = vadd.f32 %v4438, %v4455
    %v4483 = vadd.f32 %v4439, %v4455
    %v4484 = vadd.f32 %v4440, %v4455
    %v4485 = vadd.f32 %v4441, %v4455
    %v4486 = vadd.f32 %v4442, %v4455
    %v4487 = vadd.f32 %v4443, %v4455
    %v4488 = vadd.f32 %v4444, %v4455
    %v4489 = vmax.f32 %v4457, 0.0
    %v4490 = vmax.f32 %v4458, 0.0
    %v4491 = vmax.f32 %v4459, 0.0
    %v4492 = vmax.f32 %v4460, 0.0
    %v4493 = vmax.f32 %v4461, 0.0
    %v4494 = vmax.f32 %v4462, 0.0
    %v4495 = vmax.f32 %v4463, 0.0
    %v4496 = vmax.f32 %v4464, 0.0
    %v4497 = vmax.f32 %v4465, 0.0
    %v4498 = vmax.f32 %v4466, 0.0
    %v4499 = vmax.f32 %v4467, 0.0
    %v4500 = vmax.f32 %v4468, 0.0
    %v4501 = vmax.f32 %v4469, 0.0
    %v4502 = vmax.f32 %v4470, 0.0
    %v4503 = vmax.f32 %v4471, 0.0
    %v4504 = vmax.f32 %v4472, 0.0
    %v4505 = vmax.f32 %v4473, 0.0
    %v4506 = vmax.f32 %v4474, 0.0
    %v4507 = vmax.f32 %v4475, 0.0
    %v4508 = vmax.f32 %v4476, 0.0
    %v4509 = vmax.f32 %v4477, 0.0
    %v4510 = vmax.f32 %v4478, 0.0
    %v4511 = vmax.f32 %v4479, 0.0
    %v4512 = vmax.f32 %v4480, 0.0
    %v4513 = vmax.f32 %v4481, 0.0
    %v4514 = vmax.f32 %v4482, 0.0
    %v4515 = vmax.f32 %v4483, 0.0
    %v4516 = vmax.f32 %v4484, 0.0
    %v4517 = vmax.f32 %v4485, 0.0
    %v4518 = vmax.f32 %v4486, 0.0
    %v4519 = vmax.f32 %v4487, 0.0
    %v4520 = vmax.f32 %v4488, 0.0
    %v4521 = vld [vmem:[%s9] sm:$0xff]
    %v4522 = vld [vmem:[%s9 + $0x8] sm:$0xff]
    %v4523 = vld [vmem:[%s9 + $0x10] sm:$0xff]
    %v4525 = vsel %vm3298, %v4521, 0
    %v4528 = vsel %vm3298, %v4522, 0
    %v4531 = vsel %vm3298, %v4523, 0
    %4533 = vmatprep.subr.mxu0 %v4490
    %4534 = vmatpush1.msra.mxu0 %v4489
    %4535 = vmatprep.subr.mxu0 %v4506
    %4536 = vmatpush1.msra.mxu0 %v4505
    %4537 = vmatprep.subr.mxu0 0.0
    %4538 = vmatpush1.msra.mxu0 0.0
    %4539 = vmatprep.subr.mxu0 0.0
    %4540 = vmatpush1.msra.mxu0 0.0
    %4541 = vmatprep.subr.mxu0 0.0
    %4542 = vmatpush1.msra.mxu0 0.0
    %4543 = vmatprep.subr.mxu0 0.0
    %4544 = vmatpush1.msra.mxu0 0.0
    %4545 = vmatprep.subr.mxu0 0.0
    %4546 = vmatpush1.msra.mxu0 0.0
    %4547 = vmatprep.subr.mxu0 0.0
    %4548 = vmatpush1.msra.mxu0 0.0
    %4549 = vmatprep.subr.mxu0 0.0
    %4550 = vmatpush1.msra.mxu0 0.0
    %4551 = vmatprep.subr.mxu0 0.0
    %4552 = vmatpush1.msra.mxu0 0.0
    %4553 = vmatprep.subr.mxu0 0.0
    %4554 = vmatpush1.msra.mxu0 0.0
    %4555 = vmatprep.subr.mxu0 0.0
    %4556 = vmatpush1.msra.mxu0 0.0
    %4557 = vmatprep.subr.mxu0 0.0
    %4558 = vmatpush1.msra.mxu0 0.0
    %4559 = vmatprep.subr.mxu0 0.0
    %4560 = vmatpush1.msra.mxu0 0.0
    %4561 = vmatprep.subr.mxu0 0.0
    %4562 = vmatpush1.msra.mxu0 0.0
    %4563 = vmatprep.subr.mxu0 0.0
    %4564 = vmatpush1.msra.mxu0 0.0
    %4565 = vmatprep.subr.mxu0 0.0
    %4566 = vmatpush1.msra.mxu0 0.0
    %4567 = vmatprep.subr.mxu0 0.0
    %4568 = vmatpush1.msra.mxu0 0.0
    %4569 = vmatprep.subr.mxu0 0.0
    %4570 = vmatpush1.msra.mxu0 0.0
    %4571 = vmatprep.subr.mxu0 0.0
    %4572 = vmatpush1.msra.mxu0 0.0
    %4573 = vmatprep.subr.mxu0 0.0
    %4574 = vmatpush1.msra.mxu0 0.0
    %4575 = vmatprep.subr.mxu0 0.0
    %4576 = vmatpush1.msra.mxu0 0.0
    %4577 = vmatprep.subr.mxu0 0.0
    %4578 = vmatpush1.msra.mxu0 0.0
    %4579 = vmatprep.subr.mxu0 0.0
    %4580 = vmatpush1.msra.mxu0 0.0
    %4581 = vmatprep.subr.mxu0 0.0
    %4582 = vmatpush1.msra.mxu0 0.0
    %4583 = vmatprep.subr.mxu0 0.0
    %4584 = vmatpush1.msra.mxu0 0.0
    %4585 = vmatprep.subr.mxu0 0.0
    %4586 = vmatpush1.msra.mxu0 0.0
    %4587 = vmatprep.subr.mxu0 0.0
    %4588 = vmatpush1.msra.mxu0 0.0
    %4589 = vmatprep.subr.mxu0 0.0
    %4590 = vmatpush1.msra.mxu0 0.0
    %4591 = vmatprep.subr.mxu0 0.0
    %4592 = vmatpush1.msra.mxu0 0.0
    %4593 = vmatprep.subr.mxu0 0.0
    %4594 = vmatpush1.msra.mxu0 0.0
    %4595 = vmatprep.subr.mxu0 0.0
    %4596 = vmatpush1.msra.mxu0 0.0
    %4597 = vmatprep.mubr.f32.mxu0 0.0
    %4598 = vmatmul.mubr.f32.gmra.mrb[0].mxu0 %v4525
    %v4599 = vpop.f32.mrb[0].mxu0
    %v4600 = vadd.f32 0.0, %v4599
    %v4601 = vpop.f32.mrb[0].mxu0
    %v4602 = vadd.f32 0.0, %v4601
    %4603 = vmatprep.mubr.f32.mxu0 0.0
    %4604 = vmatmul.mubr.f32.gmra.mrb[0].mxu0 %v4528
    %v4605 = vpop.f32.mrb[0].mxu0
    %v4606 = vadd.f32 0.0, %v4605
    %v4607 = vpop.f32.mrb[0].mxu0
    %v4608 = vadd.f32 0.0, %v4607
    %4609 = vmatprep.mubr.f32.mxu0 0.0
    %4610 = vmatmul.mubr.f32.gmra.mrb[0].mxu0 %v4531
    %v4611 = vpop.f32.mrb[0].mxu0
    %v4612 = vadd.f32 0.0, %v4611
    %v4613 = vpop.f32.mrb[0].mxu0
    %v4614 = vadd.f32 0.0, %v4613
    %4615 = vdwg.mxu0
    %4616 = vmatprep.subr.mxu0 %v4492
    %4617 = vmatpush1.msra.mxu0 %v4491
    %4618 = vmatprep.subr.mxu0 %v4508
    %4619 = vmatpush1.msra.mxu0 %v4507
    %4620 = vmatprep.subr.mxu0 0.0
    %4621 = vmatpush1.msra.mxu0 0.0
    %4622 = vmatprep.subr.mxu0 0.0
    %4623 = vmatpush1.msra.mxu0 0.0
    %4624 = vmatprep.subr.mxu0 0.0
    %4625 = vmatpush1.msra.mxu0 0.0
    %4626 = vmatprep.subr.mxu0 0.0
    %4627 = vmatpush1.msra.mxu0 0.0
    %4628 = vmatprep.subr.mxu0 0.0
    %4629 = vmatpush1.msra.mxu0 0.0
    %4630 = vmatprep.subr.mxu0 0.0
    %4631 = vmatpush1.msra.mxu0 0.0
    %4632 = vmatprep.subr.mxu0 0.0
    %4633 = vmatpush1.msra.mxu0 0.0
    %4634 = vmatprep.subr.mxu0 0.0
    %4635 = vmatpush1.msra.mxu0 0.0
    %4636 = vmatprep.subr.mxu0 0.0
    %4637 = vmatpush1.msra.mxu0 0.0
    %4638 = vmatprep.subr.mxu0 0.0
    %4639 = vmatpush1.msra.mxu0 0.0
    %4640 = vmatprep.subr.mxu0 0.0
    %4641 = vmatpush1.msra.mxu0 0.0
    %4642 = vmatprep.subr.mxu0 0.0
    %4643 = vmatpush1.msra.mxu0 0.0
    %4644 = vmatprep.subr.mxu0 0.0
    %4645 = vmatpush1.msra.mxu0 0.0
    %4646 = vmatprep.subr.mxu0 0.0
    %4647 = vmatpush1.msra.mxu0 0.0
    %4648 = vmatprep.subr.mxu0 0.0
    %4649 = vmatpush1.msra.mxu0 0.0
    %4650 = vmatprep.subr.mxu0 0.0
    %4651 = vmatpush1.msra.mxu0 0.0
    %4652 = vmatprep.subr.mxu0 0.0
    %4653 = vmatpush1.msra.mxu0 0.0
    %4654 = vmatprep.subr.mxu0 0.0
    %4655 = vmatpush1.msra.mxu0 0.0
    %4656 = vmatprep.subr.mxu0 0.0
    %4657 = vmatpush1.msra.mxu0 0.0
    %4658 = vmatprep.subr.mxu0 0.0
    %4659 = vmatpush1.msra.mxu0 0.0
    %4660 = vmatprep.subr.mxu0 0.0
    %4661 = vmatpush1.msra.mxu0 0.0
    %4662 = vmatprep.subr.mxu0 0.0
    %4663 = vmatpush1.msra.mxu0 0.0
    %4664 = vmatprep.subr.mxu0 0.0
    %4665 = vmatpush1.msra.mxu0 0.0
    %4666 = vmatprep.subr.mxu0 0.0
    %4667 = vmatpush1.msra.mxu0 0.0
    %4668 = vmatprep.subr.mxu0 0.0
    %4669 = vmatpush1.msra.mxu0 0.0
    %4670 = vmatprep.subr.mxu0 0.0
    %4671 = vmatpush1.msra.mxu0 0.0
    %4672 = vmatprep.subr.mxu0 0.0
    %4673 = vmatpush1.msra.mxu0 0.0
    %4674 = vmatprep.subr.mxu0 0.0
    %4675 = vmatpush1.msra.mxu0 0.0
    %4676 = vmatprep.subr.mxu0 0.0
    %4677 = vmatpush1.msra.mxu0 0.0
    %4678 = vmatprep.subr.mxu0 0.0
    %4679 = vmatpush1.msra.mxu0 0.0
    %4680 = vmatprep.mubr.f32.mxu0 0.0
    %4681 = vmatmul.mubr.f32.gmra.mrb[0].mxu0 %v4525
    %v4682 = vpop.f32.mrb[0].mxu0
    %v4683 = vadd.f32 0.0, %v4682
    %v4684 = vpop.f32.mrb[0].mxu0
    %v4685 = vadd.f32 0.0, %v4684
    %4686 = vmatprep.mubr.f32.mxu0 0.0
    %4687 = vmatmul.mubr.f32.gmra.mrb[0].mxu0 %v4528
    %v4688 = vpop.f32.mrb[0].mxu0
    %v4689 = vadd.f32 0.0, %v4688
    %v4690 = vpop.f32.mrb[0].mxu0
    %v4691 = vadd.f32 0.0, %v4690
    %4692 = vmatprep.mubr.f32.mxu0 0.0
    %4693 = vmatmul.mubr.f32.gmra.mrb[0].mxu0 %v4531
    %v4694 = vpop.f32.mrb[0].mxu0
    %v4695 = vadd.f32 0.0, %v4694
    %v4696 = vpop.f32.mrb[0].mxu0
    %v4697 = vadd.f32 0.0, %v4696
    %4698 = vdwg.mxu0
    %4699 = vmatprep.subr.mxu0 %v4494
    %4700 = vmatpush1.msra.mxu0 %v4493
    %4701 = vmatprep.subr.mxu0 %v4510
    %4702 = vmatpush1.msra.mxu0 %v4509
    %4703 = vmatprep.subr.mxu0 0.0
    %4704 = vmatpush1.msra.mxu0 0.0
    %4705 = vmatprep.subr.mxu0 0.0
    %4706 = vmatpush1.msra.mxu0 0.0
    %4707 = vmatprep.subr.mxu0 0.0
    %4708 = vmatpush1.msra.mxu0 0.0
    %4709 = vmatprep.subr.mxu0 0.0
    %4710 = vmatpush1.msra.mxu0 0.0
    %4711 = vmatprep.subr.mxu0 0.0
    %4712 = vmatpush1.msra.mxu0 0.0
    %4713 = vmatprep.subr.mxu0 0.0
    %4714 = vmatpush1.msra.mxu0 0.0
    %4715 = vmatprep.subr.mxu0 0.0
    %4716 = vmatpush1.msra.mxu0 0.0
    %4717 = vmatprep.subr.mxu0 0.0
    %4718 = vmatpush1.msra.mxu0 0.0
    %4719 = vmatprep.subr.mxu0 0.0
    %4720 = vmatpush1.msra.mxu0 0.0
    %4721 = vmatprep.subr.mxu0 0.0
    %4722 = vmatpush1.msra.mxu0 0.0
    %4723 = vmatprep.subr.mxu0 0.0
    %4724 = vmatpush1.msra.mxu0 0.0
    %4725 = vmatprep.subr.mxu0 0.0
    %4726 = vmatpush1.msra.mxu0 0.0
    %4727 = vmatprep.subr.mxu0 0.0
    %4728 = vmatpush1.msra.mxu0 0.0
    %4729 = vmatprep.subr.mxu0 0.0
    %4730 = vmatpush1.msra.mxu0 0.0
    %4731 = vmatprep.subr.mxu0 0.0
    %4732 = vmatpush1.msra.mxu0 0.0
    %4733 = vmatprep.subr.mxu0 0.0
    %4734 = vmatpush1.msra.mxu0 0.0
    %4735 = vmatprep.subr.mxu0 0.0
    %4736 = vmatpush1.msra.mxu0 0.0
    %4737 = vmatprep.subr.mxu0 0.0
    %4738 = vmatpush1.msra.mxu0 0.0
    %4739 = vmatprep.subr.mxu0 0.0
    %4740 = vmatpush1.msra.mxu0 0.0
    %4741 = vmatprep.subr.mxu0 0.0
    %4742 = vmatpush1.msra.mxu0 0.0
    %4743 = vmatprep.subr.mxu0 0.0
    %4744 = vmatpush1.msra.mxu0 0.0
    %4745 = vmatprep.subr.mxu0 0.0
    %4746 = vmatpush1.msra.mxu0 0.0
    %4747 = vmatprep.subr.mxu0 0.0
    %4748 = vmatpush1.msra.mxu0 0.0
    %4749 = vmatprep.subr.mxu0 0.0
    %4750 = vmatpush1.msra.mxu0 0.0
    %4751 = vmatprep.subr.mxu0 0.0
    %4752 = vmatpush1.msra.mxu0 0.0
    %4753 = vmatprep.subr.mxu0 0.0
    %4754 = vmatpush1.msra.mxu0 0.0
    %4755 = vmatprep.subr.mxu0 0.0
    %4756 = vmatpush1.msra.mxu0 0.0
    %4757 = vmatprep.subr.mxu0 0.0
    %4758 = vmatpush1.msra.mxu0 0.0
    %4759 = vmatprep.subr.mxu0 0.0
    %4760 = vmatpush1.msra.mxu0 0.0
    %4761 = vmatprep.subr.mxu0 0.0
    %4762 = vmatpush1.msra.mxu0 0.0
    %4763 = vmatprep.mubr.f32.mxu0 0.0
    %4764 = vmatmul.mubr.f32.gmra.mrb[0].mxu0 %v4525
    %v4765 = vpop.f32.mrb[0].mxu0
    %v4766 = vadd.f32 0.0, %v4765
    %v4767 = vpop.f32.mrb[0].mxu0
    %v4768 = vadd.f32 0.0, %v4767
    %4769 = vmatprep.mubr.f32.mxu0 0.0
    %4770 = vmatmul.mubr.f32.gmra.mrb[0].mxu0 %v4528
    %v4771 = vpop.f32.mrb[0].mxu0
    %v4772 = vadd.f32 0.0, %v4771
    %v4773 = vpop.f32.mrb[0].mxu0
    %v4774 = vadd.f32 0.0, %v4773
    %4775 = vmatprep.mubr.f32.mxu0 0.0
    %4776 = vmatmul.mubr.f32.gmra.mrb[0].mxu0 %v4531
    %v4777 = vpop.f32.mrb[0].mxu0
    %v4778 = vadd.f32 0.0, %v4777
    %v4779 = vpop.f32.mrb[0].mxu0
    %v4780 = vadd.f32 0.0, %v4779
    %4781 = vdwg.mxu0
    %4782 = vmatprep.subr.mxu0 %v4496
    %4783 = vmatpush1.msra.mxu0 %v4495
    %4784 = vmatprep.subr.mxu0 %v4512
    %4785 = vmatpush1.msra.mxu0 %v4511
    %4786 = vmatprep.subr.mxu0 0.0
    %4787 = vmatpush1.msra.mxu0 0.0
    %4788 = vmatprep.subr.mxu0 0.0
    %4789 = vmatpush1.msra.mxu0 0.0
    %4790 = vmatprep.subr.mxu0 0.0
    %4791 = vmatpush1.msra.mxu0 0.0
    %4792 = vmatprep.subr.mxu0 0.0
    %4793 = vmatpush1.msra.mxu0 0.0
    %4794 = vmatprep.subr.mxu0 0.0
    %4795 = vmatpush1.msra.mxu0 0.0
    %4796 = vmatprep.subr.mxu0 0.0
    %4797 = vmatpush1.msra.mxu0 0.0
    %4798 = vmatprep.subr.mxu0 0.0
    %4799 = vmatpush1.msra.mxu0 0.0
    %4800 = vmatprep.subr.mxu0 0.0
    %4801 = vmatpush1.msra.mxu0 0.0
    %4802 = vmatprep.subr.mxu0 0.0
    %4803 = vmatpush1.msra.mxu0 0.0
    %4804 = vmatprep.subr.mxu0 0.0
    %4805 = vmatpush1.msra.mxu0 0.0
    %4806 = vmatprep.subr.mxu0 0.0
    %4807 = vmatpush1.msra.mxu0 0.0
    %4808 = vmatprep.subr.mxu0 0.0
    %4809 = vmatpush1.msra.mxu0 0.0
    %4810 = vmatprep.subr.mxu0 0.0
    %4811 = vmatpush1.msra.mxu0 0.0
    %4812 = vmatprep.subr.mxu0 0.0
    %4813 = vmatpush1.msra.mxu0 0.0
    %4814 = vmatprep.subr.mxu0 0.0
    %4815 = vmatpush1.msra.mxu0 0.0
    %4816 = vmatprep.subr.mxu0 0.0
    %4817 = vmatpush1.msra.mxu0 0.0
    %4818 = vmatprep.subr.mxu0 0.0
    %4819 = vmatpush1.msra.mxu0 0.0
    %4820 = vmatprep.subr.mxu0 0.0
    %4821 = vmatpush1.msra.mxu0 0.0
    %4822 = vmatprep.subr.mxu0 0.0
    %4823 = vmatpush1.msra.mxu0 0.0
    %4824 = vmatprep.subr.mxu0 0.0
    %4825 = vmatpush1.msra.mxu0 0.0
    %4826 = vmatprep.subr.mxu0 0.0
    %4827 = vmatpush1.msra.mxu0 0.0
    %4828 = vmatprep.subr.mxu0 0.0
    %4829 = vmatpush1.msra.mxu0 0.0
    %4830 = vmatprep.subr.mxu0 0.0
    %4831 = vmatpush1.msra.mxu0 0.0
    %4832 = vmatprep.subr.mxu0 0.0
    %4833 = vmatpush1.msra.mxu0 0.0
    %4834 = vmatprep.subr.mxu0 0.0
    %4835 = vmatpush1.msra.mxu0 0.0
    %4836 = vmatprep.subr.mxu0 0.0
    %4837 = vmatpush1.msra.mxu0 0.0
    %4838 = vmatprep.subr.mxu0 0.0
    %4839 = vmatpush1.msra.mxu0 0.0
    %4840 = vmatprep.subr.mxu0 0.0
    %4841 = vmatpush1.msra.mxu0 0.0
    %4842 = vmatprep.subr.mxu0 0.0
    %4843 = vmatpush1.msra.mxu0 0.0
    %4844 = vmatprep.subr.mxu0 0.0
    %4845 = vmatpush1.msra.mxu0 0.0
    %4846 = vmatprep.mubr.f32.mxu0 0.0
    %4847 = vmatmul.mubr.f32.gmra.mrb[0].mxu0 %v4525
    %v4848 = vpop.f32.mrb[0].mxu0
    %v4849 = vadd.f32 0.0, %v4848
    %v4850 = vpop.f32.mrb[0].mxu0
    %v4851 = vadd.f32 0.0, %v4850
    %4852 = vmatprep.mubr.f32.mxu0 0.0
    %4853 = vmatmul.mubr.f32.gmra.mrb[0].mxu0 %v4528
    %v4854 = vpop.f32.mrb[0].mxu0
    %v4855 = vadd.f32 0.0, %v4854
    %v4856 = vpop.f32.mrb[0].mxu0
    %v4857 = vadd.f32 0.0, %v4856
    %4858 = vmatprep.mubr.f32.mxu0 0.0
    %4859 = vmatmul.mubr.f32.gmra.mrb[0].mxu0 %v4531
    %v4860 = vpop.f32.mrb[0].mxu0
    %v4861 = vadd.f32 0.0, %v4860
    %v4862 = vpop.f32.mrb[0].mxu0
    %v4863 = vadd.f32 0.0, %v4862
    %4864 = vdwg.mxu0
    %4865 = vmatprep.subr.mxu0 %v4498
    %4866 = vmatpush1.msra.mxu0 %v4497
    %4867 = vmatprep.subr.mxu0 %v4514
    %4868 = vmatpush1.msra.mxu0 %v4513
    %4869 = vmatprep.subr.mxu0 0.0
    %4870 = vmatpush1.msra.mxu0 0.0
    %4871 = vmatprep.subr.mxu0 0.0
    %4872 = vmatpush1.msra.mxu0 0.0
    %4873 = vmatprep.subr.mxu0 0.0
    %4874 = vmatpush1.msra.mxu0 0.0
    %4875 = vmatprep.subr.mxu0 0.0
    %4876 = vmatpush1.msra.mxu0 0.0
    %4877 = vmatprep.subr.mxu0 0.0
    %4878 = vmatpush1.msra.mxu0 0.0
    %4879 = vmatprep.subr.mxu0 0.0
    %4880 = vmatpush1.msra.mxu0 0.0
    %4881 = vmatprep.subr.mxu0 0.0
    %4882 = vmatpush1.msra.mxu0 0.0
    %4883 = vmatprep.subr.mxu0 0.0
    %4884 = vmatpush1.msra.mxu0 0.0
    %4885 = vmatprep.subr.mxu0 0.0
    %4886 = vmatpush1.msra.mxu0 0.0
    %4887 = vmatprep.subr.mxu0 0.0
    %4888 = vmatpush1.msra.mxu0 0.0
    %4889 = vmatprep.subr.mxu0 0.0
    %4890 = vmatpush1.msra.mxu0 0.0
    %4891 = vmatprep.subr.mxu0 0.0
    %4892 = vmatpush1.msra.mxu0 0.0
    %4893 = vmatprep.subr.mxu0 0.0
    %4894 = vmatpush1.msra.mxu0 0.0
    %4895 = vmatprep.subr.mxu0 0.0
    %4896 = vmatpush1.msra.mxu0 0.0
    %4897 = vmatprep.subr.mxu0 0.0
    %4898 = vmatpush1.msra.mxu0 0.0
    %4899 = vmatprep.subr.mxu0 0.0
    %4900 = vmatpush1.msra.mxu0 0.0
    %4901 = vmatprep.subr.mxu0 0.0
    %4902 = vmatpush1.msra.mxu0 0.0
    %4903 = vmatprep.subr.mxu0 0.0
    %4904 = vmatpush1.msra.mxu0 0.0
    %4905 = vmatprep.subr.mxu0 0.0
    %4906 = vmatpush1.msra.mxu0 0.0
    %4907 = vmatprep.subr.mxu0 0.0
    %4908 = vmatpush1.msra.mxu0 0.0
    %4909 = vmatprep.subr.mxu0 0.0
    %4910 = vmatpush1.msra.mxu0 0.0
    %4911 = vmatprep.subr.mxu0 0.0
    %4912 = vmatpush1.msra.mxu0 0.0
    %4913 = vmatprep.subr.mxu0 0.0
    %4914 = vmatpush1.msra.mxu0 0.0
    %4915 = vmatprep.subr.mxu0 0.0
    %4916 = vmatpush1.msra.mxu0 0.0
    %4917 = vmatprep.subr.mxu0 0.0
    %4918 = vmatpush1.msra.mxu0 0.0
    %4919 = vmatprep.subr.mxu0 0.0
    %4920 = vmatpush1.msra.mxu0 0.0
    %4921 = vmatprep.subr.mxu0 0.0
    %4922 = vmatpush1.msra.mxu0 0.0
    %4923 = vmatprep.subr.mxu0 0.0
    %4924 = vmatpush1.msra.mxu0 0.0
    %4925 = vmatprep.subr.mxu0 0.0
    %4926 = vmatpush1.msra.mxu0 0.0
    %4927 = vmatprep.subr.mxu0 0.0
    %4928 = vmatpush1.msra.mxu0 0.0
    %4929 = vmatprep.mubr.f32.mxu0 0.0
    %4930 = vmatmul.mubr.f32.gmra.mrb[0].mxu0 %v4525
    %v4931 = vpop.f32.mrb[0].mxu0
    %v4932 = vadd.f32 0.0, %v4931
    %v4933 = vpop.f32.mrb[0].mxu0
    %v4934 = vadd.f32 0.0, %v4933
    %4935 = vmatprep.mubr.f32.mxu0 0.0
    %4936 = vmatmul.mubr.f32.gmra.mrb[0].mxu0 %v4528
    %v4937 = vpop.f32.mrb[0].mxu0
    %v4938 = vadd.f32 0.0, %v4937
    %v4939 = vpop.f32.mrb[0].mxu0
    %v4940 = vadd.f32 0.0, %v4939
    %4941 = vmatprep.mubr.f32.mxu0 0.0
    %4942 = vmatmul.mubr.f32.gmra.mrb[0].mxu0 %v4531
    %v4943 = vpop.f32.mrb[0].mxu0
    %v4944 = vadd.f32 0.0, %v4943
    %v4945 = vpop.f32.mrb[0].mxu0
    %v4946 = vadd.f32 0.0, %v4945
    %4947 = vdwg.mxu0
    %4948 = vmatprep.subr.mxu0 %v4500
    %4949 = vmatpush1.msra.mxu0 %v4499
    %4950 = vmatprep.subr.mxu0 %v4516
    %4951 = vmatpush1.msra.mxu0 %v4515
    %4952 = vmatprep.subr.mxu0 0.0
    %4953 = vmatpush1.msra.mxu0 0.0
    %4954 = vmatprep.subr.mxu0 0.0
    %4955 = vmatpush1.msra.mxu0 0.0
    %4956 = vmatprep.subr.mxu0 0.0
    %4957 = vmatpush1.msra.mxu0 0.0
    %4958 = vmatprep.subr.mxu0 0.0
    %4959 = vmatpush1.msra.mxu0 0.0
    %4960 = vmatprep.subr.mxu0 0.0
    %4961 = vmatpush1.msra.mxu0 0.0
    %4962 = vmatprep.subr.mxu0 0.0
    %4963 = vmatpush1.msra.mxu0 0.0
    %4964 = vmatprep.subr.mxu0 0.0
    %4965 = vmatpush1.msra.mxu0 0.0
    %4966 = vmatprep.subr.mxu0 0.0
    %4967 = vmatpush1.msra.mxu0 0.0
    %4968 = vmatprep.subr.mxu0 0.0
    %4969 = vmatpush1.msra.mxu0 0.0
    %4970 = vmatprep.subr.mxu0 0.0
    %4971 = vmatpush1.msra.mxu0 0.0
    %4972 = vmatprep.subr.mxu0 0.0
    %4973 = vmatpush1.msra.mxu0 0.0
    %4974 = vmatprep.subr.mxu0 0.0
    %4975 = vmatpush1.msra.mxu0 0.0
    %4976 = vmatprep.subr.mxu0 0.0
    %4977 = vmatpush1.msra.mxu0 0.0
    %4978 = vmatprep.subr.mxu0 0.0
    %4979 = vmatpush1.msra.mxu0 0.0
    %4980 = vmatprep.subr.mxu0 0.0
    %4981 = vmatpush1.msra.mxu0 0.0
    %4982 = vmatprep.subr.mxu0 0.0
    %4983 = vmatpush1.msra.mxu0 0.0
    %4984 = vmatprep.subr.mxu0 0.0
    %4985 = vmatpush1.msra.mxu0 0.0
    %4986 = vmatprep.subr.mxu0 0.0
    %4987 = vmatpush1.msra.mxu0 0.0
    %4988 = vmatprep.subr.mxu0 0.0
    %4989 = vmatpush1.msra.mxu0 0.0
    %4990 = vmatprep.subr.mxu0 0.0
    %4991 = vmatpush1.msra.mxu0 0.0
    %4992 = vmatprep.subr.mxu0 0.0
    %4993 = vmatpush1.msra.mxu0 0.0
    %4994 = vmatprep.subr.mxu0 0.0
    %4995 = vmatpush1.msra.mxu0 0.0
    %4996 = vmatprep.subr.mxu0 0.0
    %4997 = vmatpush1.msra.mxu0 0.0
    %4998 = vmatprep.subr.mxu0 0.0
    %4999 = vmatpush1.msra.mxu0 0.0
    %5000 = vmatprep.subr.mxu0 0.0
    %5001 = vmatpush1.msra.mxu0 0.0
    %5002 = vmatprep.subr.mxu0 0.0
    %5003 = vmatpush1.msra.mxu0 0.0
    %5004 = vmatprep.subr.mxu0 0.0
    %5005 = vmatpush1.msra.mxu0 0.0
    %5006 = vmatprep.subr.mxu0 0.0
    %5007 = vmatpush1.msra.mxu0 0.0
    %5008 = vmatprep.subr.mxu0 0.0
    %5009 = vmatpush1.msra.mxu0 0.0
    %5010 = vmatprep.subr.mxu0 0.0
    %5011 = vmatpush1.msra.mxu0 0.0
    %5012 = vmatprep.mubr.f32.mxu0 0.0
    %5013 = vmatmul.mubr.f32.gmra.mrb[0].mxu0 %v4525
    %v5014 = vpop.f32.mrb[0].mxu0
    %v5015 = vadd.f32 0.0, %v5014
    %v5016 = vpop.f32.mrb[0].mxu0
    %v5017 = vadd.f32 0.0, %v5016
    %5018 = vmatprep.mubr.f32.mxu0 0.0
    %5019 = vmatmul.mubr.f32.gmra.mrb[0].mxu0 %v4528
    %v5020 = vpop.f32.mrb[0].mxu0
    %v5021 = vadd.f32 0.0, %v5020
    %v5022 = vpop.f32.mrb[0].mxu0
    %v5023 = vadd.f32 0.0, %v5022
    %5024 = vmatprep.mubr.f32.mxu0 0.0
    %5025 = vmatmul.mubr.f32.gmra.mrb[0].mxu0 %v4531
    %v5026 = vpop.f32.mrb[0].mxu0
    %v5027 = vadd.f32 0.0, %v5026
    %v5028 = vpop.f32.mrb[0].mxu0
    %v5029 = vadd.f32 0.0, %v5028
    %5030 = vdwg.mxu0
    %5031 = vmatprep.subr.mxu0 %v4502
    %5032 = vmatpush1.msra.mxu0 %v4501
    %5033 = vmatprep.subr.mxu0 %v4518
    %5034 = vmatpush1.msra.mxu0 %v4517
    %5035 = vmatprep.subr.mxu0 0.0
    %5036 = vmatpush1.msra.mxu0 0.0
    %5037 = vmatprep.subr.mxu0 0.0
    %5038 = vmatpush1.msra.mxu0 0.0
    %5039 = vmatprep.subr.mxu0 0.0
    %5040 = vmatpush1.msra.mxu0 0.0
    %5041 = vmatprep.subr.mxu0 0.0
    %5042 = vmatpush1.msra.mxu0 0.0
    %5043 = vmatprep.subr.mxu0 0.0
    %5044 = vmatpush1.msra.mxu0 0.0
    %5045 = vmatprep.subr.mxu0 0.0
    %5046 = vmatpush1.msra.mxu0 0.0
    %5047 = vmatprep.subr.mxu0 0.0
    %5048 = vmatpush1.msra.mxu0 0.0
    %5049 = vmatprep.subr.mxu0 0.0
    %5050 = vmatpush1.msra.mxu0 0.0
    %5051 = vmatprep.subr.mxu0 0.0
    %5052 = vmatpush1.msra.mxu0 0.0
    %5053 = vmatprep.subr.mxu0 0.0
    %5054 = vmatpush1.msra.mxu0 0.0
    %5055 = vmatprep.subr.mxu0 0.0
    %5056 = vmatpush1.msra.mxu0 0.0
    %5057 = vmatprep.subr.mxu0 0.0
    %5058 = vmatpush1.msra.mxu0 0.0
    %5059 = vmatprep.subr.mxu0 0.0
    %5060 = vmatpush1.msra.mxu0 0.0
    %5061 = vmatprep.subr.mxu0 0.0
    %5062 = vmatpush1.msra.mxu0 0.0
    %5063 = vmatprep.subr.mxu0 0.0
    %5064 = vmatpush1.msra.mxu0 0.0
    %5065 = vmatprep.subr.mxu0 0.0
    %5066 = vmatpush1.msra.mxu0 0.0
    %5067 = vmatprep.subr.mxu0 0.0
    %5068 = vmatpush1.msra.mxu0 0.0
    %5069 = vmatprep.subr.mxu0 0.0
    %5070 = vmatpush1.msra.mxu0 0.0
    %5071 = vmatprep.subr.mxu0 0.0
    %5072 = vmatpush1.msra.mxu0 0.0
    %5073 = vmatprep.subr.mxu0 0.0
    %5074 = vmatpush1.msra.mxu0 0.0
    %5075 = vmatprep.subr.mxu0 0.0
    %5076 = vmatpush1.msra.mxu0 0.0
    %5077 = vmatprep.subr.mxu0 0.0
    %5078 = vmatpush1.msra.mxu0 0.0
    %5079 = vmatprep.subr.mxu0 0.0
    %5080 = vmatpush1.msra.mxu0 0.0
    %5081 = vmatprep.subr.mxu0 0.0
    %5082 = vmatpush1.msra.mxu0 0.0
    %5083 = vmatprep.subr.mxu0 0.0
    %5084 = vmatpush1.msra.mxu0 0.0
    %5085 = vmatprep.subr.mxu0 0.0
    %5086 = vmatpush1.msra.mxu0 0.0
    %5087 = vmatprep.subr.mxu0 0.0
    %5088 = vmatpush1.msra.mxu0 0.0
    %5089 = vmatprep.subr.mxu0 0.0
    %5090 = vmatpush1.msra.mxu0 0.0
    %5091 = vmatprep.subr.mxu0 0.0
    %5092 = vmatpush1.msra.mxu0 0.0
    %5093 = vmatprep.subr.mxu0 0.0
    %5094 = vmatpush1.msra.mxu0 0.0
    %5095 = vmatprep.mubr.f32.mxu0 0.0
    %5096 = vmatmul.mubr.f32.gmra.mrb[0].mxu0 %v4525
    %v5097 = vpop.f32.mrb[0].mxu0
    %v5098 = vadd.f32 0.0, %v5097
    %v5099 = vpop.f32.mrb[0].mxu0
    %v5100 = vadd.f32 0.0, %v5099
    %5101 = vmatprep.mubr.f32.mxu0 0.0
    %5102 = vmatmul.mubr.f32.gmra.mrb[0].mxu0 %v4528
    %v5103 = vpop.f32.mrb[0].mxu0
    %v5104 = vadd.f32 0.0, %v5103
    %v5105 = vpop.f32.mrb[0].mxu0
    %v5106 = vadd.f32 0.0, %v5105
    %5107 = vmatprep.mubr.f32.mxu0 0.0
    %5108 = vmatmul.mubr.f32.gmra.mrb[0].mxu0 %v4531
    %v5109 = vpop.f32.mrb[0].mxu0
    %v5110 = vadd.f32 0.0, %v5109
    %v5111 = vpop.f32.mrb[0].mxu0
    %v5112 = vadd.f32 0.0, %v5111
    %5113 = vdwg.mxu0
    %5114 = vmatprep.subr.mxu0 %v4504
    %5115 = vmatpush1.msra.mxu0 %v4503
    %5116 = vmatprep.subr.mxu0 %v4520
    %5117 = vmatpush1.msra.mxu0 %v4519
    %5118 = vmatprep.subr.mxu0 0.0
    %5119 = vmatpush1.msra.mxu0 0.0
    %5120 = vmatprep.subr.mxu0 0.0
    %5121 = vmatpush1.msra.mxu0 0.0
    %5122 = vmatprep.subr.mxu0 0.0
    %5123 = vmatpush1.msra.mxu0 0.0
    %5124 = vmatprep.subr.mxu0 0.0
    %5125 = vmatpush1.msra.mxu0 0.0
    %5126 = vmatprep.subr.mxu0 0.0
    %5127 = vmatpush1.msra.mxu0 0.0
    %5128 = vmatprep.subr.mxu0 0.0
    %5129 = vmatpush1.msra.mxu0 0.0
    %5130 = vmatprep.subr.mxu0 0.0
    %5131 = vmatpush1.msra.mxu0 0.0
    %5132 = vmatprep.subr.mxu0 0.0
    %5133 = vmatpush1.msra.mxu0 0.0
    %5134 = vmatprep.subr.mxu0 0.0
    %5135 = vmatpush1.msra.mxu0 0.0
    %5136 = vmatprep.subr.mxu0 0.0
    %5137 = vmatpush1.msra.mxu0 0.0
    %5138 = vmatprep.subr.mxu0 0.0
    %5139 = vmatpush1.msra.mxu0 0.0
    %5140 = vmatprep.subr.mxu0 0.0
    %5141 = vmatpush1.msra.mxu0 0.0
    %5142 = vmatprep.subr.mxu0 0.0
    %5143 = vmatpush1.msra.mxu0 0.0
    %5144 = vmatprep.subr.mxu0 0.0
    %5145 = vmatpush1.msra.mxu0 0.0
    %5146 = vmatprep.subr.mxu0 0.0
    %5147 = vmatpush1.msra.mxu0 0.0
    %5148 = vmatprep.subr.mxu0 0.0
    %5149 = vmatpush1.msra.mxu0 0.0
    %5150 = vmatprep.subr.mxu0 0.0
    %5151 = vmatpush1.msra.mxu0 0.0
    %5152 = vmatprep.subr.mxu0 0.0
    %5153 = vmatpush1.msra.mxu0 0.0
    %5154 = vmatprep.subr.mxu0 0.0
    %5155 = vmatpush1.msra.mxu0 0.0
    %5156 = vmatprep.subr.mxu0 0.0
    %5157 = vmatpush1.msra.mxu0 0.0
    %5158 = vmatprep.subr.mxu0 0.0
    %5159 = vmatpush1.msra.mxu0 0.0
    %5160 = vmatprep.subr.mxu0 0.0
    %5161 = vmatpush1.msra.mxu0 0.0
    %5162 = vmatprep.subr.mxu0 0.0
    %5163 = vmatpush1.msra.mxu0 0.0
    %5164 = vmatprep.subr.mxu0 0.0
    %5165 = vmatpush1.msra.mxu0 0.0
    %5166 = vmatprep.subr.mxu0 0.0
    %5167 = vmatpush1.msra.mxu0 0.0
    %5168 = vmatprep.subr.mxu0 0.0
    %5169 = vmatpush1.msra.mxu0 0.0
    %5170 = vmatprep.subr.mxu0 0.0
    %5171 = vmatpush1.msra.mxu0 0.0
    %5172 = vmatprep.subr.mxu0 0.0
    %5173 = vmatpush1.msra.mxu0 0.0
    %5174 = vmatprep.subr.mxu0 0.0
    %5175 = vmatpush1.msra.mxu0 0.0
    %5176 = vmatprep.subr.mxu0 0.0
    %5177 = vmatpush1.msra.mxu0 0.0
    %5178 = vmatprep.mubr.f32.mxu0 0.0
    %5179 = vmatmul.mubr.f32.gmra.mrb[0].mxu0 %v4525
    %v5180 = vpop.f32.mrb[0].mxu0
    %v5181 = vadd.f32 0.0, %v5180
    %v5182 = vpop.f32.mrb[0].mxu0
    %v5183 = vadd.f32 0.0, %v5182
    %5184 = vmatprep.mubr.f32.mxu0 0.0
    %5185 = vmatmul.mubr.f32.gmra.mrb[0].mxu0 %v4528
    %v5186 = vpop.f32.mrb[0].mxu0
    %v5187 = vadd.f32 0.0, %v5186
    %v5188 = vpop.f32.mrb[0].mxu0
    %v5189 = vadd.f32 0.0, %v5188
    %5190 = vmatprep.mubr.f32.mxu0 0.0
    %5191 = vmatmul.mubr.f32.gmra.mrb[0].mxu0 %v4531
    %v5192 = vpop.f32.mrb[0].mxu0
    %v5193 = vadd.f32 0.0, %v5192
    %v5194 = vpop.f32.mrb[0].mxu0
    %v5195 = vadd.f32 0.0, %v5194
    %5196 = vdwg.mxu0
    %5197 = vrot.lane.b32.xlu0 %v4600, 1
    %v5198 = vpop.permute.xlu0 %5197
    %5199 = vrot.lane.b32.xlu0 %v4602, 1
    %v5200 = vpop.permute.xlu0 %5199
    %5201 = vrot.lane.b32.xlu0 %v4683, 1
    %v5202 = vpop.permute.xlu0 %5201
    %5203 = vrot.lane.b32.xlu0 %v4685, 1
    %v5204 = vpop.permute.xlu0 %5203
    %5205 = vrot.lane.b32.xlu0 %v4766, 1
    %v5206 = vpop.permute.xlu0 %5205
    %5207 = vrot.lane.b32.xlu0 %v4768, 1
    %v5208 = vpop.permute.xlu0 %5207
    %5209 = vrot.lane.b32.xlu0 %v4849, 1
    %v5210 = vpop.permute.xlu0 %5209
    %5211 = vrot.lane.b32.xlu0 %v4851, 1
    %v5212 = vpop.permute.xlu0 %5211
    %5213 = vrot.lane.b32.xlu0 %v4932, 1
    %v5214 = vpop.permute.xlu0 %5213
    %5215 = vrot.lane.b32.xlu0 %v4934, 1
    %v5216 = vpop.permute.xlu0 %5215
    %5217 = vrot.lane.b32.xlu0 %v5015, 1
    %v5218 = vpop.permute.xlu0 %5217
    %5219 = vrot.lane.b32.xlu0 %v5017, 1
    %v5220 = vpop.permute.xlu0 %5219
    %5221 = vrot.lane.b32.xlu0 %v5098, 1
    %v5222 = vpop.permute.xlu0 %5221
    %5223 = vrot.lane.b32.xlu0 %v5100, 1
    %v5224 = vpop.permute.xlu0 %5223
    %5225 = vrot.lane.b32.xlu0 %v5181, 1
    %v5226 = vpop.permute.xlu0 %5225
    %5227 = vrot.lane.b32.xlu0 %v5183, 1
    %v5228 = vpop.permute.xlu0 %5227
    %v5229 = vsel %vm1021, %v5226, %v5228
    %v5230 = vsel %vm1021, %v5224, %v5226
    %v5231 = vsel %vm1021, %v5222, %v5224
    %v5232 = vsel %vm1021, %v5220, %v5222
    %v5233 = vsel %vm1021, %v5218, %v5220
    %v5234 = vsel %vm1021, %v5216, %v5218
    %v5235 = vsel %vm1021, %v5214, %v5216
    %v5236 = vsel %vm1021, %v5212, %v5214
    %v5237 = vsel %vm1021, %v5210, %v5212
    %v5238 = vsel %vm1021, %v5208, %v5210
    %v5239 = vsel %vm1021, %v5206, %v5208
    %v5240 = vsel %vm1021, %v5204, %v5206
    %v5241 = vsel %vm1021, %v5202, %v5204
    %v5242 = vsel %vm1021, %v5200, %v5202
    %v5243 = vsel %vm1021, %v5198, %v5200
    %v5244 = vsel %vm1021, %v5228, %v5198
    %v5245 = vmul.f32 %v5244, %v120
    %v5246 = vmul.f32 %v5243, %v121
    %v5247 = vmul.f32 %v5242, %v122
    %v5248 = vmul.f32 %v5241, %v123
    %v5249 = vmul.f32 %v5240, %v124
    %v5250 = vmul.f32 %v5239, %v125
    %v5251 = vmul.f32 %v5238, %v126
    %v5252 = vmul.f32 %v5237, %v127
    %v5253 = vmul.f32 %v5236, %v128
    %v5254 = vmul.f32 %v5235, %v129
    %v5255 = vmul.f32 %v5234, %v130
    %v5256 = vmul.f32 %v5233, %v131
    %v5257 = vmul.f32 %v5232, %v132
    %v5258 = vmul.f32 %v5231, %v133
    %v5259 = vmul.f32 %v5230, %v134
    %v5260 = vmul.f32 %v5229, %v135
    %v5261 = vadd.f32 %v5245, %v4606
    %v5262 = vadd.f32 %v5246, %v4608
    %v5263 = vadd.f32 %v5247, %v4689
    %v5264 = vadd.f32 %v5248, %v4691
    %v5265 = vadd.f32 %v5249, %v4772
    %v5266 = vadd.f32 %v5250, %v4774
    %v5267 = vadd.f32 %v5251, %v4855
    %v5268 = vadd.f32 %v5252, %v4857
    %v5269 = vadd.f32 %v5253, %v4938
    %v5270 = vadd.f32 %v5254, %v4940
    %v5271 = vadd.f32 %v5255, %v5021
    %v5272 = vadd.f32 %v5256, %v5023
    %v5273 = vadd.f32 %v5257, %v5104
    %v5274 = vadd.f32 %v5258, %v5106
    %v5275 = vadd.f32 %v5259, %v5187
    %v5276 = vadd.f32 %v5260, %v5189
    %5277 = vrot.lane.b32.xlu0 %v4612, 127
    %v5278 = vpop.permute.xlu0 %5277
    %5279 = vrot.lane.b32.xlu0 %v4614, 127
    %v5280 = vpop.permute.xlu0 %5279
    %5281 = vrot.lane.b32.xlu0 %v4695, 127
    %v5282 = vpop.permute.xlu0 %5281
    %5283 = vrot.lane.b32.xlu0 %v4697, 127
    %v5284 = vpop.permute.xlu0 %5283
    %5285 = vrot.lane.b32.xlu0 %v4778, 127
    %v5286 = vpop.permute.xlu0 %5285
    %5287 = vrot.lane.b32.xlu0 %v4780, 127
    %v5288 = vpop.permute.xlu0 %5287
    %5289 = vrot.lane.b32.xlu0 %v4861, 127
    %v5290 = vpop.permute.xlu0 %5289
    %5291 = vrot.lane.b32.xlu0 %v4863, 127
    %v5292 = vpop.permute.xlu0 %5291
    %5293 = vrot.lane.b32.xlu0 %v4944, 127
    %v5294 = vpop.permute.xlu0 %5293
    %5295 = vrot.lane.b32.xlu0 %v4946, 127
    %v5296 = vpop.permute.xlu0 %5295
    %5297 = vrot.lane.b32.xlu0 %v5027, 127
    %v5298 = vpop.permute.xlu0 %5297
    %5299 = vrot.lane.b32.xlu0 %v5029, 127
    %v5300 = vpop.permute.xlu0 %5299
    %5301 = vrot.lane.b32.xlu0 %v5110, 127
    %v5302 = vpop.permute.xlu0 %5301
    %5303 = vrot.lane.b32.xlu0 %v5112, 127
    %v5304 = vpop.permute.xlu0 %5303
    %5305 = vrot.lane.b32.xlu0 %v5193, 127
    %v5306 = vpop.permute.xlu0 %5305
    %5307 = vrot.lane.b32.xlu0 %v5195, 127
    %v5308 = vpop.permute.xlu0 %5307
    %v5309 = vsel %vm1102, %v5306, %v5308
    %v5310 = vsel %vm1102, %v5304, %v5306
    %v5311 = vsel %vm1102, %v5302, %v5304
    %v5312 = vsel %vm1102, %v5300, %v5302
    %v5313 = vsel %vm1102, %v5298, %v5300
    %v5314 = vsel %vm1102, %v5296, %v5298
    %v5315 = vsel %vm1102, %v5294, %v5296
    %v5316 = vsel %vm1102, %v5292, %v5294
    %v5317 = vsel %vm1102, %v5290, %v5292
    %v5318 = vsel %vm1102, %v5288, %v5290
    %v5319 = vsel %vm1102, %v5286, %v5288
    %v5320 = vsel %vm1102, %v5284, %v5286
    %v5321 = vsel %vm1102, %v5282, %v5284
    %v5322 = vsel %vm1102, %v5280, %v5282
    %v5323 = vsel %vm1102, %v5278, %v5280
    %v5324 = vsel %vm1102, %v5308, %v5278
    %v5325 = vmul.f32 %v5323, %v168
    %v5326 = vmul.f32 %v5322, %v169
    %v5327 = vmul.f32 %v5321, %v170
    %v5328 = vmul.f32 %v5320, %v171
    %v5329 = vmul.f32 %v5319, %v172
    %v5330 = vmul.f32 %v5318, %v173
    %v5331 = vmul.f32 %v5317, %v174
    %v5332 = vmul.f32 %v5316, %v175
    %v5333 = vmul.f32 %v5315, %v176
    %v5334 = vmul.f32 %v5314, %v177
    %v5335 = vmul.f32 %v5313, %v178
    %v5336 = vmul.f32 %v5312, %v179
    %v5337 = vmul.f32 %v5311, %v180
    %v5338 = vmul.f32 %v5310, %v181
    %v5339 = vmul.f32 %v5309, %v182
    %v5340 = vmul.f32 %v5324, %v183
    %v5341 = vadd.f32 %v5261, %v5325
    %v5342 = vadd.f32 %v5262, %v5326
    %v5343 = vadd.f32 %v5263, %v5327
    %v5344 = vadd.f32 %v5264, %v5328
    %v5345 = vadd.f32 %v5265, %v5329
    %v5346 = vadd.f32 %v5266, %v5330
    %v5347 = vadd.f32 %v5267, %v5331
    %v5348 = vadd.f32 %v5268, %v5332
    %v5349 = vadd.f32 %v5269, %v5333
    %v5350 = vadd.f32 %v5270, %v5334
    %v5351 = vadd.f32 %v5271, %v5335
    %v5352 = vadd.f32 %v5272, %v5336
    %v5353 = vadd.f32 %v5273, %v5337
    %v5354 = vadd.f32 %v5274, %v5338
    %v5355 = vadd.f32 %v5275, %v5339
    %v5356 = vadd.f32 %v5276, %v5340
    %v5357 = vld [vmem:[#allocation2] sm:$0x1]
    %5359 = vset.pattern.permute.xlu0 0
    %5360 = vperm.xlu0 %5359, %v5357
    %v5361 = vpop.permute.xlu0 %5360
    %v5363 = vlaneseq
    %v5364 = vshrl.u32 %v5363, 7
    %v5365 = vsub.s32 0, %v5364
    %v5366 = vrot.slane %v5361, %v5365
    %v5367 = vadd.f32 %v5341, %v5366
    %v5368 = vadd.f32 %v5342, %v5366
    %v5369 = vadd.f32 %v5343, %v5366
    %v5370 = vadd.f32 %v5344, %v5366
    %v5371 = vadd.f32 %v5345, %v5366
    %v5372 = vadd.f32 %v5346, %v5366
    %v5373 = vadd.f32 %v5347, %v5366
    %v5374 = vadd.f32 %v5348, %v5366
    %v5375 = vadd.f32 %v5349, %v5366
    %v5376 = vadd.f32 %v5350, %v5366
    %v5377 = vadd.f32 %v5351, %v5366
    %v5378 = vadd.f32 %v5352, %v5366
    %v5379 = vadd.f32 %v5353, %v5366
    %v5380 = vadd.f32 %v5354, %v5366
    %v5381 = vadd.f32 %v5355, %v5366
    %v5382 = vadd.f32 %v5356, %v5366
    %v5384 = vrot.slane %v5368, 7
    %v5387 = vrot.slane %v5369, 6
    %v5390 = vrot.slane %v5370, 5
    %v5393 = vrot.slane %v5371, 4
    %v5396 = vrot.slane %v5372, 3
    %v5399 = vrot.slane %v5373, 2
    %v5402 = vrot.slane %v5374, 1
    %v5405 = vrot.slane %v5376, 7
    %v5408 = vrot.slane %v5377, 6
    %v5411 = vrot.slane %v5378, 5
    %v5414 = vrot.slane %v5379, 4
    %v5417 = vrot.slane %v5380, 3
    %v5420 = vrot.slane %v5381, 2
    %v5423 = vrot.slane %v5382, 1
    %vm5425 = vcmask 1040384
    %v5426 = vsel %vm5425, %v5367, %v5384
    %vm5427 = vcmask 1041408
    %v5428 = vsel %vm5427, %v5426, %v5387
    %vm5429 = vcmask 1042432
    %v5430 = vsel %vm5429, %v5428, %v5390
    %vm5431 = vcmask 1043456
    %v5432 = vsel %vm5431, %v5430, %v5393
    %vm5433 = vcmask 1044480
    %v5434 = vsel %vm5433, %v5432, %v5396
    %vm5435 = vcmask 1045504
    %v5436 = vsel %vm5435, %v5434, %v5399
    %vm5437 = vcmask 1046528
    %v5438 = vsel %vm5437, %v5436, %v5402
    %v5439 = vsel %vm5425, %v5375, %v5405
    %v5440 = vsel %vm5427, %v5439, %v5408
    %v5441 = vsel %vm5429, %v5440, %v5411
    %v5442 = vsel %vm5431, %v5441, %v5414
    %v5443 = vsel %vm5433, %v5442, %v5417
    %v5444 = vsel %vm5435, %v5443, %v5420
    %v5445 = vsel %vm5437, %v5444, %v5423
    %5446 = vmax.xlane.f32.xlu0 %v5438
    %v5447 = vpop.xlane.xlu0 %5446
    %5448 = vmax.xlane.f32.xlu0 %v5445
    %v5449 = vpop.xlane.xlu0 %5448
    %v5450 = vsub.f32 %v5438, %v5447
    %v5451 = vsub.f32 %v5445, %v5449
    %v5452 = vmul.f32 %v5450, 1.442695
    %v5453 = vpow.pop %v5452
    %v5454 = vmul.f32 %v5451, 1.442695
    %v5455 = vpow.pop %v5454
    %5456 = vadd.xlane.f32.xlu0 %v5453
    %v5457 = vpop.xlane.xlu0 %5456
    %5458 = vadd.xlane.f32.xlu0 %v5455
    %v5459 = vpop.xlane.xlu0 %5458
    %v5460 = vrcp.pop %v5457
    %v5461 = vmul.f32 %v5453, %v5460
    %v5462 = vrcp.pop %v5459
    %v5463 = vmul.f32 %v5455, %v5462
    %5464 = vst [vmem:[#allocation6] sm:$0xff] %v5461
    %5465 = vst [vmem:[#allocation6 + $0x8] sm:$0xff] %v5463
    // Predicated region
    $region50: #{tpu_custom_call.1} parent=1 // pred_check
      _
    $region51: #{tpu_custom_call.1} parent=1 // pred_check_branch
      %5467 = sbr.rel (0) target = $region53
    $region52: #{tpu_custom_call.1} parent=1 // pred_region
      %s5469 = ssub.s32 256, 256
      %5470 = vsyncadd [#allocation5], %s5469
      %s5471 = sshll.u32 [#allocation6], 4
      %s5472 = int_to_ptr.vmem [resolvable:$true] %s5471
      %5477 = dma.vmem_to_hbm [thread:$0]  %s5472, 256, %s11, [#allocation5], 128, 128, 8
    $region53: #{tpu_custom_call.1} parent=1 // pred_fallthru
      _
    // Predicated region
    $region54: #{tpu_custom_call.1} parent=1 // pred_check
      _
    $region55: #{tpu_custom_call.1} parent=1 // pred_check_branch
      %5479 = sbr.rel (0) target = $region57
    $region56: #{tpu_custom_call.1} parent=1 // pred_region
      %5480 = dma.done [#allocation5], 256
    $region57: #{tpu_custom_call.1} parent=1 // pred_fallthru
      _
    %5481 = vsyncpa [#allocation4], 1
    %5482 = vsyncpa [#allocation5], 1

</llo_original>
